<compile_context>
chip_gen: v5e
topology: v5e:2x2
jax: 0.10.0
libtpu: 0.0.40
codegen_flags: <defaults>
</compile_context>

<pallas_src>
import functools

import jax
import jax.numpy as jnp
from jax.experimental import pallas as pl
from jax.experimental.pallas import tpu as pltpu

LANE = 128                      # TPU lane width; channel tiles are multiples.
COMPUTE_DTYPE = jnp.bfloat16    # MXU operand dtype (f32 accumulation).


# ----------------------------------------------------------------------------
# Small helpers
# ----------------------------------------------------------------------------
def _round_up(n, m):
    return ((n + m - 1) // m) * m


def _pad_axis(a, target, axis):
    pad = target - a.shape[axis]
    if pad <= 0:
        return a
    widths = [(0, 0)] * a.ndim
    widths[axis] = (0, pad)
    return jnp.pad(a, widths)


@functools.lru_cache(maxsize=None)
def _tpu_caps():
    """(is_v5e, physical VMEM bytes) -- best-effort, safe fallbacks."""
    kind = ""
    try:
        kind = jax.devices()[0].device_kind.lower()
    except Exception:                                   # pragma: no cover
        pass
    is_v5e = ("v5 lite" in kind) or ("v5e" in kind) or ("v5litepod" in kind)
    vmem = None
    try:
        vmem = int(pltpu.get_tpu_info().vmem_capacity_bytes)
    except Exception:
        vmem = None
    if not vmem:
        vmem = (64 << 20) if "v7" in kind else (128 << 20)
    return is_v5e, vmem


def _vmem_limit_bytes(physical):
    # Explicit scoped-VMEM limit: ~102 MiB on 128 MiB chips, ~51 MiB on v7x.
    return int(min(0.8 * physical, 110 * 1024 * 1024))


def _pick_tile_cout(cout_p, is_v5e):
    # v6e/v7x MXU is 2x256x256 -> 256 when it divides; v5e is 4x128x128 -> 128.
    if (not is_v5e) and cout_p % 256 == 0:
        return 256
    return 128


def _conv3x3_vmem_bytes(tile_h, w_out, wp_in, cin, tcout, stride, has_res,
                        act_bytes):
    """Per-grid-step VMEM estimate (double-buffered blocks + in-kernel temps)."""
    bh = stride * tile_h
    wp_out = w_out + 2
    rows = tile_h * w_out
    total = 2 * (bh * wp_in * cin) * act_bytes              # body block x2
    total += 2 * 2 * (wp_in * cin) * act_bytes               # top/bot halos x2
    total += 2 * (tile_h * wp_out * tcout) * act_bytes       # output block x2
    if has_res:
        total += 2 * (tile_h * wp_out * tcout) * act_bytes   # residual block x2
    total += 2 * (9 * cin * tcout) * act_bytes                # weight tile x2
    total += 2 * 2 * tcout * 4                                # scale/bias x2
    # in-kernel temporaries
    total += (bh + 2) * wp_in * cin * act_bytes               # xh window
    total += 2 * rows * cin * act_bytes                       # live tap slices
    total += rows * tcout * 4                                 # f32 accumulator
    total += tile_h * wp_out * tcout * (4 + act_bytes)        # padded y + cast
    return total


def _conv1x1_vmem_bytes(tile_h, w_out, wp_in, cin, tcout, stride, act_bytes):
    bh = stride * tile_h
    wp_out = w_out + 2
    rows = tile_h * w_out
    total = 2 * (bh * wp_in * cin) * act_bytes
    total += 2 * (tile_h * wp_out * tcout) * act_bytes
    total += 2 * (cin * tcout) * act_bytes
    total += 2 * 2 * tcout * 4
    total += rows * cin * act_bytes
    total += rows * tcout * 4
    total += tile_h * wp_out * tcout * (4 + act_bytes)
    return total


def _largest_tile_h(h_out, w_out, rows_cap, fits):
    """Largest divisor of h_out that fits the VMEM budget and the rows cap."""
    best = 1
    for d in range(1, h_out + 1):
        if h_out % d:
            continue
        if d > 1 and d * w_out > rows_cap:
            continue
        if fits(d):
            best = d
    return best


# ----------------------------------------------------------------------------
# Pallas kernel: 3x3 conv (pad=1) + folded BN (+ residual) (+ ReLU), PW layout
# ----------------------------------------------------------------------------
def _conv3x3_bn_kernel(top_ref, body_ref, bot_ref, w_ref, scale_ref, bias_ref,
                       *rest, stride, apply_relu, has_residual):
    """One (n, cout-tile, row-tile) grid step.

    top/bot_ref : (1, 1, W+2, Cin_p)   bf16 H-halo rows (masked at image border)
    body_ref    : (1, stride*TH, W+2, Cin_p) bf16
    w_ref       : (9, Cin_p, TCOUT)    bf16 tap-major weights
    scale/bias  : (1, TCOUT)           f32 folded BatchNorm affine
    res_ref     : (1, TH, Wout+2, TCOUT) optional bf16 residual (PW layout)
    out_ref     : (1, TH, Wout+2, TCOUT) bf16 PW layout (border cols zero)
    """
    if has_residual:
        res_ref, out_ref = rest
    else:
        (out_ref,) = rest

    _, th, wp_out, tcout = out_ref.shape
    w_out = wp_out - 2
    cin = body_ref.shape[-1]
    rows = th * w_out

    # Row-tile position (innermost grid axis): zero the halo rows that fall
    # outside the image (their index_map was clamped at the border).
    i = pl.program_id(2)
    top = top_ref[...]
    bot = bot_ref[...]
    top = jnp.where(i > 0, top, jnp.zeros_like(top))
    bot = jnp.where(i < pl.num_programs(2) - 1, bot, jnp.zeros_like(bot))

    # Padded input window for this tile: (1, stride*TH + 2, W+2, Cin_p), bf16.
    xh = jnp.concatenate([top, body_ref[...], bot], axis=1)

    # 9 accumulating MXU dots -- no materialized (rows, 9*Cin) im2col matrix.
    acc = None
    for t in range(9):
        dy, dx = t // 3, t % 3
        limit = (1, dy + stride * (th - 1) + 1,
                 dx + stride * (w_out - 1) + 1, cin)
        if stride == 1:
            tap = jax.lax.slice(xh, (0, dy, dx, 0), limit)
        else:
            tap = jax.lax.slice(xh, (0, dy, dx, 0), limit,
                                (1, stride, stride, 1))
        part = jnp.dot(tap.reshape(rows, cin), w_ref[t],
                       preferred_element_type=jnp.float32)
        acc = part if acc is None else acc + part

    y = acc * scale_ref[...] + bias_ref[...]                 # folded BN (f32)
    y = y.reshape(1, th, w_out, tcout)
    if has_residual:
        y = y + res_ref[:, :, 1:w_out + 1, :].astype(jnp.float32)
    if apply_relu:
        y = jnp.maximum(y, 0.0)

    # Single full-block store: build the zero W-border columns in-register.
    zcol = jnp.zeros((1, th, 1, tcout), jnp.float32)
    y = jnp.concatenate([zcol, y, zcol], axis=2)
    out_ref[...] = y.astype(out_ref.dtype)


def conv3x3_bn_act(x, w, scale, bias, *, stride=1, apply_relu=False,
                   residual=None, tile_h=None, tile_cout=None):
    """3x3 conv (pad=1, no bias) + folded BN (+ residual) (+ ReLU).

    x        : (N, H, W+2, Cin_p)  bf16 PW layout, border columns must be zero
    w        : (3, 3, Cin_p, Cout_p) HWIO, padded channels zeroed
    scale/bias : (Cout_p,) folded BN (f32)
    residual : optional (N, H//s, W//s + 2, Cout_p) PW layout
    returns  : (N, H//s, W//s + 2, Cout_p) PW layout (border columns zero)
    """
    N, H, Wp, Cin = x.shape
    W = Wp - 2
    Cout = w.shape[-1]
    assert stride in (1, 2)
    assert Cin % LANE == 0 and Cout % LANE == 0
    if stride > 1:
        assert H % stride == 0 and W % stride == 0
    H_out, W_out = H // stride, W // stride

    is_v5e, vmem_phys = _tpu_caps()
    vmem_limit = _vmem_limit_bytes(vmem_phys)
    act_bytes = jnp.dtype(x.dtype).itemsize
    has_residual = residual is not None

    if tile_cout is None or Cout % tile_cout:
        tile_cout = _pick_tile_cout(Cout, is_v5e)
    if tile_h is None or H_out % tile_h:
        rows_cap = 1024 if is_v5e else 2048
        budget = int(0.6 * vmem_limit)
        tile_h = _largest_tile_h(
            H_out, W_out, rows_cap,
            lambda d: _conv3x3_vmem_bytes(d, W_out, Wp, Cin, tile_cout, stride,
                                          has_residual, act_bytes) <= budget)
    bh = stride * tile_h                       # input rows per output row tile

    w3 = w.reshape(9, Cin, Cout).astype(x.dtype)       # tap-major weights
    scale2 = scale.reshape(1, Cout).astype(jnp.float32)
    bias2 = bias.reshape(1, Cout).astype(jnp.float32)

    grid = (N, Cout // tile_cout, H_out // tile_h)     # row tiles innermost

    in_specs = [
        # 1-row top / bottom H halos (clamped at image border, masked in-kernel).
        pl.BlockSpec((1, 1, Wp, Cin),
                     lambda n, c, i: (n, jnp.maximum(i * bh - 1, 0), 0, 0)),
        pl.BlockSpec((1, bh, Wp, Cin), lambda n, c, i: (n, i, 0, 0)),
        pl.BlockSpec((1, 1, Wp, Cin),
                     lambda n, c, i: (n, jnp.minimum(i * bh + bh, H - 1), 0, 0)),
        # Weight / BN tiles: block index depends only on c -> stay resident in
        # VMEM across the innermost row axis (no re-DMA per spatial tile).
        pl.BlockSpec((9, Cin, tile_cout), lambda n, c, i: (0, 0, c)),
        pl.BlockSpec((1, tile_cout), lambda n, c, i: (0, c)),
        pl.BlockSpec((1, tile_cout), lambda n, c, i: (0, c)),
    ]
    inputs = [x, x, x, w3, scale2, bias2]

    out_spec = pl.BlockSpec((1, tile_h, W_out + 2, tile_cout),
                            lambda n, c, i: (n, i, 0, c))
    if has_residual:
        in_specs.append(out_spec)
        inputs.append(residual.astype(x.dtype))

    n_ct = Cout // tile_cout
    flops = 2 * N * H_out * W_out * 9 * Cin * Cout
    bytes_accessed = (N * H * Wp * Cin * act_bytes * n_ct
                      + 9 * Cin * Cout * act_bytes
                      + (1 + int(has_residual)) * N * H_out * (W_out + 2)
                      * Cout * act_bytes)

    kernel = functools.partial(_conv3x3_bn_kernel, stride=stride,
                               apply_relu=apply_relu, has_residual=has_residual)
    return pl.pallas_call(
        kernel,
        out_shape=jax.ShapeDtypeStruct((N, H_out, W_out + 2, Cout), x.dtype),
        grid=grid,
        in_specs=in_specs,
        out_specs=out_spec,
        compiler_params=pltpu.CompilerParams(
            dimension_semantics=("parallel", "parallel", "parallel"),
            vmem_limit_bytes=int(vmem_limit)),
        cost_estimate=pl.CostEstimate(flops=int(flops), transcendentals=0,
                                      bytes_accessed=int(bytes_accessed)),
    )(*inputs)


# ----------------------------------------------------------------------------
# Pallas kernel: 1x1 conv + folded BN (downsample branch), PW layout
# ----------------------------------------------------------------------------
def _conv1x1_bn_kernel(x_ref, w_ref, scale_ref, bias_ref, out_ref, *, stride):
    _, th, wp_out, tcout = out_ref.shape
    w_out = wp_out - 2
    cin = x_ref.shape[-1]
    rows = th * w_out

    x = x_ref[...]
    limit = (1, stride * (th - 1) + 1, 1 + stride * (w_out - 1) + 1, cin)
    if stride == 1:
        p = jax.lax.slice(x, (0, 0, 1, 0), limit)
    else:
        p = jax.lax.slice(x, (0, 0, 1, 0), limit, (1, stride, stride, 1))
    y = jnp.dot(p.reshape(rows, cin), w_ref[...],
                preferred_element_type=jnp.float32)
    y = y * scale_ref[...] + bias_ref[...]
    y = y.reshape(1, th, w_out, tcout)

    zcol = jnp.zeros((1, th, 1, tcout), jnp.float32)
    y = jnp.concatenate([zcol, y, zcol], axis=2)
    out_ref[...] = y.astype(out_ref.dtype)


def conv1x1_bn(x, w, scale, bias, *, stride=1, tile_h=None, tile_cout=None):
    """1x1 conv (no bias) + folded BN, PW layout in/out (downsample branch)."""
    N, H, Wp, Cin = x.shape
    W = Wp - 2
    Cout = w.shape[-1]
    assert stride in (1, 2)
    if stride > 1:
        assert H % stride == 0 and W % stride == 0
    H_out, W_out = H // stride, W // stride

    is_v5e, vmem_phys = _tpu_caps()
    vmem_limit = _vmem_limit_bytes(vmem_phys)
    act_bytes = jnp.dtype(x.dtype).itemsize
    if tile_cout is None or Cout % tile_cout:
        tile_cout = _pick_tile_cout(Cout, is_v5e)
    if tile_h is None or H_out % tile_h:
        rows_cap = 1024 if is_v5e else 2048
        budget = int(0.6 * vmem_limit)
        tile_h = _largest_tile_h(
            H_out, W_out, rows_cap,
            lambda d: _conv1x1_vmem_bytes(d, W_out, Wp, Cin, tile_cout, stride,
                                          act_bytes) <= budget)
    bh = stride * tile_h

    scale2 = scale.reshape(1, Cout).astype(jnp.float32)
    bias2 = bias.reshape(1, Cout).astype(jnp.float32)
    grid = (N, Cout // tile_cout, H_out // tile_h)

    n_ct = Cout // tile_cout
    flops = 2 * N * H_out * W_out * Cin * Cout
    bytes_accessed = (N * H * Wp * Cin * act_bytes * n_ct
                      + Cin * Cout * act_bytes
                      + N * H_out * (W_out + 2) * Cout * act_bytes)

    return pl.pallas_call(
        functools.partial(_conv1x1_bn_kernel, stride=stride),
        out_shape=jax.ShapeDtypeStruct((N, H_out, W_out + 2, Cout), x.dtype),
        grid=grid,
        in_specs=[
            pl.BlockSpec((1, bh, Wp, Cin), lambda n, c, i: (n, i, 0, 0)),
            pl.BlockSpec((Cin, tile_cout), lambda n, c, i: (0, c)),
            pl.BlockSpec((1, tile_cout), lambda n, c, i: (0, c)),
            pl.BlockSpec((1, tile_cout), lambda n, c, i: (0, c)),
        ],
        out_specs=pl.BlockSpec((1, tile_h, W_out + 2, tile_cout),
                               lambda n, c, i: (n, i, 0, c)),
        compiler_params=pltpu.CompilerParams(
            dimension_semantics=("parallel", "parallel", "parallel"),
            vmem_limit_bytes=int(vmem_limit)),
        cost_estimate=pl.CostEstimate(flops=int(flops), transcendentals=0,
                                      bytes_accessed=int(bytes_accessed)),
    )(x, w.astype(x.dtype), scale2, bias2)


# ----------------------------------------------------------------------------
# Tiny attention branches (inactive with module defaults) -- plain-JAX glue.
# ----------------------------------------------------------------------------
def se_apply(x, w_fc1, w_fc2):
    v = jnp.mean(x, axis=(1, 2))                       # (N, C)
    v = jnp.maximum(v @ w_fc1.T, 0.0)
    v = jax.nn.sigmoid(v @ w_fc2.T)
    return x * v[:, None, None, :]


def channel_attention_apply(x, w1, w2):
    def fc(v):
        return jnp.maximum(v @ w1.T, 0.0) @ w2.T
    avg = jnp.mean(x, axis=(1, 2))
    mx = jnp.max(x, axis=(1, 2))
    y = jax.nn.sigmoid(fc(avg) + fc(mx))
    return x * y[:, None, None, :]


def spatial_attention_apply(x, w_sa_hwio, b_sa):
    avg = jnp.mean(x, axis=3, keepdims=True)
    mx = jnp.max(x, axis=3, keepdims=True)
    mask = jnp.concatenate([avg, mx], axis=3)
    m = jax.lax.conv_general_dilated(
        mask, w_sa_hwio, (1, 1), ((1, 1), (1, 1)),
        dimension_numbers=("NHWC", "HWIO", "NHWC"))
    m = jax.nn.sigmoid(m + b_sa.reshape(1, 1, 1, 1))
    return x * m


# ----------------------------------------------------------------------------
# BasicBlock forward
# ----------------------------------------------------------------------------
def fold_bn(gamma, beta, mean, var, eps=1e-5):
    scale = gamma / jnp.sqrt(var + eps)
    return scale, beta - mean * scale


def _prepare_params(p, cin, cout):
    """Zero-pad weights / folded-BN params to lane-multiple channel counts and
    cast conv weights to the bf16 MXU operand dtype (BN affine stays f32)."""
    cp_in, cp_out = _round_up(cin, LANE), _round_up(cout, LANE)
    q = dict(p)
    q["w1"] = _pad_axis(_pad_axis(p["w1"], cp_in, 2), cp_out, 3).astype(COMPUTE_DTYPE)
    q["w2"] = _pad_axis(_pad_axis(p["w2"], cp_out, 2), cp_out, 3).astype(COMPUTE_DTYPE)
    for k in ("scale1", "bias1", "scale2", "bias2"):
        q[k] = _pad_axis(p[k], cp_out, 0).astype(jnp.float32)
    if p.get("w_ds") is not None:
        q["w_ds"] = _pad_axis(_pad_axis(p["w_ds"], cp_in, 0),
                              cp_out, 1).astype(COMPUTE_DTYPE)
        q["scale_ds"] = _pad_axis(p["scale_ds"], cp_out, 0).astype(jnp.float32)
        q["bias_ds"] = _pad_axis(p["bias_ds"], cp_out, 0).astype(jnp.float32)
    return q


def basic_block_forward_nhwc(x_pw, q, planes, *, stride=1, se=False,
                             cbam=False, tile_h=None):
    """BasicBlock on a bf16 PW-layout activation (channels padded to a multiple
    of 128, width padded by one zero column per side).  Returns PW layout.

    A full ResNet keeps activations in this layout between blocks so the
    NCHW<->NHWC transpose / pads / dtype casts happen once at the stem."""
    has_ds = q.get("w_ds") is not None
    assert stride == 1 or has_ds, "stride>1 requires the downsample branch"
    if has_ds:
        identity = conv1x1_bn(x_pw, q["w_ds"], q["scale_ds"], q["bias_ds"],
                              stride=stride, tile_h=tile_h)
    else:
        identity = x_pw

    out = conv3x3_bn_act(x_pw, q["w1"], q["scale1"], q["bias1"],
                         stride=stride, apply_relu=True, tile_h=tile_h)

    if se or cbam:
        # Attention branches are off by default; keep them as small plain-JAX
        # epilogues on the un-padded channel slice (f32 math).
        out = conv3x3_bn_act(out, q["w2"], q["scale2"], q["bias2"],
                             stride=1, apply_relu=False, tile_h=tile_h)
        o = out[:, :, 1:-1, :planes].astype(jnp.float32)
        idn = identity[:, :, 1:-1, :planes].astype(jnp.float32)
        if se and not cbam:
            o = se_apply(o, q["se_w1"], q["se_w2"])
        if cbam and not se:
            o = channel_attention_apply(o, q["ca_w1"], q["ca_w2"])
            o = spatial_attention_apply(o, q["sa_w"], q["sa_b"])
        o = jnp.maximum(o + idn, 0.0).astype(out.dtype)
        out = jnp.pad(o, ((0, 0), (0, 0), (1, 1),
                          (0, out.shape[-1] - planes)))
    else:
        # Hot path: conv2 + bn2 + residual add + ReLU fused in one kernel.
        out = conv3x3_bn_act(out, q["w2"], q["scale2"], q["bias2"],
                             stride=1, apply_relu=True, residual=identity,
                             tile_h=tile_h)
    return out


def basic_block_forward(x_nchw, p, *, stride=1, se=False, cbam=False,
                        tile_h=None):
    """PyTorch-convention entry point: NCHW float32 in / out.  MXU runs in
    bf16 with f32 accumulation (documented behavior vs the f32 PyTorch conv)."""
    N, C_in, H, W = x_nchw.shape
    C_out = p["w2"].shape[-1]
    cp_in = _round_up(C_in, LANE)

    # Single transpose + single pad + single bf16 cast at the block boundary.
    x = jnp.transpose(x_nchw, (0, 2, 3, 1))
    x_pw = jnp.pad(x, ((0, 0), (0, 0), (1, 1),
                       (0, cp_in - C_in))).astype(COMPUTE_DTYPE)

    q = _prepare_params(p, C_in, C_out)
    out = basic_block_forward_nhwc(x_pw, q, C_out, stride=stride, se=se,
                                   cbam=cbam, tile_h=tile_h)
    out = out[:, :, 1:-1, :C_out].astype(jnp.float32)   # drop W pad + ch pad
    return jnp.transpose(out, (0, 3, 1, 2))


# TODO(synk): only the BasicBlock of the ResNet is kernelized here; the stem
# conv7x7 / maxpool, bilinear upsampling and the extra 1x1 feature-fusion convs
# of the full network are not (they would reuse the same PW-layout kernels).


# ----------------------------------------------------------------------------
# References (plain JAX), deterministic parameters, demo run
# ----------------------------------------------------------------------------
def _ref_conv(v, w, dtype):
    return jax.lax.conv_general_dilated(
        v.astype(dtype), w.astype(dtype), (1, 1), ((1, 1), (1, 1)),
        dimension_numbers=("NHWC", "HWIO", "NHWC"),
        preferred_element_type=jnp.float32)


def ref_basic_block_bf16(x_nchw, p):
    """Reference matching the kernel's bf16-operand / f32-accum numerics."""
    x = jnp.transpose(x_nchw, (0, 2, 3, 1)).astype(jnp.bfloat16)
    out = jnp.maximum(_ref_conv(x, p["w1"], jnp.bfloat16)
                      * p["scale1"] + p["bias1"], 0.0)
    out = _ref_conv(out.astype(jnp.bfloat16), p["w2"], jnp.bfloat16) \
        * p["scale2"] + p["bias2"]
    out = jnp.maximum(out + x.astype(jnp.float32), 0.0)
    out = out.astype(jnp.bfloat16).astype(jnp.float32)   # kernel stores bf16
    return jnp.transpose(out, (0, 3, 1, 2))


def ref_basic_block_f32(x_nchw, p):
    x = jnp.transpose(x_nchw, (0, 2, 3, 1))
    out = jnp.maximum(_ref_conv(x, p["w1"], jnp.float32)
                      * p["scale1"] + p["bias1"], 0.0)
    out = _ref_conv(out, p["w2"], jnp.float32) * p["scale2"] + p["bias2"]
    out = jnp.maximum(out + x, 0.0)
    return jnp.transpose(out, (0, 3, 1, 2))


def make_params(key, inplanes, planes, reduction=4):
    ks = jax.random.split(key, 16)
    w1 = 0.1 * jax.random.normal(ks[0], (3, 3, inplanes, planes), jnp.float32)
    w2 = 0.1 * jax.random.normal(ks[1], (3, 3, planes, planes), jnp.float32)

    g1 = jax.random.uniform(ks[2], (planes,), jnp.float32, 0.5, 1.5)
    b1 = 0.1 * jax.random.normal(ks[3], (planes,), jnp.float32)
    m1 = 0.1 * jax.random.normal(ks[4], (planes,), jnp.float32)
    v1 = jax.random.uniform(ks[5], (planes,), jnp.float32, 0.5, 1.5)
    g2 = jax.random.uniform(ks[6], (planes,), jnp.float32, 0.5, 1.5)
    b2 = 0.1 * jax.random.normal(ks[7], (planes,), jnp.float32)
    m2 = 0.1 * jax.random.normal(ks[8], (planes,), jnp.float32)
    v2 = jax.random.uniform(ks[9], (planes,), jnp.float32, 0.5, 1.5)
    scale1, bias1 = fold_bn(g1, b1, m1, v1)
    scale2, bias2 = fold_bn(g2, b2, m2, v2)

    cr = max(planes // reduction, 1)
    return dict(
        w1=w1, w2=w2, scale1=scale1, bias1=bias1, scale2=scale2, bias2=bias2,
        se_w1=0.1 * jax.random.normal(ks[10], (cr, planes), jnp.float32),
        se_w2=0.1 * jax.random.normal(ks[11], (planes, cr), jnp.float32),
        ca_w1=0.1 * jax.random.normal(ks[12], (cr, planes), jnp.float32),
        ca_w2=0.1 * jax.random.normal(ks[13], (planes, cr), jnp.float32),
        sa_w=0.1 * jax.random.normal(ks[14], (3, 3, 2, 1), jnp.float32),
        sa_b=0.1 * jax.random.normal(ks[15], (1,), jnp.float32),
    )


if __name__ == "__main__":
    key = jax.random.PRNGKey(0)
    k_x, k_p = jax.random.split(key)

    N, C, H, W = 2, 8, 16, 16      # inplanes == planes, stride=1, no downsample
    x = jax.random.normal(k_x, (N, C, H, W), jnp.float32)
    params = make_params(k_p, inplanes=C, planes=C, reduction=4)

    # tile_h=8 -> two row tiles per image, exercising the halo / pipelined grid.
    fwd = jax.jit(lambda xx, pp: basic_block_forward(
        xx, pp, stride=1, se=False, cbam=False, tile_h=8))
    out = jax.block_until_ready(fwd(x, params))

    assert out.shape == (N, C, H, W)
    assert bool(jnp.all(out >= 0.0))                 # trailing ReLU

    ref_bf16 = ref_basic_block_bf16(x, params)
    err = float(jnp.max(jnp.abs(out - ref_bf16)))
    assert err < 5e-3, f"mismatch vs bf16-matched reference: {err}"

    ref_f32 = ref_basic_block_f32(x, params)
    err32 = float(jnp.max(jnp.abs(out - ref_f32)))
    assert err32 < 5e-2, f"mismatch vs f32 reference: {err32}"

    print("KERNEL_OK")
</pallas_src>

<mosaic_0001>
module attributes {stable_mosaic.version = 11 : i64} {
  func.func @_conv3x3_bn_kernel(%arg0: i32, %arg1: i32, %arg2: i32, %arg3: memref<1x1x18x128xbf16, #tpu.memory_space<vmem>>, %arg4: memref<1x8x18x128xbf16, #tpu.memory_space<vmem>>, %arg5: memref<1x1x18x128xbf16, #tpu.memory_space<vmem>>, %arg6: memref<9x128x128xbf16, #tpu.memory_space<vmem>>, %arg7: memref<1x128xf32, #tpu.memory_space<vmem>>, %arg8: memref<1x128xf32, #tpu.memory_space<vmem>>, %arg9: memref<1x8x18x128xbf16, #tpu.memory_space<vmem>>) attributes {dimension_semantics = [#tpu.dimension_semantics<parallel>, #tpu.dimension_semantics<parallel>, #tpu.dimension_semantics<parallel>], iteration_bounds = array<i64: 2, 1, 2>, scalar_prefetch = 0 : i64, scratch_operands = 0 : i64, tpu.core_type = #tpu.core_type<tc>, window_params = [{transform_indices = @transform_0, window_bounds = array<i64: 1, 1, 18, 128>}, {transform_indices = @transform_1, window_bounds = array<i64: 1, 8, 18, 128>}, {transform_indices = @transform_2, window_bounds = array<i64: 1, 1, 18, 128>}, {transform_indices = @transform_3, window_bounds = array<i64: 9, 128, 128>}, {transform_indices = @transform_4, window_bounds = array<i64: 1, 128>}, {transform_indices = @transform_5, window_bounds = array<i64: 1, 128>}, {transform_indices = @transform_6, window_bounds = array<i64: 1, 8, 18, 128>}]} {
    %c0 = arith.constant 0 : index
    %c0_0 = arith.constant 0 : index
    %c0_1 = arith.constant 0 : index
    %c0_2 = arith.constant 0 : index
    %0 = vector.load %arg3[%c0, %c0_0, %c0_1, %c0_2] : memref<1x1x18x128xbf16, #tpu.memory_space<vmem>>, vector<1x1x18x128xbf16>
    %c0_3 = arith.constant 0 : index
    %c0_4 = arith.constant 0 : index
    %c0_5 = arith.constant 0 : index
    %c0_6 = arith.constant 0 : index
    %1 = vector.load %arg5[%c0_3, %c0_4, %c0_5, %c0_6] : memref<1x1x18x128xbf16, #tpu.memory_space<vmem>>, vector<1x1x18x128xbf16>
    %c0_i32 = arith.constant 0 : i32
    %2 = arith.cmpi sgt, %arg2, %c0_i32 : i32
    %cst = arith.constant 0.000000e+00 : bf16
    %3 = vector.broadcast %cst : bf16 to vector<1x1x18x128xbf16>
    %4 = arith.select %2, %0, %3 : vector<1x1x18x128xbf16>
    %c1_i32 = arith.constant 1 : i32
    %5 = arith.cmpi slt, %arg2, %c1_i32 : i32
    %cst_7 = arith.constant 0.000000e+00 : bf16
    %6 = vector.broadcast %cst_7 : bf16 to vector<1x1x18x128xbf16>
    %7 = arith.select %5, %1, %6 : vector<1x1x18x128xbf16>
    %c0_8 = arith.constant 0 : index
    %c0_9 = arith.constant 0 : index
    %c0_10 = arith.constant 0 : index
    %c0_11 = arith.constant 0 : index
    %8 = vector.load %arg4[%c0_8, %c0_9, %c0_10, %c0_11] : memref<1x8x18x128xbf16, #tpu.memory_space<vmem>>, vector<1x8x18x128xbf16>
    %9 = tpu.concatenate %4, %8, %7 in 1 : vector<1x1x18x128xbf16>, vector<1x8x18x128xbf16>, vector<1x1x18x128xbf16> -> vector<1x10x18x128xbf16>
    %10 = vector.extract_strided_slice %9 {offsets = [0, 0, 0, 0], sizes = [1, 8, 16, 128], strides = [1, 1, 1, 1]} : vector<1x10x18x128xbf16> to vector<1x8x16x128xbf16>
    %11 = vector.shape_cast %10 : vector<1x8x16x128xbf16> to vector<128x128xbf16>
    %c0_12 = arith.constant 0 : index
    %c0_13 = arith.constant 0 : index
    %c0_14 = arith.constant 0 : index
    %12 = vector.load %arg6[%c0_12, %c0_13, %c0_14] : memref<9x128x128xbf16, #tpu.memory_space<vmem>>, vector<1x128x128xbf16>
    %13 = vector.shape_cast %12 : vector<1x128x128xbf16> to vector<128x128xbf16>
    %cst_15 = arith.constant dense<0.000000e+00> : vector<128x128xf32>
    %14 = tpu.matmul %11, %13, %cst_15 {dimension_numbers = #tpu.dot_dimension_numbers<[1], [0], [0], [1], [0, 0, 1, 1], [], []>} : vector<128x128xbf16>, vector<128x128xbf16>, vector<128x128xf32> -> vector<128x128xf32>
    %15 = vector.extract_strided_slice %9 {offsets = [0, 0, 1, 0], sizes = [1, 8, 16, 128], strides = [1, 1, 1, 1]} : vector<1x10x18x128xbf16> to vector<1x8x16x128xbf16>
    %16 = vector.shape_cast %15 : vector<1x8x16x128xbf16> to vector<128x128xbf16>
    %c1 = arith.constant 1 : index
    %c0_16 = arith.constant 0 : index
    %c0_17 = arith.constant 0 : index
    %17 = vector.load %arg6[%c1, %c0_16, %c0_17] : memref<9x128x128xbf16, #tpu.memory_space<vmem>>, vector<1x128x128xbf16>
    %18 = vector.shape_cast %17 : vector<1x128x128xbf16> to vector<128x128xbf16>
    %cst_18 = arith.constant dense<0.000000e+00> : vector<128x128xf32>
    %19 = tpu.matmul %16, %18, %cst_18 {dimension_numbers = #tpu.dot_dimension_numbers<[1], [0], [0], [1], [0, 0, 1, 1], [], []>} : vector<128x128xbf16>, vector<128x128xbf16>, vector<128x128xf32> -> vector<128x128xf32>
    %20 = arith.addf %14, %19 : vector<128x128xf32>
    %21 = vector.extract_strided_slice %9 {offsets = [0, 0, 2, 0], sizes = [1, 8, 16, 128], strides = [1, 1, 1, 1]} : vector<1x10x18x128xbf16> to vector<1x8x16x128xbf16>
    %22 = vector.shape_cast %21 : vector<1x8x16x128xbf16> to vector<128x128xbf16>
    %c2 = arith.constant 2 : index
    %c0_19 = arith.constant 0 : index
    %c0_20 = arith.constant 0 : index
    %23 = vector.load %arg6[%c2, %c0_19, %c0_20] : memref<9x128x128xbf16, #tpu.memory_space<vmem>>, vector<1x128x128xbf16>
    %24 = vector.shape_cast %23 : vector<1x128x128xbf16> to vector<128x128xbf16>
    %cst_21 = arith.constant dense<0.000000e+00> : vector<128x128xf32>
    %25 = tpu.matmul %22, %24, %cst_21 {dimension_numbers = #tpu.dot_dimension_numbers<[1], [0], [0], [1], [0, 0, 1, 1], [], []>} : vector<128x128xbf16>, vector<128x128xbf16>, vector<128x128xf32> -> vector<128x128xf32>
    %26 = arith.addf %20, %25 : vector<128x128xf32>
    %27 = vector.extract_strided_slice %9 {offsets = [0, 1, 0, 0], sizes = [1, 8, 16, 128], strides = [1, 1, 1, 1]} : vector<1x10x18x128xbf16> to vector<1x8x16x128xbf16>
    %28 = vector.shape_cast %27 : vector<1x8x16x128xbf16> to vector<128x128xbf16>
    %c3 = arith.constant 3 : index
    %c0_22 = arith.constant 0 : index
    %c0_23 = arith.constant 0 : index
    %29 = vector.load %arg6[%c3, %c0_22, %c0_23] : memref<9x128x128xbf16, #tpu.memory_space<vmem>>, vector<1x128x128xbf16>
    %30 = vector.shape_cast %29 : vector<1x128x128xbf16> to vector<128x128xbf16>
    %cst_24 = arith.constant dense<0.000000e+00> : vector<128x128xf32>
    %31 = tpu.matmul %28, %30, %cst_24 {dimension_numbers = #tpu.dot_dimension_numbers<[1], [0], [0], [1], [0, 0, 1, 1], [], []>} : vector<128x128xbf16>, vector<128x128xbf16>, vector<128x128xf32> -> vector<128x128xf32>
    %32 = arith.addf %26, %31 : vector<128x128xf32>
    %33 = vector.extract_strided_slice %9 {offsets = [0, 1, 1, 0], sizes = [1, 8, 16, 128], strides = [1, 1, 1, 1]} : vector<1x10x18x128xbf16> to vector<1x8x16x128xbf16>
    %34 = vector.shape_cast %33 : vector<1x8x16x128xbf16> to vector<128x128xbf16>
    %c4 = arith.constant 4 : index
    %c0_25 = arith.constant 0 : index
    %c0_26 = arith.constant 0 : index
    %35 = vector.load %arg6[%c4, %c0_25, %c0_26] : memref<9x128x128xbf16, #tpu.memory_space<vmem>>, vector<1x128x128xbf16>
    %36 = vector.shape_cast %35 : vector<1x128x128xbf16> to vector<128x128xbf16>
    %cst_27 = arith.constant dense<0.000000e+00> : vector<128x128xf32>
    %37 = tpu.matmul %34, %36, %cst_27 {dimension_numbers = #tpu.dot_dimension_numbers<[1], [0], [0], [1], [0, 0, 1, 1], [], []>} : vector<128x128xbf16>, vector<128x128xbf16>, vector<128x128xf32> -> vector<128x128xf32>
    %38 = arith.addf %32, %37 : vector<128x128xf32>
    %39 = vector.extract_strided_slice %9 {offsets = [0, 1, 2, 0], sizes = [1, 8, 16, 128], strides = [1, 1, 1, 1]} : vector<1x10x18x128xbf16> to vector<1x8x16x128xbf16>
    %40 = vector.shape_cast %39 : vector<1x8x16x128xbf16> to vector<128x128xbf16>
    %c5 = arith.constant 5 : index
    %c0_28 = arith.constant 0 : index
    %c0_29 = arith.constant 0 : index
    %41 = vector.load %arg6[%c5, %c0_28, %c0_29] : memref<9x128x128xbf16, #tpu.memory_space<vmem>>, vector<1x128x128xbf16>
    %42 = vector.shape_cast %41 : vector<1x128x128xbf16> to vector<128x128xbf16>
    %cst_30 = arith.constant dense<0.000000e+00> : vector<128x128xf32>
    %43 = tpu.matmul %40, %42, %cst_30 {dimension_numbers = #tpu.dot_dimension_numbers<[1], [0], [0], [1], [0, 0, 1, 1], [], []>} : vector<128x128xbf16>, vector<128x128xbf16>, vector<128x128xf32> -> vector<128x128xf32>
    %44 = arith.addf %38, %43 : vector<128x128xf32>
    %45 = vector.extract_strided_slice %9 {offsets = [0, 2, 0, 0], sizes = [1, 8, 16, 128], strides = [1, 1, 1, 1]} : vector<1x10x18x128xbf16> to vector<1x8x16x128xbf16>
    %46 = vector.shape_cast %45 : vector<1x8x16x128xbf16> to vector<128x128xbf16>
    %c6 = arith.constant 6 : index
    %c0_31 = arith.constant 0 : index
    %c0_32 = arith.constant 0 : index
    %47 = vector.load %arg6[%c6, %c0_31, %c0_32] : memref<9x128x128xbf16, #tpu.memory_space<vmem>>, vector<1x128x128xbf16>
    %48 = vector.shape_cast %47 : vector<1x128x128xbf16> to vector<128x128xbf16>
    %cst_33 = arith.constant dense<0.000000e+00> : vector<128x128xf32>
    %49 = tpu.matmul %46, %48, %cst_33 {dimension_numbers = #tpu.dot_dimension_numbers<[1], [0], [0], [1], [0, 0, 1, 1], [], []>} : vector<128x128xbf16>, vector<128x128xbf16>, vector<128x128xf32> -> vector<128x128xf32>
    %50 = arith.addf %44, %49 : vector<128x128xf32>
    %51 = vector.extract_strided_slice %9 {offsets = [0, 2, 1, 0], sizes = [1, 8, 16, 128], strides = [1, 1, 1, 1]} : vector<1x10x18x128xbf16> to vector<1x8x16x128xbf16>
    %52 = vector.shape_cast %51 : vector<1x8x16x128xbf16> to vector<128x128xbf16>
    %c7 = arith.constant 7 : index
    %c0_34 = arith.constant 0 : index
    %c0_35 = arith.constant 0 : index
    %53 = vector.load %arg6[%c7, %c0_34, %c0_35] : memref<9x128x128xbf16, #tpu.memory_space<vmem>>, vector<1x128x128xbf16>
    %54 = vector.shape_cast %53 : vector<1x128x128xbf16> to vector<128x128xbf16>
    %cst_36 = arith.constant dense<0.000000e+00> : vector<128x128xf32>
    %55 = tpu.matmul %52, %54, %cst_36 {dimension_numbers = #tpu.dot_dimension_numbers<[1], [0], [0], [1], [0, 0, 1, 1], [], []>} : vector<128x128xbf16>, vector<128x128xbf16>, vector<128x128xf32> -> vector<128x128xf32>
    %56 = arith.addf %50, %55 : vector<128x128xf32>
    %57 = vector.extract_strided_slice %9 {offsets = [0, 2, 2, 0], sizes = [1, 8, 16, 128], strides = [1, 1, 1, 1]} : vector<1x10x18x128xbf16> to vector<1x8x16x128xbf16>
    %58 = vector.shape_cast %57 : vector<1x8x16x128xbf16> to vector<128x128xbf16>
    %c8 = arith.constant 8 : index
    %c0_37 = arith.constant 0 : index
    %c0_38 = arith.constant 0 : index
    %59 = vector.load %arg6[%c8, %c0_37, %c0_38] : memref<9x128x128xbf16, #tpu.memory_space<vmem>>, vector<1x128x128xbf16>
    %60 = vector.shape_cast %59 : vector<1x128x128xbf16> to vector<128x128xbf16>
    %cst_39 = arith.constant dense<0.000000e+00> : vector<128x128xf32>
    %61 = tpu.matmul %58, %60, %cst_39 {dimension_numbers = #tpu.dot_dimension_numbers<[1], [0], [0], [1], [0, 0, 1, 1], [], []>} : vector<128x128xbf16>, vector<128x128xbf16>, vector<128x128xf32> -> vector<128x128xf32>
    %62 = arith.addf %56, %61 : vector<128x128xf32>
    %c0_40 = arith.constant 0 : index
    %c0_41 = arith.constant 0 : index
    %63 = vector.load %arg7[%c0_40, %c0_41] : memref<1x128xf32, #tpu.memory_space<vmem>>, vector<1x128xf32>
    %64 = vector.broadcast %63 : vector<1x128xf32> to vector<128x128xf32>
    %65 = arith.mulf %62, %64 : vector<128x128xf32>
    %c0_42 = arith.constant 0 : index
    %c0_43 = arith.constant 0 : index
    %66 = vector.load %arg8[%c0_42, %c0_43] : memref<1x128xf32, #tpu.memory_space<vmem>>, vector<1x128xf32>
    %67 = vector.broadcast %66 : vector<1x128xf32> to vector<128x128xf32>
    %68 = arith.addf %65, %67 : vector<128x128xf32>
    %69 = vector.shape_cast %68 : vector<128x128xf32> to vector<1x8x16x128xf32>
    %cst_44 = arith.constant 0.000000e+00 : f32
    %70 = vector.broadcast %cst_44 : f32 to vector<1x8x16x128xf32>
    %71 = arith.maximumf %69, %70 : vector<1x8x16x128xf32>
    %cst_45 = arith.constant 0.000000e+00 : f32
    %72 = vector.broadcast %cst_45 : f32 to vector<1x8x1x128xf32>
    %73 = tpu.concatenate %72, %71, %72 in 2 : vector<1x8x1x128xf32>, vector<1x8x16x128xf32>, vector<1x8x1x128xf32> -> vector<1x8x18x128xf32>
    %74 = arith.truncf %73 : vector<1x8x18x128xf32> to vector<1x8x18x128xbf16>
    %c0_46 = arith.constant 0 : index
    %c0_47 = arith.constant 0 : index
    %c0_48 = arith.constant 0 : index
    %c0_49 = arith.constant 0 : index
    %75 = vector.load %arg9[%c0_46, %c0_47, %c0_48, %c0_49] : memref<1x8x18x128xbf16, #tpu.memory_space<vmem>>, vector<1x8x18x128xbf16>
    tpu.vector_store %arg9[%c0_46, %c0_47, %c0_48, %c0_49], %74 {strides = array<i32>} : memref<1x8x18x128xbf16, #tpu.memory_space<vmem>>, vector<1x8x18x128xbf16>,
    return
  }
  func.func @transform_0(%arg0: i32, %arg1: i32, %arg2: i32) -> (i32, i32, i32, i32) {
    %c8_i32 = arith.constant 8 : i32
    %0 = arith.muli %arg2, %c8_i32 : i32
    %c1_i32 = arith.constant 1 : i32
    %1 = arith.subi %0, %c1_i32 : i32
    %c0_i32 = arith.constant 0 : i32
    %2 = arith.maxsi %1, %c0_i32 : i32
    %c0_i32_0 = arith.constant 0 : i32
    %c0_i32_1 = arith.constant 0 : i32
    %c0_i32_2 = arith.constant 0 : i32
    return %arg0, %2, %c0_i32_0, %c0_i32_1 : i32, i32, i32, i32
  }
  func.func @transform_1(%arg0: i32, %arg1: i32, %arg2: i32) -> (i32, i32, i32, i32) {
    %c0_i32 = arith.constant 0 : i32
    %c0_i32_0 = arith.constant 0 : i32
    %c0_i32_1 = arith.constant 0 : i32
    return %arg0, %arg2, %c0_i32, %c0_i32_0 : i32, i32, i32, i32
  }
  func.func @transform_2(%arg0: i32, %arg1: i32, %arg2: i32) -> (i32, i32, i32, i32) {
    %c8_i32 = arith.constant 8 : i32
    %0 = arith.muli %arg2, %c8_i32 : i32
    %c8_i32_0 = arith.constant 8 : i32
    %1 = arith.addi %0, %c8_i32_0 : i32
    %c15_i32 = arith.constant 15 : i32
    %2 = arith.minsi %1, %c15_i32 : i32
    %c0_i32 = arith.constant 0 : i32
    %c0_i32_1 = arith.constant 0 : i32
    %c0_i32_2 = arith.constant 0 : i32
    return %arg0, %2, %c0_i32, %c0_i32_1 : i32, i32, i32, i32
  }
  func.func @transform_3(%arg0: i32, %arg1: i32, %arg2: i32) -> (i32, i32, i32) {
    %c0_i32 = arith.constant 0 : i32
    %c0_i32_0 = arith.constant 0 : i32
    %c0_i32_1 = arith.constant 0 : i32
    return %c0_i32, %c0_i32_0, %arg1 : i32, i32, i32
  }
  func.func @transform_4(%arg0: i32, %arg1: i32, %arg2: i32) -> (i32, i32) {
    %c0_i32 = arith.constant 0 : i32
    %c0_i32_0 = arith.constant 0 : i32
    return %c0_i32, %arg1 : i32, i32
  }
  func.func @transform_5(%arg0: i32, %arg1: i32, %arg2: i32) -> (i32, i32) {
    %c0_i32 = arith.constant 0 : i32
    %c0_i32_0 = arith.constant 0 : i32
    return %c0_i32, %arg1 : i32, i32
  }
  func.func @transform_6(%arg0: i32, %arg1: i32, %arg2: i32) -> (i32, i32, i32, i32) {
    %c0_i32 = arith.constant 0 : i32
    %c0_i32_0 = arith.constant 0 : i32
    return %arg0, %arg2, %c0_i32, %arg1 : i32, i32, i32, i32
  }
}

module attributes {stable_mosaic.version = 11 : i64} {
  func.func @_conv3x3_bn_kernel(%arg0: i32, %arg1: i32, %arg2: i32, %arg3: memref<1x1x18x128xbf16, #tpu.memory_space<vmem>>, %arg4: memref<1x8x18x128xbf16, #tpu.memory_space<vmem>>, %arg5: memref<1x1x18x128xbf16, #tpu.memory_space<vmem>>, %arg6: memref<9x128x128xbf16, #tpu.memory_space<vmem>>, %arg7: memref<1x128xf32, #tpu.memory_space<vmem>>, %arg8: memref<1x128xf32, #tpu.memory_space<vmem>>, %arg9: memref<1x8x18x128xbf16, #tpu.memory_space<vmem>>, %arg10: memref<1x8x18x128xbf16, #tpu.memory_space<vmem>>) attributes {dimension_semantics = [#tpu.dimension_semantics<parallel>, #tpu.dimension_semantics<parallel>, #tpu.dimension_semantics<parallel>], iteration_bounds = array<i64: 2, 1, 2>, scalar_prefetch = 0 : i64, scratch_operands = 0 : i64, tpu.core_type = #tpu.core_type<tc>, window_params = [{transform_indices = @transform_0, window_bounds = array<i64: 1, 1, 18, 128>}, {transform_indices = @transform_1, window_bounds = array<i64: 1, 8, 18, 128>}, {transform_indices = @transform_2, window_bounds = array<i64: 1, 1, 18, 128>}, {transform_indices = @transform_3, window_bounds = array<i64: 9, 128, 128>}, {transform_indices = @transform_4, window_bounds = array<i64: 1, 128>}, {transform_indices = @transform_5, window_bounds = array<i64: 1, 128>}, {transform_indices = @transform_6, window_bounds = array<i64: 1, 8, 18, 128>}, {transform_indices = @transform_7, window_bounds = array<i64: 1, 8, 18, 128>}]} {
    %c0 = arith.constant 0 : index
    %c0_0 = arith.constant 0 : index
    %c0_1 = arith.constant 0 : index
    %c0_2 = arith.constant 0 : index
    %0 = vector.load %arg3[%c0, %c0_0, %c0_1, %c0_2] : memref<1x1x18x128xbf16, #tpu.memory_space<vmem>>, vector<1x1x18x128xbf16>
    %c0_3 = arith.constant 0 : index
    %c0_4 = arith.constant 0 : index
    %c0_5 = arith.constant 0 : index
    %c0_6 = arith.constant 0 : index
    %1 = vector.load %arg5[%c0_3, %c0_4, %c0_5, %c0_6] : memref<1x1x18x128xbf16, #tpu.memory_space<vmem>>, vector<1x1x18x128xbf16>
    %c0_i32 = arith.constant 0 : i32
    %2 = arith.cmpi sgt, %arg2, %c0_i32 : i32
    %cst = arith.constant 0.000000e+00 : bf16
    %3 = vector.broadcast %cst : bf16 to vector<1x1x18x128xbf16>
    %4 = arith.select %2, %0, %3 : vector<1x1x18x128xbf16>
    %c1_i32 = arith.constant 1 : i32
    %5 = arith.cmpi slt, %arg2, %c1_i32 : i32
    %cst_7 = arith.constant 0.000000e+00 : bf16
    %6 = vector.broadcast %cst_7 : bf16 to vector<1x1x18x128xbf16>
    %7 = arith.select %5, %1, %6 : vector<1x1x18x128xbf16>
    %c0_8 = arith.constant 0 : index
    %c0_9 = arith.constant 0 : index
    %c0_10 = arith.constant 0 : index
    %c0_11 = arith.constant 0 : index
    %8 = vector.load %arg4[%c0_8, %c0_9, %c0_10, %c0_11] : memref<1x8x18x128xbf16, #tpu.memory_space<vmem>>, vector<1x8x18x128xbf16>
    %9 = tpu.concatenate %4, %8, %7 in 1 : vector<1x1x18x128xbf16>, vector<1x8x18x128xbf16>, vector<1x1x18x128xbf16> -> vector<1x10x18x128xbf16>
    %10 = vector.extract_strided_slice %9 {offsets = [0, 0, 0, 0], sizes = [1, 8, 16, 128], strides = [1, 1, 1, 1]} : vector<1x10x18x128xbf16> to vector<1x8x16x128xbf16>
    %11 = vector.shape_cast %10 : vector<1x8x16x128xbf16> to vector<128x128xbf16>
    %c0_12 = arith.constant 0 : index
    %c0_13 = arith.constant 0 : index
    %c0_14 = arith.constant 0 : index
    %12 = vector.load %arg6[%c0_12, %c0_13, %c0_14] : memref<9x128x128xbf16, #tpu.memory_space<vmem>>, vector<1x128x128xbf16>
    %13 = vector.shape_cast %12 : vector<1x128x128xbf16> to vector<128x128xbf16>
    %cst_15 = arith.constant dense<0.000000e+00> : vector<128x128xf32>
    %14 = tpu.matmul %11, %13, %cst_15 {dimension_numbers = #tpu.dot_dimension_numbers<[1], [0], [0], [1], [0, 0, 1, 1], [], []>} : vector<128x128xbf16>, vector<128x128xbf16>, vector<128x128xf32> -> vector<128x128xf32>
    %15 = vector.extract_strided_slice %9 {offsets = [0, 0, 1, 0], sizes = [1, 8, 16, 128], strides = [1, 1, 1, 1]} : vector<1x10x18x128xbf16> to vector<1x8x16x128xbf16>
    %16 = vector.shape_cast %15 : vector<1x8x16x128xbf16> to vector<128x128xbf16>
    %c1 = arith.constant 1 : index
    %c0_16 = arith.constant 0 : index
    %c0_17 = arith.constant 0 : index
    %17 = vector.load %arg6[%c1, %c0_16, %c0_17] : memref<9x128x128xbf16, #tpu.memory_space<vmem>>, vector<1x128x128xbf16>
    %18 = vector.shape_cast %17 : vector<1x128x128xbf16> to vector<128x128xbf16>
    %cst_18 = arith.constant dense<0.000000e+00> : vector<128x128xf32>
    %19 = tpu.matmul %16, %18, %cst_18 {dimension_numbers = #tpu.dot_dimension_numbers<[1], [0], [0], [1], [0, 0, 1, 1], [], []>} : vector<128x128xbf16>, vector<128x128xbf16>, vector<128x128xf32> -> vector<128x128xf32>
    %20 = arith.addf %14, %19 : vector<128x128xf32>
    %21 = vector.extract_strided_slice %9 {offsets = [0, 0, 2, 0], sizes = [1, 8, 16, 128], strides = [1, 1, 1, 1]} : vector<1x10x18x128xbf16> to vector<1x8x16x128xbf16>
    %22 = vector.shape_cast %21 : vector<1x8x16x128xbf16> to vector<128x128xbf16>
    %c2 = arith.constant 2 : index
    %c0_19 = arith.constant 0 : index
    %c0_20 = arith.constant 0 : index
    %23 = vector.load %arg6[%c2, %c0_19, %c0_20] : memref<9x128x128xbf16, #tpu.memory_space<vmem>>, vector<1x128x128xbf16>
    %24 = vector.shape_cast %23 : vector<1x128x128xbf16> to vector<128x128xbf16>
    %cst_21 = arith.constant dense<0.000000e+00> : vector<128x128xf32>
    %25 = tpu.matmul %22, %24, %cst_21 {dimension_numbers = #tpu.dot_dimension_numbers<[1], [0], [0], [1], [0, 0, 1, 1], [], []>} : vector<128x128xbf16>, vector<128x128xbf16>, vector<128x128xf32> -> vector<128x128xf32>
    %26 = arith.addf %20, %25 : vector<128x128xf32>
    %27 = vector.extract_strided_slice %9 {offsets = [0, 1, 0, 0], sizes = [1, 8, 16, 128], strides = [1, 1, 1, 1]} : vector<1x10x18x128xbf16> to vector<1x8x16x128xbf16>
    %28 = vector.shape_cast %27 : vector<1x8x16x128xbf16> to vector<128x128xbf16>
    %c3 = arith.constant 3 : index
    %c0_22 = arith.constant 0 : index
    %c0_23 = arith.constant 0 : index
    %29 = vector.load %arg6[%c3, %c0_22, %c0_23] : memref<9x128x128xbf16, #tpu.memory_space<vmem>>, vector<1x128x128xbf16>
    %30 = vector.shape_cast %29 : vector<1x128x128xbf16> to vector<128x128xbf16>
    %cst_24 = arith.constant dense<0.000000e+00> : vector<128x128xf32>
    %31 = tpu.matmul %28, %30, %cst_24 {dimension_numbers = #tpu.dot_dimension_numbers<[1], [0], [0], [1], [0, 0, 1, 1], [], []>} : vector<128x128xbf16>, vector<128x128xbf16>, vector<128x128xf32> -> vector<128x128xf32>
    %32 = arith.addf %26, %31 : vector<128x128xf32>
    %33 = vector.extract_strided_slice %9 {offsets = [0, 1, 1, 0], sizes = [1, 8, 16, 128], strides = [1, 1, 1, 1]} : vector<1x10x18x128xbf16> to vector<1x8x16x128xbf16>
    %34 = vector.shape_cast %33 : vector<1x8x16x128xbf16> to vector<128x128xbf16>
    %c4 = arith.constant 4 : index
    %c0_25 = arith.constant 0 : index
    %c0_26 = arith.constant 0 : index
    %35 = vector.load %arg6[%c4, %c0_25, %c0_26] : memref<9x128x128xbf16, #tpu.memory_space<vmem>>, vector<1x128x128xbf16>
    %36 = vector.shape_cast %35 : vector<1x128x128xbf16> to vector<128x128xbf16>
    %cst_27 = arith.constant dense<0.000000e+00> : vector<128x128xf32>
    %37 = tpu.matmul %34, %36, %cst_27 {dimension_numbers = #tpu.dot_dimension_numbers<[1], [0], [0], [1], [0, 0, 1, 1], [], []>} : vector<128x128xbf16>, vector<128x128xbf16>, vector<128x128xf32> -> vector<128x128xf32>
    %38 = arith.addf %32, %37 : vector<128x128xf32>
    %39 = vector.extract_strided_slice %9 {offsets = [0, 1, 2, 0], sizes = [1, 8, 16, 128], strides = [1, 1, 1, 1]} : vector<1x10x18x128xbf16> to vector<1x8x16x128xbf16>
    %40 = vector.shape_cast %39 : vector<1x8x16x128xbf16> to vector<128x128xbf16>
    %c5 = arith.constant 5 : index
    %c0_28 = arith.constant 0 : index
    %c0_29 = arith.constant 0 : index
    %41 = vector.load %arg6[%c5, %c0_28, %c0_29] : memref<9x128x128xbf16, #tpu.memory_space<vmem>>, vector<1x128x128xbf16>
    %42 = vector.shape_cast %41 : vector<1x128x128xbf16> to vector<128x128xbf16>
    %cst_30 = arith.constant dense<0.000000e+00> : vector<128x128xf32>
    %43 = tpu.matmul %40, %42, %cst_30 {dimension_numbers = #tpu.dot_dimension_numbers<[1], [0], [0], [1], [0, 0, 1, 1], [], []>} : vector<128x128xbf16>, vector<128x128xbf16>, vector<128x128xf32> -> vector<128x128xf32>
    %44 = arith.addf %38, %43 : vector<128x128xf32>
    %45 = vector.extract_strided_slice %9 {offsets = [0, 2, 0, 0], sizes = [1, 8, 16, 128], strides = [1, 1, 1, 1]} : vector<1x10x18x128xbf16> to vector<1x8x16x128xbf16>
    %46 = vector.shape_cast %45 : vector<1x8x16x128xbf16> to vector<128x128xbf16>
    %c6 = arith.constant 6 : index
    %c0_31 = arith.constant 0 : index
    %c0_32 = arith.constant 0 : index
    %47 = vector.load %arg6[%c6, %c0_31, %c0_32] : memref<9x128x128xbf16, #tpu.memory_space<vmem>>, vector<1x128x128xbf16>
    %48 = vector.shape_cast %47 : vector<1x128x128xbf16> to vector<128x128xbf16>
    %cst_33 = arith.constant dense<0.000000e+00> : vector<128x128xf32>
    %49 = tpu.matmul %46, %48, %cst_33 {dimension_numbers = #tpu.dot_dimension_numbers<[1], [0], [0], [1], [0, 0, 1, 1], [], []>} : vector<128x128xbf16>, vector<128x128xbf16>, vector<128x128xf32> -> vector<128x128xf32>
    %50 = arith.addf %44, %49 : vector<128x128xf32>
    %51 = vector.extract_strided_slice %9 {offsets = [0, 2, 1, 0], sizes = [1, 8, 16, 128], strides = [1, 1, 1, 1]} : vector<1x10x18x128xbf16> to vector<1x8x16x128xbf16>
    %52 = vector.shape_cast %51 : vector<1x8x16x128xbf16> to vector<128x128xbf16>
    %c7 = arith.constant 7 : index
    %c0_34 = arith.constant 0 : index
    %c0_35 = arith.constant 0 : index
    %53 = vector.load %arg6[%c7, %c0_34, %c0_35] : memref<9x128x128xbf16, #tpu.memory_space<vmem>>, vector<1x128x128xbf16>
    %54 = vector.shape_cast %53 : vector<1x128x128xbf16> to vector<128x128xbf16>
    %cst_36 = arith.constant dense<0.000000e+00> : vector<128x128xf32>
    %55 = tpu.matmul %52, %54, %cst_36 {dimension_numbers = #tpu.dot_dimension_numbers<[1], [0], [0], [1], [0, 0, 1, 1], [], []>} : vector<128x128xbf16>, vector<128x128xbf16>, vector<128x128xf32> -> vector<128x128xf32>
    %56 = arith.addf %50, %55 : vector<128x128xf32>
    %57 = vector.extract_strided_slice %9 {offsets = [0, 2, 2, 0], sizes = [1, 8, 16, 128], strides = [1, 1, 1, 1]} : vector<1x10x18x128xbf16> to vector<1x8x16x128xbf16>
    %58 = vector.shape_cast %57 : vector<1x8x16x128xbf16> to vector<128x128xbf16>
    %c8 = arith.constant 8 : index
    %c0_37 = arith.constant 0 : index
    %c0_38 = arith.constant 0 : index
    %59 = vector.load %arg6[%c8, %c0_37, %c0_38] : memref<9x128x128xbf16, #tpu.memory_space<vmem>>, vector<1x128x128xbf16>
    %60 = vector.shape_cast %59 : vector<1x128x128xbf16> to vector<128x128xbf16>
    %cst_39 = arith.constant dense<0.000000e+00> : vector<128x128xf32>
    %61 = tpu.matmul %58, %60, %cst_39 {dimension_numbers = #tpu.dot_dimension_numbers<[1], [0], [0], [1], [0, 0, 1, 1], [], []>} : vector<128x128xbf16>, vector<128x128xbf16>, vector<128x128xf32> -> vector<128x128xf32>
    %62 = arith.addf %56, %61 : vector<128x128xf32>
    %c0_40 = arith.constant 0 : index
    %c0_41 = arith.constant 0 : index
    %63 = vector.load %arg7[%c0_40, %c0_41] : memref<1x128xf32, #tpu.memory_space<vmem>>, vector<1x128xf32>
    %64 = vector.broadcast %63 : vector<1x128xf32> to vector<128x128xf32>
    %65 = arith.mulf %62, %64 : vector<128x128xf32>
    %c0_42 = arith.constant 0 : index
    %c0_43 = arith.constant 0 : index
    %66 = vector.load %arg8[%c0_42, %c0_43] : memref<1x128xf32, #tpu.memory_space<vmem>>, vector<1x128xf32>
    %67 = vector.broadcast %66 : vector<1x128xf32> to vector<128x128xf32>
    %68 = arith.addf %65, %67 : vector<128x128xf32>
    %69 = vector.shape_cast %68 : vector<128x128xf32> to vector<1x8x16x128xf32>
    %c0_44 = arith.constant 0 : index
    %c0_45 = arith.constant 0 : index
    %c1_46 = arith.constant 1 : index
    %c0_47 = arith.constant 0 : index
    %70 = vector.load %arg9[%c0_44, %c0_45, %c1_46, %c0_47] : memref<1x8x18x128xbf16, #tpu.memory_space<vmem>>, vector<1x8x16x128xbf16>
    %71 = arith.extf %70 : vector<1x8x16x128xbf16> to vector<1x8x16x128xf32>
    %72 = arith.addf %69, %71 : vector<1x8x16x128xf32>
    %cst_48 = arith.constant 0.000000e+00 : f32
    %73 = vector.broadcast %cst_48 : f32 to vector<1x8x16x128xf32>
    %74 = arith.maximumf %72, %73 : vector<1x8x16x128xf32>
    %cst_49 = arith.constant 0.000000e+00 : f32
    %75 = vector.broadcast %cst_49 : f32 to vector<1x8x1x128xf32>
    %76 = tpu.concatenate %75, %74, %75 in 2 : vector<1x8x1x128xf32>, vector<1x8x16x128xf32>, vector<1x8x1x128xf32> -> vector<1x8x18x128xf32>
    %77 = arith.truncf %76 : vector<1x8x18x128xf32> to vector<1x8x18x128xbf16>
    %c0_50 = arith.constant 0 : index
    %c0_51 = arith.constant 0 : index
    %c0_52 = arith.constant 0 : index
    %c0_53 = arith.constant 0 : index
    %78 = vector.load %arg10[%c0_50, %c0_51, %c0_52, %c0_53] : memref<1x8x18x128xbf16, #tpu.memory_space<vmem>>, vector<1x8x18x128xbf16>
    tpu.vector_store %arg10[%c0_50, %c0_51, %c0_52, %c0_53], %77 {strides = array<i32>} : memref<1x8x18x128xbf16, #tpu.memory_space<vmem>>, vector<1x8x18x128xbf16>,
    return
  }
  func.func @transform_0(%arg0: i32, %arg1: i32, %arg2: i32) -> (i32, i32, i32, i32) {
    %c8_i32 = arith.constant 8 : i32
    %0 = arith.muli %arg2, %c8_i32 : i32
    %c1_i32 = arith.constant 1 : i32
    %1 = arith.subi %0, %c1_i32 : i32
    %c0_i32 = arith.constant 0 : i32
    %2 = arith.maxsi %1, %c0_i32 : i32
    %c0_i32_0 = arith.constant 0 : i32
    %c0_i32_1 = arith.constant 0 : i32
    %c0_i32_2 = arith.constant 0 : i32
    return %arg0, %2, %c0_i32_0, %c0_i32_1 : i32, i32, i32, i32
  }
  func.func @transform_1(%arg0: i32, %arg1: i32, %arg2: i32) -> (i32, i32, i32, i32) {
    %c0_i32 = arith.constant 0 : i32
    %c0_i32_0 = arith.constant 0 : i32
    %c0_i32_1 = arith.constant 0 : i32
    return %arg0, %arg2, %c0_i32, %c0_i32_0 : i32, i32, i32, i32
  }
  func.func @transform_2(%arg0: i32, %arg1: i32, %arg2: i32) -> (i32, i32, i32, i32) {
    %c8_i32 = arith.constant 8 : i32
    %0 = arith.muli %arg2, %c8_i32 : i32
    %c8_i32_0 = arith.constant 8 : i32
    %1 = arith.addi %0, %c8_i32_0 : i32
    %c15_i32 = arith.constant 15 : i32
    %2 = arith.minsi %1, %c15_i32 : i32
    %c0_i32 = arith.constant 0 : i32
    %c0_i32_1 = arith.constant 0 : i32
    %c0_i32_2 = arith.constant 0 : i32
    return %arg0, %2, %c0_i32, %c0_i32_1 : i32, i32, i32, i32
  }
  func.func @transform_3(%arg0: i32, %arg1: i32, %arg2: i32) -> (i32, i32, i32) {
    %c0_i32 = arith.constant 0 : i32
    %c0_i32_0 = arith.constant 0 : i32
    %c0_i32_1 = arith.constant 0 : i32
    return %c0_i32, %c0_i32_0, %arg1 : i32, i32, i32
  }
  func.func @transform_4(%arg0: i32, %arg1: i32, %arg2: i32) -> (i32, i32) {
    %c0_i32 = arith.constant 0 : i32
    %c0_i32_0 = arith.constant 0 : i32
    return %c0_i32, %arg1 : i32, i32
  }
  func.func @transform_5(%arg0: i32, %arg1: i32, %arg2: i32) -> (i32, i32) {
    %c0_i32 = arith.constant 0 : i32
    %c0_i32_0 = arith.constant 0 : i32
    return %c0_i32, %arg1 : i32, i32
  }
  func.func @transform_6(%arg0: i32, %arg1: i32, %arg2: i32) -> (i32, i32, i32, i32) {
    %c0_i32 = arith.constant 0 : i32
    %c0_i32_0 = arith.constant 0 : i32
    return %arg0, %arg2, %c0_i32, %arg1 : i32, i32, i32, i32
  }
  func.func @transform_7(%arg0: i32, %arg1: i32, %arg2: i32) -> (i32, i32, i32, i32) {
    %c0_i32 = arith.constant 0 : i32
    %c0_i32_0 = arith.constant 0 : i32
    return %arg0, %arg2, %c0_i32, %arg1 : i32, i32, i32, i32
  }
}

</mosaic_0001>

<llo_original>
// kernel: _lambda_.2
$region0: #{_lambda_.2}
  #allocation0 [shape = 'u32[]', space=smem, size = 0x4, offset = 0x4, fixed_abs, tag = 'smem constant byte address 0x4 - core index']
  #allocation1 [shape = 'u32[72,128]{1,0:T(1,128)}', space=vmem, size = 0x9000, scoped, tag = 'internal scratch']
  %s0 = inlined_call_operand.vmem [shape: bf16[2,16,18,128], index: 0, kind: input, shape index: {}, may-alias: {0,1,2}]
  %s1 = inlined_call_operand.vmem [shape: bf16[2,16,18,128], index: 1, kind: input, shape index: {}, may-alias: {0,1,2}]
  %s2 = inlined_call_operand.vmem [shape: bf16[2,16,18,128], index: 2, kind: input, shape index: {}, may-alias: {0,1,2}]
  %s3 = inlined_call_operand.vmem [shape: bf16[9,128,128], index: 3, kind: input, shape index: {}]
  %s4 = inlined_call_operand.vmem [shape: f32[1,128], index: 4, kind: input, shape index: {}]
  %s5 = inlined_call_operand.vmem [shape: f32[1,128], index: 5, kind: input, shape index: {}]
  %s6 = inlined_call_operand.vmem [shape: bf16[2,16,18,128], index: 6, kind: output, shape index: {}]
  %s7 = sld [smem:[#allocation0]]
  $region57: #{_lambda_.2} parent=0
    _
  %s9 = ssub.s32 1, %s7
  %s10 = scalar_select 0, %s9, %s7
  loop: start=0, step=1, limit=6
  $region2: #{_lambda_.2} parent=0 // loop_pre_header
    _
  $region3: #{_lambda_.2} parent=0 // loop_header
    %s12 = sphi 0, %s16
    %p13 = scmp.ge.s32.totalorder %s12, 6
    %s19 = sphi 0, %s38
    %s20 = sphi 0, %s34
    %s21 = sphi 0, %s30
    %s22 = sphi 0, %s19
    %s23 = sphi 0, %s20
    %s24 = sphi 0, %s21
    %s25 = sphi 0, %s22
    %s26 = sphi 0, %s23
    %s27 = sphi 0, %s24
    %s51 = sphi 0, %s53
    %s54 = sphi 0, %s51
    %s55 = sphi 0, %s54
    %s71 = sphi 0, %s55
    %s79 = sphi 0, %s81
    %s82 = sphi 0, %s79
    %s83 = sphi 0, %s82
    %s99 = sphi 0, %s83
    %s115 = sphi 0, %s117
    %s118 = sphi 0, %s115
    %s119 = sphi 0, %s118
    %s135 = sphi 0, %s119
    %s141 = sphi 0, %s143
    %s144 = sphi 0, %s141
    %s145 = sphi 0, %s144
    %s161 = sphi 0, %s145
    %s167 = sphi 0, %s169
    %s170 = sphi 0, %s167
    %s171 = sphi 0, %s170
    %s187 = sphi 0, %s171
    %s193 = sphi 0, %s195
    %s196 = sphi 0, %s193
    %s197 = sphi 0, %s196
    %s213 = sphi 0, %s197
    %s223 = sphi 0, %s225
    %s226 = sphi 0, %s223
    %s227 = sphi 0, %s226
    %s243 = sphi 0, %s227
  $region4: #{_lambda_.2} parent=0 // loop_header_branch
    %15 = sbr.rel (%p13) target = $region8
  $region5: #{_lambda_.2} parent=0 // loop_body
    %s17 = ssub.s32 %s12, 1
    %s18 = ssub.s32 %s12, 2
    %s28 = sadd.s32 1, %s21
    %p29 = scmp.ge.s32.totalorder %s28, 2
    %s30 = scalar_select %p29, 0, %s28
    %s31 = sadd.s32 1, %s20
    %s32 = scalar_select %p29, %s31, %s20
    %p33 = scmp.ge.s32.totalorder %s32, 1
    %s34 = scalar_select %p33, 0, %s32
    %s35 = sadd.s32 1, %s19
    %s36 = scalar_select %p33, %s35, %s19
    %p37 = scmp.ge.s32.totalorder %s36, 2
    %s38 = scalar_select %p37, 0, %s36
    %s39 = smul.u32 %s21, 8
    %s40 = ssub.s32 %s39, 1
    %p41 = scmp.gt.s32.totalorder %s40, 0
    %s42 = scalar_select %p41, %s40, 0
    %s43 = smul.u32 %s30, 8
    %s44 = ssub.s32 %s43, 1
    %p45 = scmp.gt.s32.totalorder %s44, 0
    %s46 = scalar_select %p45, %s44, 0
    %s47 = ssub.s32 %s19, %s38
    %s48 = ssub.s32 %s42, %s46
    %s49 = sor.u32 %s47, %s48
    %p50 = scmp.eq.s32.totalorder %s49, 0
    %s52 = sadd.s32 %s51, 1
    %s53 = scalar_select %p50, %s51, %s52
    %p56 = pneg %p50
    %p57 = scmp.eq.s32.totalorder %s12, 3
    %p58 = por %p56, %p57
    %p59 = scmp.ne.s32.totalorder %s51, %s54
    %p60 = scmp.eq.s32.totalorder %s12, 0
    %p61 = por %p59, %p60
    %p62 = scmp.ne.s32.totalorder %s51, %s54
    %p63 = scmp.eq.s32.totalorder %s17, 3
    %p64 = por %p62, %p63
    %p65 = scmp.ne.s32.totalorder %s54, %s55
    %p66 = scmp.eq.s32.totalorder %s17, 0
    %p67 = por %p65, %p66
    %p68 = scmp.ne.s32.totalorder %s54, %s55
    %p69 = scmp.eq.s32.totalorder %s18, 3
    %p70 = por %p68, %p69
    %p72 = scmp.ne.s32.totalorder %s55, %s71
    %p73 = scmp.eq.s32.totalorder %s18, 0
    %p74 = por %p72, %p73
    %s75 = ssub.s32 %s19, %s38
    %s76 = ssub.s32 %s21, %s30
    %s77 = sor.u32 %s75, %s76
    %p78 = scmp.eq.s32.totalorder %s77, 0
    %s80 = sadd.s32 %s79, 1
    %s81 = scalar_select %p78, %s79, %s80
    %p84 = pneg %p78
    %p85 = scmp.eq.s32.totalorder %s12, 3
    %p86 = por %p84, %p85
    %p87 = scmp.ne.s32.totalorder %s79, %s82
    %p88 = scmp.eq.s32.totalorder %s12, 0
    %p89 = por %p87, %p88
    %p90 = scmp.ne.s32.totalorder %s79, %s82
    %p91 = scmp.eq.s32.totalorder %s17, 3
    %p92 = por %p90, %p91
    %p93 = scmp.ne.s32.totalorder %s82, %s83
    %p94 = scmp.eq.s32.totalorder %s17, 0
    %p95 = por %p93, %p94
    %p96 = scmp.ne.s32.totalorder %s82, %s83
    %p97 = scmp.eq.s32.totalorder %s18, 3
    %p98 = por %p96, %p97
    %p100 = scmp.ne.s32.totalorder %s83, %s99
    %p101 = scmp.eq.s32.totalorder %s18, 0
    %p102 = por %p100, %p101
    %s103 = smul.u32 %s21, 8
    %s104 = sadd.s32 %s103, 8
    %p105 = scmp.lt.s32.totalorder %s104, 15
    %s106 = scalar_select %p105, %s104, 15
    %s107 = smul.u32 %s30, 8
    %s108 = sadd.s32 %s107, 8
    %p109 = scmp.lt.s32.totalorder %s108, 15
    %s110 = scalar_select %p109, %s108, 15
    %s111 = ssub.s32 %s19, %s38
    %s112 = ssub.s32 %s106, %s110
    %s113 = sor.u32 %s111, %s112
    %p114 = scmp.eq.s32.totalorder %s113, 0
    %s116 = sadd.s32 %s115, 1
    %s117 = scalar_select %p114, %s115, %s116
    %p120 = pneg %p114
    %p121 = scmp.eq.s32.totalorder %s12, 3
    %p122 = por %p120, %p121
    %p123 = scmp.ne.s32.totalorder %s115, %s118
    %p124 = scmp.eq.s32.totalorder %s12, 0
    %p125 = por %p123, %p124
    %p126 = scmp.ne.s32.totalorder %s115, %s118
    %p127 = scmp.eq.s32.totalorder %s17, 3
    %p128 = por %p126, %p127
    %p129 = scmp.ne.s32.totalorder %s118, %s119
    %p130 = scmp.eq.s32.totalorder %s17, 0
    %p131 = por %p129, %p130
    %p132 = scmp.ne.s32.totalorder %s118, %s119
    %p133 = scmp.eq.s32.totalorder %s18, 3
    %p134 = por %p132, %p133
    %p136 = scmp.ne.s32.totalorder %s119, %s135
    %p137 = scmp.eq.s32.totalorder %s18, 0
    %p138 = por %p136, %p137
    %s139 = ssub.s32 %s20, %s34
    %p140 = scmp.eq.s32.totalorder %s139, 0
    %s142 = sadd.s32 %s141, 1
    %s143 = scalar_select %p140, %s141, %s142
    %p146 = pneg %p140
    %p147 = scmp.eq.s32.totalorder %s12, 3
    %p148 = por %p146, %p147
    %p149 = scmp.ne.s32.totalorder %s141, %s144
    %p150 = scmp.eq.s32.totalorder %s12, 0
    %p151 = por %p149, %p150
    %p152 = scmp.ne.s32.totalorder %s141, %s144
    %p153 = scmp.eq.s32.totalorder %s17, 3
    %p154 = por %p152, %p153
    %p155 = scmp.ne.s32.totalorder %s144, %s145
    %p156 = scmp.eq.s32.totalorder %s17, 0
    %p157 = por %p155, %p156
    %p158 = scmp.ne.s32.totalorder %s144, %s145
    %p159 = scmp.eq.s32.totalorder %s18, 3
    %p160 = por %p158, %p159
    %p162 = scmp.ne.s32.totalorder %s145, %s161
    %p163 = scmp.eq.s32.totalorder %s18, 0
    %p164 = por %p162, %p163
    %s165 = ssub.s32 %s20, %s34
    %p166 = scmp.eq.s32.totalorder %s165, 0
    %s168 = sadd.s32 %s167, 1
    %s169 = scalar_select %p166, %s167, %s168
    %p172 = pneg %p166
    %p173 = scmp.eq.s32.totalorder %s12, 3
    %p174 = por %p172, %p173
    %p175 = scmp.ne.s32.totalorder %s167, %s170
    %p176 = scmp.eq.s32.totalorder %s12, 0
    %p177 = por %p175, %p176
    %p178 = scmp.ne.s32.totalorder %s167, %s170
    %p179 = scmp.eq.s32.totalorder %s17, 3
    %p180 = por %p178, %p179
    %p181 = scmp.ne.s32.totalorder %s170, %s171
    %p182 = scmp.eq.s32.totalorder %s17, 0
    %p183 = por %p181, %p182
    %p184 = scmp.ne.s32.totalorder %s170, %s171
    %p185 = scmp.eq.s32.totalorder %s18, 3
    %p186 = por %p184, %p185
    %p188 = scmp.ne.s32.totalorder %s171, %s187
    %p189 = scmp.eq.s32.totalorder %s18, 0
    %p190 = por %p188, %p189
    %s191 = ssub.s32 %s20, %s34
    %p192 = scmp.eq.s32.totalorder %s191, 0
    %s194 = sadd.s32 %s193, 1
    %s195 = scalar_select %p192, %s193, %s194
    %p198 = pneg %p192
    %p199 = scmp.eq.s32.totalorder %s12, 3
    %p200 = por %p198, %p199
    %p201 = scmp.ne.s32.totalorder %s193, %s196
    %p202 = scmp.eq.s32.totalorder %s12, 0
    %p203 = por %p201, %p202
    %p204 = scmp.ne.s32.totalorder %s193, %s196
    %p205 = scmp.eq.s32.totalorder %s17, 3
    %p206 = por %p204, %p205
    %p207 = scmp.ne.s32.totalorder %s196, %s197
    %p208 = scmp.eq.s32.totalorder %s17, 0
    %p209 = por %p207, %p208
    %p210 = scmp.ne.s32.totalorder %s196, %s197
    %p211 = scmp.eq.s32.totalorder %s18, 3
    %p212 = por %p210, %p211
    %p214 = scmp.ne.s32.totalorder %s197, %s213
    %p215 = scmp.eq.s32.totalorder %s18, 0
    %p216 = por %p214, %p215
    %s217 = ssub.s32 %s19, %s38
    %s218 = ssub.s32 %s21, %s30
    %s219 = sor.u32 %s217, %s218
    %s220 = ssub.s32 %s20, %s34
    %s221 = sor.u32 %s219, %s220
    %p222 = scmp.eq.s32.totalorder %s221, 0
    %s224 = sadd.s32 %s223, 1
    %s225 = scalar_select %p222, %s223, %s224
    %p228 = pneg %p222
    %p229 = scmp.eq.s32.totalorder %s12, 3
    %p230 = por %p228, %p229
    %p231 = scmp.ne.s32.totalorder %s223, %s226
    %p232 = scmp.eq.s32.totalorder %s12, 0
    %p233 = por %p231, %p232
    %p234 = scmp.ne.s32.totalorder %s223, %s226
    %p235 = scmp.eq.s32.totalorder %s17, 3
    %p236 = por %p234, %p235
    %p237 = scmp.ne.s32.totalorder %s226, %s227
    %p238 = scmp.eq.s32.totalorder %s17, 0
    %p239 = por %p237, %p238
    %p240 = scmp.ne.s32.totalorder %s226, %s227
    %p241 = scmp.eq.s32.totalorder %s18, 3
    %p242 = por %p240, %p241
    %p244 = scmp.ne.s32.totalorder %s227, %s243
    %p245 = scmp.eq.s32.totalorder %s18, 0
    %p246 = por %p244, %p245
    %p247 = scmp.le.s32.totalorder 1, %s12
    %p248 = scmp.lt.s32.totalorder %s12, 5
    %p249 = pnand %p247, %p248
    %p250 = pneg %p249
    // Predicated region
    $region9: #{_lambda_.2} parent=5 // pred_check
      _
    $region10: #{_lambda_.2} parent=5 // pred_check_branch
      %252 = sbr.rel (%p249) target = $region12
    $region11: #{_lambda_.2} parent=5 // pred_region
      %s253 = ssub.s32 %s12, 1
      // Predicated region
      $region13: #{_lambda_.2} parent=11 // pred_check
        %p254 = pneg %p157
      $region14: #{_lambda_.2} parent=11 // pred_check_branch
        %256 = sbr.rel (%p254) target = $region16
      $region15: #{_lambda_.2} parent=11 // pred_region
        %p257 = scmp.lt.s32.totalorder %s23, 0
        %s258 = scalar_select %p257, %s23, 0
        %s259 = smul.addr %s258, 4
        %s260 = scalar_lea.vmem %s3, %s259
      $region16: #{_lambda_.2} parent=11 // pred_fallthru
        _
      // Predicated region
      $region17: #{_lambda_.2} parent=11 // pred_check
        %p261 = pneg %p183
      $region18: #{_lambda_.2} parent=11 // pred_check_branch
        %263 = sbr.rel (%p261) target = $region20
      $region19: #{_lambda_.2} parent=11 // pred_region
        %p264 = scmp.lt.s32.totalorder %s23, 0
        %s265 = scalar_select %p264, %s23, 0
        %s266 = scalar_lea.vmem %s4, %s265
      $region20: #{_lambda_.2} parent=11 // pred_fallthru
        _
      // Predicated region
      $region21: #{_lambda_.2} parent=11 // pred_check
        %p267 = pneg %p209
      $region22: #{_lambda_.2} parent=11 // pred_check_branch
        %269 = sbr.rel (%p267) target = $region24
      $region23: #{_lambda_.2} parent=11 // pred_region
        %p270 = scmp.lt.s32.totalorder %s23, 0
        %s271 = scalar_select %p270, %s23, 0
        %s272 = scalar_lea.vmem %s5, %s271
      $region24: #{_lambda_.2} parent=11 // pred_fallthru
        _
    $region12: #{_lambda_.2} parent=5 // pred_fallthru
      _
    %p273 = scmp.lt.s32.totalorder %s12, 4
    // Predicated region
    $region25: #{_lambda_.2} parent=5 // pred_check
      %p274 = pneg %p273
    $region26: #{_lambda_.2} parent=5 // pred_check_branch
      %276 = sbr.rel (%p274) target = $region28
    $region27: #{_lambda_.2} parent=5 // pred_region
      // Predicated region
      $region29: #{_lambda_.2} parent=27 // pred_check
        %p277 = pneg %p61
      $region30: #{_lambda_.2} parent=27 // pred_check_branch
        %279 = sbr.rel (%p277) target = $region32
      $region31: #{_lambda_.2} parent=27 // pred_region
        %s280 = smul.u32 %s21, 8
        %s281 = ssub.s32 %s280, 1
        %p282 = scmp.gt.s32.totalorder %s281, 0
        %s283 = scalar_select %p282, %s281, 0
        %p284 = scmp.lt.s32.totalorder %s19, 1
        %s285 = scalar_select %p284, %s19, 1
        %p286 = scmp.lt.s32.totalorder %s283, 15
        %s287 = scalar_select %p286, %s283, 15
        %s288 = smul.addr %s287, 3
        %s289 = smul.addr %s285, 48
        %s290 = sadd.s32 %s288, %s289
        %s291 = smul.addr %s290, 4
        %s292 = scalar_lea.vmem %s0, %s291
        %s293 = smul.u32 %s21, 8
        %s294 = ssub.s32 %s293, 1
        %p295 = scmp.gt.s32.totalorder %s294, 0
        %s296 = scalar_select %p295, %s294, 0
      $region32: #{_lambda_.2} parent=27 // pred_fallthru
        _
      // Predicated region
      $region33: #{_lambda_.2} parent=27 // pred_check
        %p297 = pneg %p89
      $region34: #{_lambda_.2} parent=27 // pred_check_branch
        %299 = sbr.rel (%p297) target = $region36
      $region35: #{_lambda_.2} parent=27 // pred_region
        %s300 = smul.u32 8, %s21
        %p301 = scmp.lt.s32.totalorder %s19, 1
        %s302 = scalar_select %p301, %s19, 1
        %p303 = scmp.lt.s32.totalorder %s300, 15
        %s304 = scalar_select %p303, %s300, 15
        %s305 = smul.addr %s304, 3
        %s306 = smul.addr %s302, 48
        %s307 = sadd.s32 %s305, %s306
        %s308 = smul.addr %s307, 4
        %s309 = scalar_lea.vmem %s1, %s308
        %s310 = smul.u32 8, %s21
      $region36: #{_lambda_.2} parent=27 // pred_fallthru
        _
      // Predicated region
      $region37: #{_lambda_.2} parent=27 // pred_check
        %p311 = pneg %p125
      $region38: #{_lambda_.2} parent=27 // pred_check_branch
        %313 = sbr.rel (%p311) target = $region40
      $region39: #{_lambda_.2} parent=27 // pred_region
        %s314 = smul.u32 %s21, 8
        %s315 = sadd.s32 %s314, 8
        %p316 = scmp.lt.s32.totalorder %s315, 15
        %s317 = scalar_select %p316, %s315, 15
        %p318 = scmp.lt.s32.totalorder %s19, 1
        %s319 = scalar_select %p318, %s19, 1
        %p320 = scmp.lt.s32.totalorder %s317, 15
        %s321 = scalar_select %p320, %s317, 15
        %s322 = smul.addr %s321, 3
        %s323 = smul.addr %s319, 48
        %s324 = sadd.s32 %s322, %s323
        %s325 = smul.addr %s324, 4
        %s326 = scalar_lea.vmem %s2, %s325
        %s327 = smul.u32 %s21, 8
        %s328 = sadd.s32 %s327, 8
        %p329 = scmp.lt.s32.totalorder %s328, 15
        %s330 = scalar_select %p329, %s328, 15
      $region40: #{_lambda_.2} parent=27 // pred_fallthru
        _
    $region28: #{_lambda_.2} parent=5 // pred_fallthru
      _
    %p331 = scmp.le.s32.totalorder 1, %s12
    %p332 = scmp.lt.s32.totalorder %s12, 5
    %p333 = pnand %p331, %p332
    %p334 = pneg %p333
    // Predicated region
    $region41: #{_lambda_.2} parent=5 // pred_check
      _
    $region42: #{_lambda_.2} parent=5 // pred_check_branch
      %336 = sbr.rel (%p333) target = $region44
    $region43: #{_lambda_.2} parent=5 // pred_region
      %s337 = ssub.s32 %s12, 1
      %s338 = smul.u32 %s24, 8
      %s339 = ssub.s32 %s338, 1
      %p340 = scmp.gt.s32.totalorder %s339, 0
      %s341 = scalar_select %p340, %s339, 0
      %p342 = scmp.lt.s32.totalorder %s22, 1
      %s343 = scalar_select %p342, %s22, 1
      %p344 = scmp.lt.s32.totalorder %s341, 15
      %s345 = scalar_select %p344, %s341, 15
      %s346 = smul.addr %s345, 3
      %s347 = smul.addr %s343, 48
      %s348 = sadd.s32 %s346, %s347
      %s349 = smul.addr %s348, 4
      %s350 = scalar_lea.vmem %s0, %s349
      %p351 = pneg %p67
      %p352 = pneg %p64
      %s353 = smul.u32 8, %s24
      %p354 = scmp.lt.s32.totalorder %s22, 1
      %s355 = scalar_select %p354, %s22, 1
      %p356 = scmp.lt.s32.totalorder %s353, 15
      %s357 = scalar_select %p356, %s353, 15
      %s358 = smul.addr %s357, 3
      %s359 = smul.addr %s355, 48
      %s360 = sadd.s32 %s358, %s359
      %s361 = smul.addr %s360, 4
      %s362 = scalar_lea.vmem %s1, %s361
      %p363 = pneg %p95
      %p364 = pneg %p92
      %s365 = smul.u32 %s24, 8
      %s366 = sadd.s32 %s365, 8
      %p367 = scmp.lt.s32.totalorder %s366, 15
      %s368 = scalar_select %p367, %s366, 15
      %p369 = scmp.lt.s32.totalorder %s22, 1
      %s370 = scalar_select %p369, %s22, 1
      %p371 = scmp.lt.s32.totalorder %s368, 15
      %s372 = scalar_select %p371, %s368, 15
      %s373 = smul.addr %s372, 3
      %s374 = smul.addr %s370, 48
      %s375 = sadd.s32 %s373, %s374
      %s376 = smul.addr %s375, 4
      %s377 = scalar_lea.vmem %s2, %s376
      %p378 = pneg %p131
      %p379 = pneg %p128
      %p380 = scmp.lt.s32.totalorder %s23, 0
      %s381 = scalar_select %p380, %s23, 0
      %s382 = smul.addr %s381, 4
      %s383 = scalar_lea.vmem %s3, %s382
      %p384 = pneg %p157
      %p385 = pneg %p154
      %p386 = scmp.lt.s32.totalorder %s23, 0
      %s387 = scalar_select %p386, %s23, 0
      %s388 = scalar_lea.vmem %s4, %s387
      %p389 = pneg %p183
      %p390 = pneg %p180
      %p391 = scmp.lt.s32.totalorder %s23, 0
      %s392 = scalar_select %p391, %s23, 0
      %s393 = scalar_lea.vmem %s5, %s392
      %p394 = pneg %p209
      %p395 = pneg %p206
      %p396 = pneg %p239
      %p397 = pneg %p236
      %s398 = smul.u32 8, %s24
      %p399 = scmp.lt.s32.totalorder %s22, 1
      %s400 = scalar_select %p399, %s22, 1
      %p401 = scmp.lt.s32.totalorder %s398, 15
      %s402 = scalar_select %p401, %s398, 15
      %p403 = scmp.lt.s32.totalorder %s23, 0
      %s404 = scalar_select %p403, %s23, 0
      %s405 = smul.addr %s402, 3
      %s406 = sadd.s32 %s404, %s405
      %s407 = smul.addr %s400, 48
      %s408 = sadd.s32 %s406, %s407
      %s409 = smul.addr %s408, 4
      %s410 = scalar_lea.vmem %s6, %s409
      %s411 = smul.u32 %s24, 8
      %s412 = ssub.s32 %s411, 1
      %p413 = scmp.gt.s32.totalorder %s412, 0
      %s414 = scalar_select %p413, %s412, 0
      %p415 = scmp.lt.s32.totalorder %s22, 1
      %s416 = scalar_select %p415, %s22, 1
      %p417 = scmp.lt.s32.totalorder %s414, 15
      %s418 = scalar_select %p417, %s414, 15
      %s419 = smul.addr %s418, 3
      %s420 = smul.addr %s416, 48
      %s421 = sadd.s32 %s419, %s420
      %s422 = smul.addr %s421, 4
      %s423 = scalar_lea.vmem %s0, %s422
      %s424 = smul.u32 %s24, 8
      %s425 = ssub.s32 %s424, 1
      %p426 = scmp.gt.s32.totalorder %s425, 0
      %s427 = scalar_select %p426, %s425, 0
      %s428 = smul.u32 8, %s24
      %p429 = scmp.lt.s32.totalorder %s22, 1
      %s430 = scalar_select %p429, %s22, 1
      %p431 = scmp.lt.s32.totalorder %s428, 15
      %s432 = scalar_select %p431, %s428, 15
      %s433 = smul.addr %s432, 3
      %s434 = smul.addr %s430, 48
      %s435 = sadd.s32 %s433, %s434
      %s436 = smul.addr %s435, 4
      %s437 = scalar_lea.vmem %s1, %s436
      %s438 = smul.u32 8, %s24
      %s439 = smul.u32 %s24, 8
      %s440 = sadd.s32 %s439, 8
      %p441 = scmp.lt.s32.totalorder %s440, 15
      %s442 = scalar_select %p441, %s440, 15
      %p443 = scmp.lt.s32.totalorder %s22, 1
      %s444 = scalar_select %p443, %s22, 1
      %p445 = scmp.lt.s32.totalorder %s442, 15
      %s446 = scalar_select %p445, %s442, 15
      %s447 = smul.addr %s446, 3
      %s448 = smul.addr %s444, 48
      %s449 = sadd.s32 %s447, %s448
      %s450 = smul.addr %s449, 4
      %s451 = scalar_lea.vmem %s2, %s450
      %s452 = smul.u32 %s24, 8
      %s453 = sadd.s32 %s452, 8
      %p454 = scmp.lt.s32.totalorder %s453, 15
      %s455 = scalar_select %p454, %s453, 15
      %p456 = scmp.lt.s32.totalorder %s23, 0
      %s457 = scalar_select %p456, %s23, 0
      %s458 = smul.addr %s457, 4
      %s459 = scalar_lea.vmem %s3, %s458
      %p460 = scmp.lt.s32.totalorder %s23, 0
      %s461 = scalar_select %p460, %s23, 0
      %s462 = scalar_lea.vmem %s4, %s461
      %p463 = scmp.lt.s32.totalorder %s23, 0
      %s464 = scalar_select %p463, %s23, 0
      %s465 = scalar_lea.vmem %s5, %s464
      %s466 = smul.u32 8, %s24
      %p467 = scmp.lt.s32.totalorder %s22, 1
      %s468 = scalar_select %p467, %s22, 1
      %p469 = scmp.lt.s32.totalorder %s466, 15
      %s470 = scalar_select %p469, %s466, 15
      %p471 = scmp.lt.s32.totalorder %s23, 0
      %s472 = scalar_select %p471, %s23, 0
      %s473 = smul.addr %s470, 3
      %s474 = sadd.s32 %s472, %s473
      %s475 = smul.addr %s468, 48
      %s476 = sadd.s32 %s474, %s475
      %s477 = smul.addr %s476, 4
      %s478 = scalar_lea.vmem %s6, %s477
      %s479 = smul.u32 8, %s24
      %v481 = vld [vmem:[%s423] sm:$0xf]
      %v482 = vld [vmem:[%s423 + $0x4] sm:$0xf]
      %v483 = vld [vmem:[%s423 + $0x8] sm:$0x1]
      %v484 = vld [vmem:[%s451] sm:$0xf]
      %v485 = vld [vmem:[%s451 + $0x4] sm:$0xf]
      %v486 = vld [vmem:[%s451 + $0x8] sm:$0x1]
      %p487 = scmp.gt.s32.totalorder %s24, 0
      %s488 = scalar_select %p487, 1, 0
      %v489 = vstv %s488
      %vm490 = vcmp.eq.s32.totalorder %v489, 1
      %v491 = vsel %vm490, %v481, 0
      %v492 = vsel %vm490, %v482, 0
      %v493 = vsel %vm490, %v483, 0
      %p494 = scmp.lt.s32.totalorder %s24, 1
      %s495 = scalar_select %p494, 1, 0
      %v496 = vstv %s495
      %vm497 = vcmp.eq.s32.totalorder %v496, 1
      %v498 = vsel %vm497, %v484, 0
      %v499 = vsel %vm497, %v485, 0
      %v500 = vsel %vm497, %v486, 0
      %v501 = vld [vmem:[%s437] sm:$0xf]
      %v502 = vld [vmem:[%s437 + $0x4] sm:$0xf]
      %v503 = vld [vmem:[%s437 + $0x8] sm:$0x1]
      %v504 = vld [vmem:[%s437 + $0xc] sm:$0xf]
      %v505 = vld [vmem:[%s437 + $0x10] sm:$0xf]
      %v506 = vld [vmem:[%s437 + $0x14] sm:$0x1]
      %v507 = vld [vmem:[%s437 + $0x18] sm:$0xf]
      %v508 = vld [vmem:[%s437 + $0x1c] sm:$0xf]
      %v509 = vld [vmem:[%s437 + $0x20] sm:$0x1]
      %v510 = vld [vmem:[%s437 + $0x24] sm:$0xf]
      %v511 = vld [vmem:[%s437 + $0x28] sm:$0xf]
      %v512 = vld [vmem:[%s437 + $0x2c] sm:$0x1]
      %v513 = vld [vmem:[%s437 + $0x30] sm:$0xf]
      %v514 = vld [vmem:[%s437 + $0x34] sm:$0xf]
      %v515 = vld [vmem:[%s437 + $0x38] sm:$0x1]
      %v516 = vld [vmem:[%s437 + $0x3c] sm:$0xf]
      %v517 = vld [vmem:[%s437 + $0x40] sm:$0xf]
      %v518 = vld [vmem:[%s437 + $0x44] sm:$0x1]
      %v519 = vld [vmem:[%s437 + $0x48] sm:$0xf]
      %v520 = vld [vmem:[%s437 + $0x4c] sm:$0xf]
      %v521 = vld [vmem:[%s437 + $0x50] sm:$0x1]
      %v522 = vld [vmem:[%s437 + $0x54] sm:$0xf]
      %v523 = vld [vmem:[%s437 + $0x58] sm:$0xf]
      %v524 = vld [vmem:[%s437 + $0x5c] sm:$0x1]
      %v525 = vld [vmem:[%s459] sm:$0xf]
      %v526 = vld [vmem:[%s459 + $0x4] sm:$0xf]
      %v527 = vld [vmem:[%s459 + $0x8] sm:$0xf]
      %v528 = vld [vmem:[%s459 + $0xc] sm:$0xf]
      %v529 = vld [vmem:[%s459 + $0x10] sm:$0xf]
      %v530 = vld [vmem:[%s459 + $0x14] sm:$0xf]
      %v531 = vld [vmem:[%s459 + $0x18] sm:$0xf]
      %v532 = vld [vmem:[%s459 + $0x1c] sm:$0xf]
      %v533 = vld [vmem:[%s459 + $0x20] sm:$0xf]
      %v534 = vld [vmem:[%s459 + $0x24] sm:$0xf]
      %v535 = vld [vmem:[%s459 + $0x28] sm:$0xf]
      %v536 = vld [vmem:[%s459 + $0x2c] sm:$0xf]
      %v537 = vld [vmem:[%s459 + $0x30] sm:$0xf]
      %v538 = vld [vmem:[%s459 + $0x34] sm:$0xf]
      %v539 = vld [vmem:[%s459 + $0x38] sm:$0xf]
      %v540 = vld [vmem:[%s459 + $0x3c] sm:$0xf]
      %vm541 = vsmask.f32 3328
      %vm542 = vsmask.f32 7440
      %vm543 = vmor %vm541, %vm542
      %v545 = vshrl.u32 %v491, 16
      %v547 = vrot.slane %v545, 4
      %v548 = vshll.u32 %v491, 16
      %v550 = vrot.slane %v548, 5
      %v551 = vor.u32 %v547, %v550
      %v552 = vrot.slane %v551, 4
      %v554 = vshll.u32 %v492, 16
      %v556 = vrot.slane %v554, 5
      %v557 = vsel %vm543, %v552, %v556
      %v558 = vshrl.u32 %v492, 16
      %v560 = vrot.slane %v558, 4
      %v561 = vor.u32 %v560, %v556
      %v562 = vrot.slane %v561, 4
      %v564 = vshll.u32 %v493, 16
      %v566 = vrot.slane %v564, 5
      %v567 = vsel %vm543, %v562, %v566
      %v569 = vshrl.u32 %v501, 16
      %v571 = vrot.slane %v569, 4
      %v572 = vshll.u32 %v501, 16
      %v574 = vrot.slane %v572, 5
      %v575 = vor.u32 %v571, %v574
      %v576 = vrot.slane %v575, 4
      %v578 = vshll.u32 %v502, 16
      %v580 = vrot.slane %v578, 5
      %v581 = vsel %vm543, %v576, %v580
      %v582 = vshrl.u32 %v502, 16
      %v584 = vrot.slane %v582, 4
      %v585 = vor.u32 %v584, %v580
      %v586 = vrot.slane %v585, 4
      %v588 = vshll.u32 %v503, 16
      %v590 = vrot.slane %v588, 5
      %v591 = vsel %vm543, %v586, %v590
      %v593 = vshrl.u32 %v504, 16
      %v595 = vrot.slane %v593, 4
      %v596 = vshll.u32 %v504, 16
      %v598 = vrot.slane %v596, 5
      %v599 = vor.u32 %v595, %v598
      %v600 = vrot.slane %v599, 4
      %v602 = vshll.u32 %v505, 16
      %v604 = vrot.slane %v602, 5
      %v605 = vsel %vm543, %v600, %v604
      %v606 = vshrl.u32 %v505, 16
      %v608 = vrot.slane %v606, 4
      %v609 = vor.u32 %v608, %v604
      %v610 = vrot.slane %v609, 4
      %v612 = vshll.u32 %v506, 16
      %v614 = vrot.slane %v612, 5
      %v615 = vsel %vm543, %v610, %v614
      %v617 = vshrl.u32 %v507, 16
      %v619 = vrot.slane %v617, 4
      %v620 = vshll.u32 %v507, 16
      %v622 = vrot.slane %v620, 5
      %v623 = vor.u32 %v619, %v622
      %v624 = vrot.slane %v623, 4
      %v626 = vshll.u32 %v508, 16
      %v628 = vrot.slane %v626, 5
      %v629 = vsel %vm543, %v624, %v628
      %v630 = vshrl.u32 %v508, 16
      %v632 = vrot.slane %v630, 4
      %v633 = vor.u32 %v632, %v628
      %v634 = vrot.slane %v633, 4
      %v636 = vshll.u32 %v509, 16
      %v638 = vrot.slane %v636, 5
      %v639 = vsel %vm543, %v634, %v638
      %v641 = vshrl.u32 %v510, 16
      %v643 = vrot.slane %v641, 4
      %v644 = vshll.u32 %v510, 16
      %v646 = vrot.slane %v644, 5
      %v647 = vor.u32 %v643, %v646
      %v648 = vrot.slane %v647, 4
      %v650 = vshll.u32 %v511, 16
      %v652 = vrot.slane %v650, 5
      %v653 = vsel %vm543, %v648, %v652
      %v654 = vshrl.u32 %v511, 16
      %v656 = vrot.slane %v654, 4
      %v657 = vor.u32 %v656, %v652
      %v658 = vrot.slane %v657, 4
      %v660 = vshll.u32 %v512, 16
      %v662 = vrot.slane %v660, 5
      %v663 = vsel %vm543, %v658, %v662
      %v665 = vshrl.u32 %v513, 16
      %v667 = vrot.slane %v665, 4
      %v668 = vshll.u32 %v513, 16
      %v670 = vrot.slane %v668, 5
      %v671 = vor.u32 %v667, %v670
      %v672 = vrot.slane %v671, 4
      %v674 = vshll.u32 %v514, 16
      %v676 = vrot.slane %v674, 5
      %v677 = vsel %vm543, %v672, %v676
      %v678 = vshrl.u32 %v514, 16
      %v680 = vrot.slane %v678, 4
      %v681 = vor.u32 %v680, %v676
      %v682 = vrot.slane %v681, 4
      %v684 = vshll.u32 %v515, 16
      %v686 = vrot.slane %v684, 5
      %v687 = vsel %vm543, %v682, %v686
      %v689 = vshrl.u32 %v516, 16
      %v691 = vrot.slane %v689, 4
      %v692 = vshll.u32 %v516, 16
      %v694 = vrot.slane %v692, 5
      %v695 = vor.u32 %v691, %v694
      %v696 = vrot.slane %v695, 4
      %v698 = vshll.u32 %v517, 16
      %v700 = vrot.slane %v698, 5
      %v701 = vsel %vm543, %v696, %v700
      %v702 = vshrl.u32 %v517, 16
      %v704 = vrot.slane %v702, 4
      %v705 = vor.u32 %v704, %v700
      %v706 = vrot.slane %v705, 4
      %v708 = vshll.u32 %v518, 16
      %v710 = vrot.slane %v708, 5
      %v711 = vsel %vm543, %v706, %v710
      %v713 = vshrl.u32 %v519, 16
      %v715 = vrot.slane %v713, 4
      %v716 = vshll.u32 %v519, 16
      %v718 = vrot.slane %v716, 5
      %v719 = vor.u32 %v715, %v718
      %v720 = vrot.slane %v719, 4
      %v722 = vshll.u32 %v520, 16
      %v724 = vrot.slane %v722, 5
      %v725 = vsel %vm543, %v720, %v724
      %v726 = vshrl.u32 %v520, 16
      %v728 = vrot.slane %v726, 4
      %v729 = vor.u32 %v728, %v724
      %v730 = vrot.slane %v729, 4
      %v732 = vshll.u32 %v521, 16
      %v734 = vrot.slane %v732, 5
      %v735 = vsel %vm543, %v730, %v734
      %s736 = scalar_lea.vmem %s459, 64
      %v737 = vld [vmem:[%s736] sm:$0xf]
      %v738 = vld [vmem:[%s736 + $0x4] sm:$0xf]
      %v739 = vld [vmem:[%s736 + $0x8] sm:$0xf]
      %v740 = vld [vmem:[%s736 + $0xc] sm:$0xf]
      %v741 = vld [vmem:[%s736 + $0x10] sm:$0xf]
      %v742 = vld [vmem:[%s736 + $0x14] sm:$0xf]
      %v743 = vld [vmem:[%s736 + $0x18] sm:$0xf]
      %v744 = vld [vmem:[%s736 + $0x1c] sm:$0xf]
      %v745 = vld [vmem:[%s736 + $0x20] sm:$0xf]
      %v746 = vld [vmem:[%s736 + $0x24] sm:$0xf]
      %v747 = vld [vmem:[%s736 + $0x28] sm:$0xf]
      %v748 = vld [vmem:[%s736 + $0x2c] sm:$0xf]
      %v749 = vld [vmem:[%s736 + $0x30] sm:$0xf]
      %v750 = vld [vmem:[%s736 + $0x34] sm:$0xf]
      %v751 = vld [vmem:[%s736 + $0x38] sm:$0xf]
      %v752 = vld [vmem:[%s736 + $0x3c] sm:$0xf]
      %v753 = vunpack.c.l.b16 %v557
      %v754 = vunpack.c.l.b16 %v567
      %v755 = vunpack.c.l.b16 %v581
      %v756 = vunpack.c.l.b16 %v591
      %v757 = vunpack.c.l.b16 %v605
      %v758 = vunpack.c.l.b16 %v615
      %v759 = vunpack.c.l.b16 %v629
      %v760 = vunpack.c.l.b16 %v639
      %v761 = vunpack.c.l.b16 %v653
      %v762 = vunpack.c.l.b16 %v663
      %v763 = vunpack.c.l.b16 %v677
      %v764 = vunpack.c.l.b16 %v687
      %v765 = vunpack.c.l.b16 %v701
      %v766 = vunpack.c.l.b16 %v711
      %v767 = vunpack.c.l.b16 %v725
      %v768 = vunpack.c.l.b16 %v735
      %v769 = vpack.c.b16 %v754, %v753
      %v770 = vpack.c.b16 %v756, %v755
      %v771 = vpack.c.b16 %v758, %v757
      %v772 = vpack.c.b16 %v760, %v759
      %v773 = vpack.c.b16 %v762, %v761
      %v774 = vpack.c.b16 %v764, %v763
      %v775 = vpack.c.b16 %v766, %v765
      %v776 = vpack.c.b16 %v768, %v767
      %v801 = vunpack.c.l.b16 %v737
      %v802 = vunpack.c.l.b16 %v738
      %v803 = vunpack.c.l.b16 %v739
      %v804 = vunpack.c.l.b16 %v740
      %v805 = vunpack.c.l.b16 %v741
      %v806 = vunpack.c.l.b16 %v742
      %v807 = vunpack.c.l.b16 %v743
      %v808 = vunpack.c.l.b16 %v744
      %v809 = vunpack.c.l.b16 %v745
      %v810 = vunpack.c.l.b16 %v746
      %v811 = vunpack.c.l.b16 %v747
      %v812 = vunpack.c.l.b16 %v748
      %v813 = vunpack.c.l.b16 %v749
      %v814 = vunpack.c.l.b16 %v750
      %v815 = vunpack.c.l.b16 %v751
      %v816 = vunpack.c.l.b16 %v752
      %v817 = vpack.c.b16 %v802, %v801
      %v818 = vpack.c.b16 %v804, %v803
      %v819 = vpack.c.b16 %v806, %v805
      %v820 = vpack.c.b16 %v808, %v807
      %v821 = vpack.c.b16 %v810, %v809
      %v822 = vpack.c.b16 %v812, %v811
      %v823 = vpack.c.b16 %v814, %v813
      %v824 = vpack.c.b16 %v816, %v815
      %833 = vmatpush.bf16.msra.mxu0 %v824
      %834 = vmatpush.bf16.msra.mxu0 %v823
      %835 = vmatpush.bf16.msra.mxu0 %v822
      %836 = vmatpush.bf16.msra.mxu0 %v821
      %837 = vmatpush.bf16.msra.mxu0 %v820
      %838 = vmatpush.bf16.msra.mxu0 %v819
      %839 = vmatpush.bf16.msra.mxu0 %v818
      %840 = vmatpush.bf16.msra.mxu0 %v817
      %841 = vmatmul.bf16.gmra.mxu0 %v769
      %v842 = vpop.f32.mrf.mxu0
      %v843 = vadd.f32 0.0, %v842
      %v844 = vpop.f32.mrf.mxu0
      %v845 = vadd.f32 0.0, %v844
      %846 = vmatmul.bf16.gmra.mxu0 %v770
      %v847 = vpop.f32.mrf.mxu0
      %v848 = vadd.f32 0.0, %v847
      %v849 = vpop.f32.mrf.mxu0
      %v850 = vadd.f32 0.0, %v849
      %851 = vmatmul.bf16.gmra.mxu0 %v771
      %v852 = vpop.f32.mrf.mxu0
      %v853 = vadd.f32 0.0, %v852
      %v854 = vpop.f32.mrf.mxu0
      %v855 = vadd.f32 0.0, %v854
      %856 = vmatmul.bf16.gmra.mxu0 %v772
      %v857 = vpop.f32.mrf.mxu0
      %v858 = vadd.f32 0.0, %v857
      %v859 = vpop.f32.mrf.mxu0
      %v860 = vadd.f32 0.0, %v859
      %861 = vmatmul.bf16.gmra.mxu0 %v773
      %v862 = vpop.f32.mrf.mxu0
      %v863 = vadd.f32 0.0, %v862
      %v864 = vpop.f32.mrf.mxu0
      %v865 = vadd.f32 0.0, %v864
      %866 = vmatmul.bf16.gmra.mxu0 %v774
      %v867 = vpop.f32.mrf.mxu0
      %v868 = vadd.f32 0.0, %v867
      %v869 = vpop.f32.mrf.mxu0
      %v870 = vadd.f32 0.0, %v869
      %871 = vmatmul.bf16.gmra.mxu0 %v775
      %v872 = vpop.f32.mrf.mxu0
      %v873 = vadd.f32 0.0, %v872
      %v874 = vpop.f32.mrf.mxu0
      %v875 = vadd.f32 0.0, %v874
      %876 = vmatmul.bf16.gmra.mxu0 %v776
      %v877 = vpop.f32.mrf.mxu0
      %v878 = vadd.f32 0.0, %v877
      %v879 = vpop.f32.mrf.mxu0
      %v880 = vadd.f32 0.0, %v879
      %881 = vdwg.mxu0
      %v898 = vunpack.c.l.b16 %v491
      %v899 = vunpack.c.l.b16 %v492
      %v900 = vunpack.c.l.b16 %v501
      %v901 = vunpack.c.l.b16 %v502
      %v902 = vunpack.c.l.b16 %v504
      %v903 = vunpack.c.l.b16 %v505
      %v904 = vunpack.c.l.b16 %v507
      %v905 = vunpack.c.l.b16 %v508
      %v906 = vunpack.c.l.b16 %v510
      %v907 = vunpack.c.l.b16 %v511
      %v908 = vunpack.c.l.b16 %v513
      %v909 = vunpack.c.l.b16 %v514
      %v910 = vunpack.c.l.b16 %v516
      %v911 = vunpack.c.l.b16 %v517
      %v912 = vunpack.c.l.b16 %v519
      %v913 = vunpack.c.l.b16 %v520
      %v914 = vpack.c.b16 %v899, %v898
      %v915 = vpack.c.b16 %v901, %v900
      %v916 = vpack.c.b16 %v903, %v902
      %v917 = vpack.c.b16 %v905, %v904
      %v918 = vpack.c.b16 %v907, %v906
      %v919 = vpack.c.b16 %v909, %v908
      %v920 = vpack.c.b16 %v911, %v910
      %v921 = vpack.c.b16 %v913, %v912
      %v946 = vunpack.c.l.b16 %v525
      %v947 = vunpack.c.l.b16 %v526
      %v948 = vunpack.c.l.b16 %v527
      %v949 = vunpack.c.l.b16 %v528
      %v950 = vunpack.c.l.b16 %v529
      %v951 = vunpack.c.l.b16 %v530
      %v952 = vunpack.c.l.b16 %v531
      %v953 = vunpack.c.l.b16 %v532
      %v954 = vunpack.c.l.b16 %v533
      %v955 = vunpack.c.l.b16 %v534
      %v956 = vunpack.c.l.b16 %v535
      %v957 = vunpack.c.l.b16 %v536
      %v958 = vunpack.c.l.b16 %v537
      %v959 = vunpack.c.l.b16 %v538
      %v960 = vunpack.c.l.b16 %v539
      %v961 = vunpack.c.l.b16 %v540
      %v962 = vpack.c.b16 %v947, %v946
      %v963 = vpack.c.b16 %v949, %v948
      %v964 = vpack.c.b16 %v951, %v950
      %v965 = vpack.c.b16 %v953, %v952
      %v966 = vpack.c.b16 %v955, %v954
      %v967 = vpack.c.b16 %v957, %v956
      %v968 = vpack.c.b16 %v959, %v958
      %v969 = vpack.c.b16 %v961, %v960
      %978 = vmatpush.bf16.msra.mxu0 %v969
      %979 = vmatpush.bf16.msra.mxu0 %v968
      %980 = vmatpush.bf16.msra.mxu0 %v967
      %981 = vmatpush.bf16.msra.mxu0 %v966
      %982 = vmatpush.bf16.msra.mxu0 %v965
      %983 = vmatpush.bf16.msra.mxu0 %v964
      %984 = vmatpush.bf16.msra.mxu0 %v963
      %985 = vmatpush.bf16.msra.mxu0 %v962
      %986 = vmatmul.bf16.gmra.mxu0 %v914
      %v987 = vpop.f32.mrf.mxu0
      %v988 = vadd.f32 %v843, %v987
      %v989 = vpop.f32.mrf.mxu0
      %v990 = vadd.f32 %v845, %v989
      %991 = vmatmul.bf16.gmra.mxu0 %v915
      %v992 = vpop.f32.mrf.mxu0
      %v993 = vadd.f32 %v848, %v992
      %v994 = vpop.f32.mrf.mxu0
      %v995 = vadd.f32 %v850, %v994
      %996 = vmatmul.bf16.gmra.mxu0 %v916
      %v997 = vpop.f32.mrf.mxu0
      %v998 = vadd.f32 %v853, %v997
      %v999 = vpop.f32.mrf.mxu0
      %v1000 = vadd.f32 %v855, %v999
      %1001 = vmatmul.bf16.gmra.mxu0 %v917
      %v1002 = vpop.f32.mrf.mxu0
      %v1003 = vadd.f32 %v858, %v1002
      %v1004 = vpop.f32.mrf.mxu0
      %v1005 = vadd.f32 %v860, %v1004
      %1006 = vmatmul.bf16.gmra.mxu0 %v918
      %v1007 = vpop.f32.mrf.mxu0
      %v1008 = vadd.f32 %v863, %v1007
      %v1009 = vpop.f32.mrf.mxu0
      %v1010 = vadd.f32 %v865, %v1009
      %1011 = vmatmul.bf16.gmra.mxu0 %v919
      %v1012 = vpop.f32.mrf.mxu0
      %v1013 = vadd.f32 %v868, %v1012
      %v1014 = vpop.f32.mrf.mxu0
      %v1015 = vadd.f32 %v870, %v1014
      %1016 = vmatmul.bf16.gmra.mxu0 %v920
      %v1017 = vpop.f32.mrf.mxu0
      %v1018 = vadd.f32 %v873, %v1017
      %v1019 = vpop.f32.mrf.mxu0
      %v1020 = vadd.f32 %v875, %v1019
      %1021 = vmatmul.bf16.gmra.mxu0 %v921
      %v1022 = vpop.f32.mrf.mxu0
      %v1023 = vadd.f32 %v878, %v1022
      %v1024 = vpop.f32.mrf.mxu0
      %v1025 = vadd.f32 %v880, %v1024
      %1026 = vdwg.mxu0
      %vm1035 = vcmask 1042432
      %vm1036 = vcmask 1046532
      %vm1037 = vmor %vm1035, %vm1036
      %v1038 = vrot.slane %v491, 5
      %v1039 = vrot.slane %v1038, 4
      %v1040 = vrot.slane %v492, 5
      %v1041 = vsel %vm1037, %v1039, %v1040
      %v1042 = vrot.slane %v1040, 4
      %v1043 = vrot.slane %v493, 5
      %v1044 = vsel %vm1037, %v1042, %v1043
      %v1045 = vrot.slane %v501, 5
      %v1046 = vrot.slane %v1045, 4
      %v1047 = vrot.slane %v502, 5
      %v1048 = vsel %vm1037, %v1046, %v1047
      %v1049 = vrot.slane %v1047, 4
      %v1050 = vrot.slane %v503, 5
      %v1051 = vsel %vm1037, %v1049, %v1050
      %v1052 = vrot.slane %v504, 5
      %v1053 = vrot.slane %v1052, 4
      %v1054 = vrot.slane %v505, 5
      %v1055 = vsel %vm1037, %v1053, %v1054
      %v1056 = vrot.slane %v1054, 4
      %v1057 = vrot.slane %v506, 5
      %v1058 = vsel %vm1037, %v1056, %v1057
      %v1059 = vrot.slane %v507, 5
      %v1060 = vrot.slane %v1059, 4
      %v1061 = vrot.slane %v508, 5
      %v1062 = vsel %vm1037, %v1060, %v1061
      %v1063 = vrot.slane %v1061, 4
      %v1064 = vrot.slane %v509, 5
      %v1065 = vsel %vm1037, %v1063, %v1064
      %v1066 = vrot.slane %v510, 5
      %v1067 = vrot.slane %v1066, 4
      %v1068 = vrot.slane %v511, 5
      %v1069 = vsel %vm1037, %v1067, %v1068
      %v1070 = vrot.slane %v1068, 4
      %v1071 = vrot.slane %v512, 5
      %v1072 = vsel %vm1037, %v1070, %v1071
      %v1073 = vrot.slane %v513, 5
      %v1074 = vrot.slane %v1073, 4
      %v1075 = vrot.slane %v514, 5
      %v1076 = vsel %vm1037, %v1074, %v1075
      %v1077 = vrot.slane %v1075, 4
      %v1078 = vrot.slane %v515, 5
      %v1079 = vsel %vm1037, %v1077, %v1078
      %v1080 = vrot.slane %v516, 5
      %v1081 = vrot.slane %v1080, 4
      %v1082 = vrot.slane %v517, 5
      %v1083 = vsel %vm1037, %v1081, %v1082
      %v1084 = vrot.slane %v1082, 4
      %v1085 = vrot.slane %v518, 5
      %v1086 = vsel %vm1037, %v1084, %v1085
      %v1087 = vrot.slane %v519, 5
      %v1088 = vrot.slane %v1087, 4
      %v1089 = vrot.slane %v520, 5
      %v1090 = vsel %vm1037, %v1088, %v1089
      %v1091 = vrot.slane %v1089, 4
      %v1092 = vrot.slane %v521, 5
      %v1093 = vsel %vm1037, %v1091, %v1092
      %s1094 = scalar_lea.vmem %s459, 128
      %v1095 = vld [vmem:[%s1094] sm:$0xf]
      %v1096 = vld [vmem:[%s1094 + $0x4] sm:$0xf]
      %v1097 = vld [vmem:[%s1094 + $0x8] sm:$0xf]
      %v1098 = vld [vmem:[%s1094 + $0xc] sm:$0xf]
      %v1099 = vld [vmem:[%s1094 + $0x10] sm:$0xf]
      %v1100 = vld [vmem:[%s1094 + $0x14] sm:$0xf]
      %v1101 = vld [vmem:[%s1094 + $0x18] sm:$0xf]
      %v1102 = vld [vmem:[%s1094 + $0x1c] sm:$0xf]
      %v1103 = vld [vmem:[%s1094 + $0x20] sm:$0xf]
      %v1104 = vld [vmem:[%s1094 + $0x24] sm:$0xf]
      %v1105 = vld [vmem:[%s1094 + $0x28] sm:$0xf]
      %v1106 = vld [vmem:[%s1094 + $0x2c] sm:$0xf]
      %v1107 = vld [vmem:[%s1094 + $0x30] sm:$0xf]
      %v1108 = vld [vmem:[%s1094 + $0x34] sm:$0xf]
      %v1109 = vld [vmem:[%s1094 + $0x38] sm:$0xf]
      %v1110 = vld [vmem:[%s1094 + $0x3c] sm:$0xf]
      %v1111 = vunpack.c.l.b16 %v1041
      %v1112 = vunpack.c.l.b16 %v1044
      %v1113 = vunpack.c.l.b16 %v1048
      %v1114 = vunpack.c.l.b16 %v1051
      %v1115 = vunpack.c.l.b16 %v1055
      %v1116 = vunpack.c.l.b16 %v1058
      %v1117 = vunpack.c.l.b16 %v1062
      %v1118 = vunpack.c.l.b16 %v1065
      %v1119 = vunpack.c.l.b16 %v1069
      %v1120 = vunpack.c.l.b16 %v1072
      %v1121 = vunpack.c.l.b16 %v1076
      %v1122 = vunpack.c.l.b16 %v1079
      %v1123 = vunpack.c.l.b16 %v1083
      %v1124 = vunpack.c.l.b16 %v1086
      %v1125 = vunpack.c.l.b16 %v1090
      %v1126 = vunpack.c.l.b16 %v1093
      %v1127 = vpack.c.b16 %v1112, %v1111
      %v1128 = vpack.c.b16 %v1114, %v1113
      %v1129 = vpack.c.b16 %v1116, %v1115
      %v1130 = vpack.c.b16 %v1118, %v1117
      %v1131 = vpack.c.b16 %v1120, %v1119
      %v1132 = vpack.c.b16 %v1122, %v1121
      %v1133 = vpack.c.b16 %v1124, %v1123
      %v1134 = vpack.c.b16 %v1126, %v1125
      %v1159 = vunpack.c.l.b16 %v1095
      %v1160 = vunpack.c.l.b16 %v1096
      %v1161 = vunpack.c.l.b16 %v1097
      %v1162 = vunpack.c.l.b16 %v1098
      %v1163 = vunpack.c.l.b16 %v1099
      %v1164 = vunpack.c.l.b16 %v1100
      %v1165 = vunpack.c.l.b16 %v1101
      %v1166 = vunpack.c.l.b16 %v1102
      %v1167 = vunpack.c.l.b16 %v1103
      %v1168 = vunpack.c.l.b16 %v1104
      %v1169 = vunpack.c.l.b16 %v1105
      %v1170 = vunpack.c.l.b16 %v1106
      %v1171 = vunpack.c.l.b16 %v1107
      %v1172 = vunpack.c.l.b16 %v1108
      %v1173 = vunpack.c.l.b16 %v1109
      %v1174 = vunpack.c.l.b16 %v1110
      %v1175 = vpack.c.b16 %v1160, %v1159
      %v1176 = vpack.c.b16 %v1162, %v1161
      %v1177 = vpack.c.b16 %v1164, %v1163
      %v1178 = vpack.c.b16 %v1166, %v1165
      %v1179 = vpack.c.b16 %v1168, %v1167
      %v1180 = vpack.c.b16 %v1170, %v1169
      %v1181 = vpack.c.b16 %v1172, %v1171
      %v1182 = vpack.c.b16 %v1174, %v1173
      %1191 = vmatpush.bf16.msra.mxu0 %v1182
      %1192 = vmatpush.bf16.msra.mxu0 %v1181
      %1193 = vmatpush.bf16.msra.mxu0 %v1180
      %1194 = vmatpush.bf16.msra.mxu0 %v1179
      %1195 = vmatpush.bf16.msra.mxu0 %v1178
      %1196 = vmatpush.bf16.msra.mxu0 %v1177
      %1197 = vmatpush.bf16.msra.mxu0 %v1176
      %1198 = vmatpush.bf16.msra.mxu0 %v1175
      %1199 = vmatmul.bf16.gmra.mxu0 %v1127
      %v1200 = vpop.f32.mrf.mxu0
      %v1201 = vadd.f32 0.0, %v1200
      %v1202 = vpop.f32.mrf.mxu0
      %v1203 = vadd.f32 0.0, %v1202
      %1204 = vmatmul.bf16.gmra.mxu0 %v1128
      %v1205 = vpop.f32.mrf.mxu0
      %v1206 = vadd.f32 0.0, %v1205
      %v1207 = vpop.f32.mrf.mxu0
      %v1208 = vadd.f32 0.0, %v1207
      %1209 = vmatmul.bf16.gmra.mxu0 %v1129
      %v1210 = vpop.f32.mrf.mxu0
      %v1211 = vadd.f32 0.0, %v1210
      %v1212 = vpop.f32.mrf.mxu0
      %v1213 = vadd.f32 0.0, %v1212
      %1214 = vmatmul.bf16.gmra.mxu0 %v1130
      %v1215 = vpop.f32.mrf.mxu0
      %v1216 = vadd.f32 0.0, %v1215
      %v1217 = vpop.f32.mrf.mxu0
      %v1218 = vadd.f32 0.0, %v1217
      %1219 = vmatmul.bf16.gmra.mxu0 %v1131
      %v1220 = vpop.f32.mrf.mxu0
      %v1221 = vadd.f32 0.0, %v1220
      %v1222 = vpop.f32.mrf.mxu0
      %v1223 = vadd.f32 0.0, %v1222
      %1224 = vmatmul.bf16.gmra.mxu0 %v1132
      %v1225 = vpop.f32.mrf.mxu0
      %v1226 = vadd.f32 0.0, %v1225
      %v1227 = vpop.f32.mrf.mxu0
      %v1228 = vadd.f32 0.0, %v1227
      %1229 = vmatmul.bf16.gmra.mxu0 %v1133
      %v1230 = vpop.f32.mrf.mxu0
      %v1231 = vadd.f32 0.0, %v1230
      %v1232 = vpop.f32.mrf.mxu0
      %v1233 = vadd.f32 0.0, %v1232
      %1234 = vmatmul.bf16.gmra.mxu0 %v1134
      %v1235 = vpop.f32.mrf.mxu0
      %v1236 = vadd.f32 0.0, %v1235
      %v1237 = vpop.f32.mrf.mxu0
      %v1238 = vadd.f32 0.0, %v1237
      %1239 = vdwg.mxu0
      %v1240 = vadd.f32 %v988, %v1201
      %v1241 = vadd.f32 %v990, %v1203
      %v1242 = vadd.f32 %v993, %v1206
      %v1243 = vadd.f32 %v995, %v1208
      %v1244 = vadd.f32 %v998, %v1211
      %v1245 = vadd.f32 %v1000, %v1213
      %v1246 = vadd.f32 %v1003, %v1216
      %v1247 = vadd.f32 %v1005, %v1218
      %v1248 = vadd.f32 %v1008, %v1221
      %v1249 = vadd.f32 %v1010, %v1223
      %v1250 = vadd.f32 %v1013, %v1226
      %v1251 = vadd.f32 %v1015, %v1228
      %v1252 = vadd.f32 %v1018, %v1231
      %v1253 = vadd.f32 %v1020, %v1233
      %v1254 = vadd.f32 %v1023, %v1236
      %v1255 = vadd.f32 %v1025, %v1238
      %s1256 = scalar_lea.vmem %s459, 192
      %v1257 = vld [vmem:[%s1256] sm:$0xf]
      %v1258 = vld [vmem:[%s1256 + $0x4] sm:$0xf]
      %v1259 = vld [vmem:[%s1256 + $0x8] sm:$0xf]
      %v1260 = vld [vmem:[%s1256 + $0xc] sm:$0xf]
      %v1261 = vld [vmem:[%s1256 + $0x10] sm:$0xf]
      %v1262 = vld [vmem:[%s1256 + $0x14] sm:$0xf]
      %v1263 = vld [vmem:[%s1256 + $0x18] sm:$0xf]
      %v1264 = vld [vmem:[%s1256 + $0x1c] sm:$0xf]
      %v1265 = vld [vmem:[%s1256 + $0x20] sm:$0xf]
      %v1266 = vld [vmem:[%s1256 + $0x24] sm:$0xf]
      %v1267 = vld [vmem:[%s1256 + $0x28] sm:$0xf]
      %v1268 = vld [vmem:[%s1256 + $0x2c] sm:$0xf]
      %v1269 = vld [vmem:[%s1256 + $0x30] sm:$0xf]
      %v1270 = vld [vmem:[%s1256 + $0x34] sm:$0xf]
      %v1271 = vld [vmem:[%s1256 + $0x38] sm:$0xf]
      %v1272 = vld [vmem:[%s1256 + $0x3c] sm:$0xf]
      %v1275 = vunpack.c.l.b16 %v522
      %v1276 = vunpack.c.l.b16 %v523
      %v1277 = vpack.c.b16 %v1276, %v1275
      %v1295 = vunpack.c.l.b16 %v1257
      %v1296 = vunpack.c.l.b16 %v1258
      %v1297 = vunpack.c.l.b16 %v1259
      %v1298 = vunpack.c.l.b16 %v1260
      %v1299 = vunpack.c.l.b16 %v1261
      %v1300 = vunpack.c.l.b16 %v1262
      %v1301 = vunpack.c.l.b16 %v1263
      %v1302 = vunpack.c.l.b16 %v1264
      %v1303 = vunpack.c.l.b16 %v1265
      %v1304 = vunpack.c.l.b16 %v1266
      %v1305 = vunpack.c.l.b16 %v1267
      %v1306 = vunpack.c.l.b16 %v1268
      %v1307 = vunpack.c.l.b16 %v1269
      %v1308 = vunpack.c.l.b16 %v1270
      %v1309 = vunpack.c.l.b16 %v1271
      %v1310 = vunpack.c.l.b16 %v1272
      %v1311 = vpack.c.b16 %v1296, %v1295
      %v1312 = vpack.c.b16 %v1298, %v1297
      %v1313 = vpack.c.b16 %v1300, %v1299
      %v1314 = vpack.c.b16 %v1302, %v1301
      %v1315 = vpack.c.b16 %v1304, %v1303
      %v1316 = vpack.c.b16 %v1306, %v1305
      %v1317 = vpack.c.b16 %v1308, %v1307
      %v1318 = vpack.c.b16 %v1310, %v1309
      %1327 = vmatpush.bf16.msra.mxu0 %v1318
      %1328 = vmatpush.bf16.msra.mxu0 %v1317
      %1329 = vmatpush.bf16.msra.mxu0 %v1316
      %1330 = vmatpush.bf16.msra.mxu0 %v1315
      %1331 = vmatpush.bf16.msra.mxu0 %v1314
      %1332 = vmatpush.bf16.msra.mxu0 %v1313
      %1333 = vmatpush.bf16.msra.mxu0 %v1312
      %1334 = vmatpush.bf16.msra.mxu0 %v1311
      %1335 = vmatmul.bf16.gmra.mxu0 %v915
      %v1336 = vpop.f32.mrf.mxu0
      %v1337 = vadd.f32 0.0, %v1336
      %v1338 = vpop.f32.mrf.mxu0
      %v1339 = vadd.f32 0.0, %v1338
      %1340 = vmatmul.bf16.gmra.mxu0 %v916
      %v1341 = vpop.f32.mrf.mxu0
      %v1342 = vadd.f32 0.0, %v1341
      %v1343 = vpop.f32.mrf.mxu0
      %v1344 = vadd.f32 0.0, %v1343
      %1345 = vmatmul.bf16.gmra.mxu0 %v917
      %v1346 = vpop.f32.mrf.mxu0
      %v1347 = vadd.f32 0.0, %v1346
      %v1348 = vpop.f32.mrf.mxu0
      %v1349 = vadd.f32 0.0, %v1348
      %1350 = vmatmul.bf16.gmra.mxu0 %v918
      %v1351 = vpop.f32.mrf.mxu0
      %v1352 = vadd.f32 0.0, %v1351
      %v1353 = vpop.f32.mrf.mxu0
      %v1354 = vadd.f32 0.0, %v1353
      %1355 = vmatmul.bf16.gmra.mxu0 %v919
      %v1356 = vpop.f32.mrf.mxu0
      %v1357 = vadd.f32 0.0, %v1356
      %v1358 = vpop.f32.mrf.mxu0
      %v1359 = vadd.f32 0.0, %v1358
      %1360 = vmatmul.bf16.gmra.mxu0 %v920
      %v1361 = vpop.f32.mrf.mxu0
      %v1362 = vadd.f32 0.0, %v1361
      %v1363 = vpop.f32.mrf.mxu0
      %v1364 = vadd.f32 0.0, %v1363
      %1365 = vmatmul.bf16.gmra.mxu0 %v921
      %v1366 = vpop.f32.mrf.mxu0
      %v1367 = vadd.f32 0.0, %v1366
      %v1368 = vpop.f32.mrf.mxu0
      %v1369 = vadd.f32 0.0, %v1368
      %1370 = vmatmul.bf16.gmra.mxu0 %v1277
      %v1371 = vpop.f32.mrf.mxu0
      %v1372 = vadd.f32 0.0, %v1371
      %v1373 = vpop.f32.mrf.mxu0
      %v1374 = vadd.f32 0.0, %v1373
      %1375 = vdwg.mxu0
      %v1376 = vadd.f32 %v1240, %v1337
      %v1377 = vadd.f32 %v1241, %v1339
      %v1378 = vadd.f32 %v1242, %v1342
      %v1379 = vadd.f32 %v1243, %v1344
      %v1380 = vadd.f32 %v1244, %v1347
      %v1381 = vadd.f32 %v1245, %v1349
      %v1382 = vadd.f32 %v1246, %v1352
      %v1383 = vadd.f32 %v1247, %v1354
      %v1384 = vadd.f32 %v1248, %v1357
      %v1385 = vadd.f32 %v1249, %v1359
      %v1386 = vadd.f32 %v1250, %v1362
      %v1387 = vadd.f32 %v1251, %v1364
      %v1388 = vadd.f32 %v1252, %v1367
      %v1389 = vadd.f32 %v1253, %v1369
      %v1390 = vadd.f32 %v1254, %v1372
      %v1391 = vadd.f32 %v1255, %v1374
      %v1393 = vshrl.u32 %v522, 16
      %v1395 = vrot.slane %v1393, 4
      %v1396 = vshll.u32 %v522, 16
      %v1398 = vrot.slane %v1396, 5
      %v1399 = vor.u32 %v1395, %v1398
      %v1400 = vrot.slane %v1399, 4
      %v1402 = vshll.u32 %v523, 16
      %v1404 = vrot.slane %v1402, 5
      %v1405 = vsel %vm543, %v1400, %v1404
      %v1406 = vshrl.u32 %v523, 16
      %v1408 = vrot.slane %v1406, 4
      %v1409 = vor.u32 %v1408, %v1404
      %v1410 = vrot.slane %v1409, 4
      %v1412 = vshll.u32 %v524, 16
      %v1414 = vrot.slane %v1412, 5
      %v1415 = vsel %vm543, %v1410, %v1414
      %s1416 = scalar_lea.vmem %s459, 256
      %v1417 = vld [vmem:[%s1416] sm:$0xf]
      %v1418 = vld [vmem:[%s1416 + $0x4] sm:$0xf]
      %v1419 = vld [vmem:[%s1416 + $0x8] sm:$0xf]
      %v1420 = vld [vmem:[%s1416 + $0xc] sm:$0xf]
      %v1421 = vld [vmem:[%s1416 + $0x10] sm:$0xf]
      %v1422 = vld [vmem:[%s1416 + $0x14] sm:$0xf]
      %v1423 = vld [vmem:[%s1416 + $0x18] sm:$0xf]
      %v1424 = vld [vmem:[%s1416 + $0x1c] sm:$0xf]
      %v1425 = vld [vmem:[%s1416 + $0x20] sm:$0xf]
      %v1426 = vld [vmem:[%s1416 + $0x24] sm:$0xf]
      %v1427 = vld [vmem:[%s1416 + $0x28] sm:$0xf]
      %v1428 = vld [vmem:[%s1416 + $0x2c] sm:$0xf]
      %v1429 = vld [vmem:[%s1416 + $0x30] sm:$0xf]
      %v1430 = vld [vmem:[%s1416 + $0x34] sm:$0xf]
      %v1431 = vld [vmem:[%s1416 + $0x38] sm:$0xf]
      %v1432 = vld [vmem:[%s1416 + $0x3c] sm:$0xf]
      %v1433 = vunpack.c.l.b16 %v1405
      %v1434 = vunpack.c.l.b16 %v1415
      %v1435 = vpack.c.b16 %v1434, %v1433
      %v1453 = vunpack.c.l.b16 %v1417
      %v1454 = vunpack.c.l.b16 %v1418
      %v1455 = vunpack.c.l.b16 %v1419
      %v1456 = vunpack.c.l.b16 %v1420
      %v1457 = vunpack.c.l.b16 %v1421
      %v1458 = vunpack.c.l.b16 %v1422
      %v1459 = vunpack.c.l.b16 %v1423
      %v1460 = vunpack.c.l.b16 %v1424
      %v1461 = vunpack.c.l.b16 %v1425
      %v1462 = vunpack.c.l.b16 %v1426
      %v1463 = vunpack.c.l.b16 %v1427
      %v1464 = vunpack.c.l.b16 %v1428
      %v1465 = vunpack.c.l.b16 %v1429
      %v1466 = vunpack.c.l.b16 %v1430
      %v1467 = vunpack.c.l.b16 %v1431
      %v1468 = vunpack.c.l.b16 %v1432
      %v1469 = vpack.c.b16 %v1454, %v1453
      %v1470 = vpack.c.b16 %v1456, %v1455
      %v1471 = vpack.c.b16 %v1458, %v1457
      %v1472 = vpack.c.b16 %v1460, %v1459
      %v1473 = vpack.c.b16 %v1462, %v1461
      %v1474 = vpack.c.b16 %v1464, %v1463
      %v1475 = vpack.c.b16 %v1466, %v1465
      %v1476 = vpack.c.b16 %v1468, %v1467
      %1485 = vmatpush.bf16.msra.mxu0 %v1476
      %1486 = vmatpush.bf16.msra.mxu0 %v1475
      %1487 = vmatpush.bf16.msra.mxu0 %v1474
      %1488 = vmatpush.bf16.msra.mxu0 %v1473
      %1489 = vmatpush.bf16.msra.mxu0 %v1472
      %1490 = vmatpush.bf16.msra.mxu0 %v1471
      %1491 = vmatpush.bf16.msra.mxu0 %v1470
      %1492 = vmatpush.bf16.msra.mxu0 %v1469
      %1493 = vmatmul.bf16.gmra.mxu0 %v770
      %v1494 = vpop.f32.mrf.mxu0
      %v1495 = vadd.f32 0.0, %v1494
      %v1496 = vpop.f32.mrf.mxu0
      %v1497 = vadd.f32 0.0, %v1496
      %1498 = vmatmul.bf16.gmra.mxu0 %v771
      %v1499 = vpop.f32.mrf.mxu0
      %v1500 = vadd.f32 0.0, %v1499
      %v1501 = vpop.f32.mrf.mxu0
      %v1502 = vadd.f32 0.0, %v1501
      %1503 = vmatmul.bf16.gmra.mxu0 %v772
      %v1504 = vpop.f32.mrf.mxu0
      %v1505 = vadd.f32 0.0, %v1504
      %v1506 = vpop.f32.mrf.mxu0
      %v1507 = vadd.f32 0.0, %v1506
      %1508 = vmatmul.bf16.gmra.mxu0 %v773
      %v1509 = vpop.f32.mrf.mxu0
      %v1510 = vadd.f32 0.0, %v1509
      %v1511 = vpop.f32.mrf.mxu0
      %v1512 = vadd.f32 0.0, %v1511
      %1513 = vmatmul.bf16.gmra.mxu0 %v774
      %v1514 = vpop.f32.mrf.mxu0
      %v1515 = vadd.f32 0.0, %v1514
      %v1516 = vpop.f32.mrf.mxu0
      %v1517 = vadd.f32 0.0, %v1516
      %1518 = vmatmul.bf16.gmra.mxu0 %v775
      %v1519 = vpop.f32.mrf.mxu0
      %v1520 = vadd.f32 0.0, %v1519
      %v1521 = vpop.f32.mrf.mxu0
      %v1522 = vadd.f32 0.0, %v1521
      %1523 = vmatmul.bf16.gmra.mxu0 %v776
      %v1524 = vpop.f32.mrf.mxu0
      %v1525 = vadd.f32 0.0, %v1524
      %v1526 = vpop.f32.mrf.mxu0
      %v1527 = vadd.f32 0.0, %v1526
      %1528 = vmatmul.bf16.gmra.mxu0 %v1435
      %v1529 = vpop.f32.mrf.mxu0
      %v1530 = vadd.f32 0.0, %v1529
      %v1531 = vpop.f32.mrf.mxu0
      %v1532 = vadd.f32 0.0, %v1531
      %1533 = vdwg.mxu0
      %v1534 = vadd.f32 %v1376, %v1495
      %v1535 = vadd.f32 %v1377, %v1497
      %v1536 = vadd.f32 %v1378, %v1500
      %v1537 = vadd.f32 %v1379, %v1502
      %v1538 = vadd.f32 %v1380, %v1505
      %v1539 = vadd.f32 %v1381, %v1507
      %v1540 = vadd.f32 %v1382, %v1510
      %v1541 = vadd.f32 %v1383, %v1512
      %v1542 = vadd.f32 %v1384, %v1515
      %v1543 = vadd.f32 %v1385, %v1517
      %v1544 = vadd.f32 %v1386, %v1520
      %v1545 = vadd.f32 %v1387, %v1522
      %v1546 = vadd.f32 %v1388, %v1525
      %v1547 = vadd.f32 %v1389, %v1527
      %v1548 = vadd.f32 %v1390, %v1530
      %v1549 = vadd.f32 %v1391, %v1532
      %v1551 = vrot.slane %v522, 5
      %v1552 = vrot.slane %v1551, 4
      %v1553 = vrot.slane %v523, 5
      %v1554 = vsel %vm1037, %v1552, %v1553
      %v1555 = vrot.slane %v1553, 4
      %v1556 = vrot.slane %v524, 5
      %v1557 = vsel %vm1037, %v1555, %v1556
      %s1558 = scalar_lea.vmem %s459, 320
      %v1559 = vld [vmem:[%s1558] sm:$0xf]
      %v1560 = vld [vmem:[%s1558 + $0x4] sm:$0xf]
      %v1561 = vld [vmem:[%s1558 + $0x8] sm:$0xf]
      %v1562 = vld [vmem:[%s1558 + $0xc] sm:$0xf]
      %v1563 = vld [vmem:[%s1558 + $0x10] sm:$0xf]
      %v1564 = vld [vmem:[%s1558 + $0x14] sm:$0xf]
      %v1565 = vld [vmem:[%s1558 + $0x18] sm:$0xf]
      %v1566 = vld [vmem:[%s1558 + $0x1c] sm:$0xf]
      %v1567 = vld [vmem:[%s1558 + $0x20] sm:$0xf]
      %v1568 = vld [vmem:[%s1558 + $0x24] sm:$0xf]
      %v1569 = vld [vmem:[%s1558 + $0x28] sm:$0xf]
      %v1570 = vld [vmem:[%s1558 + $0x2c] sm:$0xf]
      %v1571 = vld [vmem:[%s1558 + $0x30] sm:$0xf]
      %v1572 = vld [vmem:[%s1558 + $0x34] sm:$0xf]
      %v1573 = vld [vmem:[%s1558 + $0x38] sm:$0xf]
      %v1574 = vld [vmem:[%s1558 + $0x3c] sm:$0xf]
      %v1575 = vunpack.c.l.b16 %v1554
      %v1576 = vunpack.c.l.b16 %v1557
      %v1577 = vpack.c.b16 %v1576, %v1575
      %v1595 = vunpack.c.l.b16 %v1559
      %v1596 = vunpack.c.l.b16 %v1560
      %v1597 = vunpack.c.l.b16 %v1561
      %v1598 = vunpack.c.l.b16 %v1562
      %v1599 = vunpack.c.l.b16 %v1563
      %v1600 = vunpack.c.l.b16 %v1564
      %v1601 = vunpack.c.l.b16 %v1565
      %v1602 = vunpack.c.l.b16 %v1566
      %v1603 = vunpack.c.l.b16 %v1567
      %v1604 = vunpack.c.l.b16 %v1568
      %v1605 = vunpack.c.l.b16 %v1569
      %v1606 = vunpack.c.l.b16 %v1570
      %v1607 = vunpack.c.l.b16 %v1571
      %v1608 = vunpack.c.l.b16 %v1572
      %v1609 = vunpack.c.l.b16 %v1573
      %v1610 = vunpack.c.l.b16 %v1574
      %v1611 = vpack.c.b16 %v1596, %v1595
      %v1612 = vpack.c.b16 %v1598, %v1597
      %v1613 = vpack.c.b16 %v1600, %v1599
      %v1614 = vpack.c.b16 %v1602, %v1601
      %v1615 = vpack.c.b16 %v1604, %v1603
      %v1616 = vpack.c.b16 %v1606, %v1605
      %v1617 = vpack.c.b16 %v1608, %v1607
      %v1618 = vpack.c.b16 %v1610, %v1609
      %1627 = vmatpush.bf16.msra.mxu0 %v1618
      %1628 = vmatpush.bf16.msra.mxu0 %v1617
      %1629 = vmatpush.bf16.msra.mxu0 %v1616
      %1630 = vmatpush.bf16.msra.mxu0 %v1615
      %1631 = vmatpush.bf16.msra.mxu0 %v1614
      %1632 = vmatpush.bf16.msra.mxu0 %v1613
      %1633 = vmatpush.bf16.msra.mxu0 %v1612
      %1634 = vmatpush.bf16.msra.mxu0 %v1611
      %1635 = vmatmul.bf16.gmra.mxu0 %v1128
      %v1636 = vpop.f32.mrf.mxu0
      %v1637 = vadd.f32 0.0, %v1636
      %v1638 = vpop.f32.mrf.mxu0
      %v1639 = vadd.f32 0.0, %v1638
      %1640 = vmatmul.bf16.gmra.mxu0 %v1129
      %v1641 = vpop.f32.mrf.mxu0
      %v1642 = vadd.f32 0.0, %v1641
      %v1643 = vpop.f32.mrf.mxu0
      %v1644 = vadd.f32 0.0, %v1643
      %1645 = vmatmul.bf16.gmra.mxu0 %v1130
      %v1646 = vpop.f32.mrf.mxu0
      %v1647 = vadd.f32 0.0, %v1646
      %v1648 = vpop.f32.mrf.mxu0
      %v1649 = vadd.f32 0.0, %v1648
      %1650 = vmatmul.bf16.gmra.mxu0 %v1131
      %v1651 = vpop.f32.mrf.mxu0
      %v1652 = vadd.f32 0.0, %v1651
      %v1653 = vpop.f32.mrf.mxu0
      %v1654 = vadd.f32 0.0, %v1653
      %1655 = vmatmul.bf16.gmra.mxu0 %v1132
      %v1656 = vpop.f32.mrf.mxu0
      %v1657 = vadd.f32 0.0, %v1656
      %v1658 = vpop.f32.mrf.mxu0
      %v1659 = vadd.f32 0.0, %v1658
      %1660 = vmatmul.bf16.gmra.mxu0 %v1133
      %v1661 = vpop.f32.mrf.mxu0
      %v1662 = vadd.f32 0.0, %v1661
      %v1663 = vpop.f32.mrf.mxu0
      %v1664 = vadd.f32 0.0, %v1663
      %1665 = vmatmul.bf16.gmra.mxu0 %v1134
      %v1666 = vpop.f32.mrf.mxu0
      %v1667 = vadd.f32 0.0, %v1666
      %v1668 = vpop.f32.mrf.mxu0
      %v1669 = vadd.f32 0.0, %v1668
      %1670 = vmatmul.bf16.gmra.mxu0 %v1577
      %v1671 = vpop.f32.mrf.mxu0
      %v1672 = vadd.f32 0.0, %v1671
      %v1673 = vpop.f32.mrf.mxu0
      %v1674 = vadd.f32 0.0, %v1673
      %1675 = vdwg.mxu0
      %v1676 = vadd.f32 %v1534, %v1637
      %v1677 = vadd.f32 %v1535, %v1639
      %v1678 = vadd.f32 %v1536, %v1642
      %v1679 = vadd.f32 %v1537, %v1644
      %v1680 = vadd.f32 %v1538, %v1647
      %v1681 = vadd.f32 %v1539, %v1649
      %v1682 = vadd.f32 %v1540, %v1652
      %v1683 = vadd.f32 %v1541, %v1654
      %v1684 = vadd.f32 %v1542, %v1657
      %v1685 = vadd.f32 %v1543, %v1659
      %v1686 = vadd.f32 %v1544, %v1662
      %v1687 = vadd.f32 %v1545, %v1664
      %v1688 = vadd.f32 %v1546, %v1667
      %v1689 = vadd.f32 %v1547, %v1669
      %v1690 = vadd.f32 %v1548, %v1672
      %v1691 = vadd.f32 %v1549, %v1674
      %s1692 = scalar_lea.vmem %s459, 384
      %v1693 = vld [vmem:[%s1692] sm:$0xf]
      %v1694 = vld [vmem:[%s1692 + $0x4] sm:$0xf]
      %v1695 = vld [vmem:[%s1692 + $0x8] sm:$0xf]
      %v1696 = vld [vmem:[%s1692 + $0xc] sm:$0xf]
      %v1697 = vld [vmem:[%s1692 + $0x10] sm:$0xf]
      %v1698 = vld [vmem:[%s1692 + $0x14] sm:$0xf]
      %v1699 = vld [vmem:[%s1692 + $0x18] sm:$0xf]
      %v1700 = vld [vmem:[%s1692 + $0x1c] sm:$0xf]
      %v1701 = vld [vmem:[%s1692 + $0x20] sm:$0xf]
      %v1702 = vld [vmem:[%s1692 + $0x24] sm:$0xf]
      %v1703 = vld [vmem:[%s1692 + $0x28] sm:$0xf]
      %v1704 = vld [vmem:[%s1692 + $0x2c] sm:$0xf]
      %v1705 = vld [vmem:[%s1692 + $0x30] sm:$0xf]
      %v1706 = vld [vmem:[%s1692 + $0x34] sm:$0xf]
      %v1707 = vld [vmem:[%s1692 + $0x38] sm:$0xf]
      %v1708 = vld [vmem:[%s1692 + $0x3c] sm:$0xf]
      %v1711 = vunpack.c.l.b16 %v498
      %v1712 = vunpack.c.l.b16 %v499
      %v1713 = vpack.c.b16 %v1712, %v1711
      %v1731 = vunpack.c.l.b16 %v1693
      %v1732 = vunpack.c.l.b16 %v1694
      %v1733 = vunpack.c.l.b16 %v1695
      %v1734 = vunpack.c.l.b16 %v1696
      %v1735 = vunpack.c.l.b16 %v1697
      %v1736 = vunpack.c.l.b16 %v1698
      %v1737 = vunpack.c.l.b16 %v1699
      %v1738 = vunpack.c.l.b16 %v1700
      %v1739 = vunpack.c.l.b16 %v1701
      %v1740 = vunpack.c.l.b16 %v1702
      %v1741 = vunpack.c.l.b16 %v1703
      %v1742 = vunpack.c.l.b16 %v1704
      %v1743 = vunpack.c.l.b16 %v1705
      %v1744 = vunpack.c.l.b16 %v1706
      %v1745 = vunpack.c.l.b16 %v1707
      %v1746 = vunpack.c.l.b16 %v1708
      %v1747 = vpack.c.b16 %v1732, %v1731
      %v1748 = vpack.c.b16 %v1734, %v1733
      %v1749 = vpack.c.b16 %v1736, %v1735
      %v1750 = vpack.c.b16 %v1738, %v1737
      %v1751 = vpack.c.b16 %v1740, %v1739
      %v1752 = vpack.c.b16 %v1742, %v1741
      %v1753 = vpack.c.b16 %v1744, %v1743
      %v1754 = vpack.c.b16 %v1746, %v1745
      %1763 = vmatpush.bf16.msra.mxu0 %v1754
      %1764 = vmatpush.bf16.msra.mxu0 %v1753
      %1765 = vmatpush.bf16.msra.mxu0 %v1752
      %1766 = vmatpush.bf16.msra.mxu0 %v1751
      %1767 = vmatpush.bf16.msra.mxu0 %v1750
      %1768 = vmatpush.bf16.msra.mxu0 %v1749
      %1769 = vmatpush.bf16.msra.mxu0 %v1748
      %1770 = vmatpush.bf16.msra.mxu0 %v1747
      %1771 = vmatmul.bf16.gmra.mxu0 %v916
      %v1772 = vpop.f32.mrf.mxu0
      %v1773 = vadd.f32 0.0, %v1772
      %v1774 = vpop.f32.mrf.mxu0
      %v1775 = vadd.f32 0.0, %v1774
      %1776 = vmatmul.bf16.gmra.mxu0 %v917
      %v1777 = vpop.f32.mrf.mxu0
      %v1778 = vadd.f32 0.0, %v1777
      %v1779 = vpop.f32.mrf.mxu0
      %v1780 = vadd.f32 0.0, %v1779
      %1781 = vmatmul.bf16.gmra.mxu0 %v918
      %v1782 = vpop.f32.mrf.mxu0
      %v1783 = vadd.f32 0.0, %v1782
      %v1784 = vpop.f32.mrf.mxu0
      %v1785 = vadd.f32 0.0, %v1784
      %1786 = vmatmul.bf16.gmra.mxu0 %v919
      %v1787 = vpop.f32.mrf.mxu0
      %v1788 = vadd.f32 0.0, %v1787
      %v1789 = vpop.f32.mrf.mxu0
      %v1790 = vadd.f32 0.0, %v1789
      %1791 = vmatmul.bf16.gmra.mxu0 %v920
      %v1792 = vpop.f32.mrf.mxu0
      %v1793 = vadd.f32 0.0, %v1792
      %v1794 = vpop.f32.mrf.mxu0
      %v1795 = vadd.f32 0.0, %v1794
      %1796 = vmatmul.bf16.gmra.mxu0 %v921
      %v1797 = vpop.f32.mrf.mxu0
      %v1798 = vadd.f32 0.0, %v1797
      %v1799 = vpop.f32.mrf.mxu0
      %v1800 = vadd.f32 0.0, %v1799
      %1801 = vmatmul.bf16.gmra.mxu0 %v1277
      %v1802 = vpop.f32.mrf.mxu0
      %v1803 = vadd.f32 0.0, %v1802
      %v1804 = vpop.f32.mrf.mxu0
      %v1805 = vadd.f32 0.0, %v1804
      %1806 = vmatmul.bf16.gmra.mxu0 %v1713
      %v1807 = vpop.f32.mrf.mxu0
      %v1808 = vadd.f32 0.0, %v1807
      %v1809 = vpop.f32.mrf.mxu0
      %v1810 = vadd.f32 0.0, %v1809
      %1811 = vdwg.mxu0
      %v1812 = vadd.f32 %v1676, %v1773
      %v1813 = vadd.f32 %v1677, %v1775
      %v1814 = vadd.f32 %v1678, %v1778
      %v1815 = vadd.f32 %v1679, %v1780
      %v1816 = vadd.f32 %v1680, %v1783
      %v1817 = vadd.f32 %v1681, %v1785
      %v1818 = vadd.f32 %v1682, %v1788
      %v1819 = vadd.f32 %v1683, %v1790
      %v1820 = vadd.f32 %v1684, %v1793
      %v1821 = vadd.f32 %v1685, %v1795
      %v1822 = vadd.f32 %v1686, %v1798
      %v1823 = vadd.f32 %v1687, %v1800
      %v1824 = vadd.f32 %v1688, %v1803
      %v1825 = vadd.f32 %v1689, %v1805
      %v1826 = vadd.f32 %v1690, %v1808
      %v1827 = vadd.f32 %v1691, %v1810
      %v1829 = vshrl.u32 %v498, 16
      %v1831 = vrot.slane %v1829, 4
      %v1832 = vshll.u32 %v498, 16
      %v1834 = vrot.slane %v1832, 5
      %v1835 = vor.u32 %v1831, %v1834
      %v1836 = vrot.slane %v1835, 4
      %v1838 = vshll.u32 %v499, 16
      %v1840 = vrot.slane %v1838, 5
      %v1841 = vsel %vm543, %v1836, %v1840
      %v1842 = vshrl.u32 %v499, 16
      %v1844 = vrot.slane %v1842, 4
      %v1845 = vor.u32 %v1844, %v1840
      %v1846 = vrot.slane %v1845, 4
      %v1848 = vshll.u32 %v500, 16
      %v1850 = vrot.slane %v1848, 5
      %v1851 = vsel %vm543, %v1846, %v1850
      %s1852 = scalar_lea.vmem %s459, 448
      %v1853 = vld [vmem:[%s1852] sm:$0xf]
      %v1854 = vld [vmem:[%s1852 + $0x4] sm:$0xf]
      %v1855 = vld [vmem:[%s1852 + $0x8] sm:$0xf]
      %v1856 = vld [vmem:[%s1852 + $0xc] sm:$0xf]
      %v1857 = vld [vmem:[%s1852 + $0x10] sm:$0xf]
      %v1858 = vld [vmem:[%s1852 + $0x14] sm:$0xf]
      %v1859 = vld [vmem:[%s1852 + $0x18] sm:$0xf]
      %v1860 = vld [vmem:[%s1852 + $0x1c] sm:$0xf]
      %v1861 = vld [vmem:[%s1852 + $0x20] sm:$0xf]
      %v1862 = vld [vmem:[%s1852 + $0x24] sm:$0xf]
      %v1863 = vld [vmem:[%s1852 + $0x28] sm:$0xf]
      %v1864 = vld [vmem:[%s1852 + $0x2c] sm:$0xf]
      %v1865 = vld [vmem:[%s1852 + $0x30] sm:$0xf]
      %v1866 = vld [vmem:[%s1852 + $0x34] sm:$0xf]
      %v1867 = vld [vmem:[%s1852 + $0x38] sm:$0xf]
      %v1868 = vld [vmem:[%s1852 + $0x3c] sm:$0xf]
      %v1869 = vunpack.c.l.b16 %v1841
      %v1870 = vunpack.c.l.b16 %v1851
      %v1871 = vpack.c.b16 %v1870, %v1869
      %v1889 = vunpack.c.l.b16 %v1853
      %v1890 = vunpack.c.l.b16 %v1854
      %v1891 = vunpack.c.l.b16 %v1855
      %v1892 = vunpack.c.l.b16 %v1856
      %v1893 = vunpack.c.l.b16 %v1857
      %v1894 = vunpack.c.l.b16 %v1858
      %v1895 = vunpack.c.l.b16 %v1859
      %v1896 = vunpack.c.l.b16 %v1860
      %v1897 = vunpack.c.l.b16 %v1861
      %v1898 = vunpack.c.l.b16 %v1862
      %v1899 = vunpack.c.l.b16 %v1863
      %v1900 = vunpack.c.l.b16 %v1864
      %v1901 = vunpack.c.l.b16 %v1865
      %v1902 = vunpack.c.l.b16 %v1866
      %v1903 = vunpack.c.l.b16 %v1867
      %v1904 = vunpack.c.l.b16 %v1868
      %v1905 = vpack.c.b16 %v1890, %v1889
      %v1906 = vpack.c.b16 %v1892, %v1891
      %v1907 = vpack.c.b16 %v1894, %v1893
      %v1908 = vpack.c.b16 %v1896, %v1895
      %v1909 = vpack.c.b16 %v1898, %v1897
      %v1910 = vpack.c.b16 %v1900, %v1899
      %v1911 = vpack.c.b16 %v1902, %v1901
      %v1912 = vpack.c.b16 %v1904, %v1903
      %1921 = vmatpush.bf16.msra.mxu0 %v1912
      %1922 = vmatpush.bf16.msra.mxu0 %v1911
      %1923 = vmatpush.bf16.msra.mxu0 %v1910
      %1924 = vmatpush.bf16.msra.mxu0 %v1909
      %1925 = vmatpush.bf16.msra.mxu0 %v1908
      %1926 = vmatpush.bf16.msra.mxu0 %v1907
      %1927 = vmatpush.bf16.msra.mxu0 %v1906
      %1928 = vmatpush.bf16.msra.mxu0 %v1905
      %1929 = vmatmul.bf16.gmra.mxu0 %v771
      %v1930 = vpop.f32.mrf.mxu0
      %v1931 = vadd.f32 0.0, %v1930
      %v1932 = vpop.f32.mrf.mxu0
      %v1933 = vadd.f32 0.0, %v1932
      %1934 = vmatmul.bf16.gmra.mxu0 %v772
      %v1935 = vpop.f32.mrf.mxu0
      %v1936 = vadd.f32 0.0, %v1935
      %v1937 = vpop.f32.mrf.mxu0
      %v1938 = vadd.f32 0.0, %v1937
      %1939 = vmatmul.bf16.gmra.mxu0 %v773
      %v1940 = vpop.f32.mrf.mxu0
      %v1941 = vadd.f32 0.0, %v1940
      %v1942 = vpop.f32.mrf.mxu0
      %v1943 = vadd.f32 0.0, %v1942
      %1944 = vmatmul.bf16.gmra.mxu0 %v774
      %v1945 = vpop.f32.mrf.mxu0
      %v1946 = vadd.f32 0.0, %v1945
      %v1947 = vpop.f32.mrf.mxu0
      %v1948 = vadd.f32 0.0, %v1947
      %1949 = vmatmul.bf16.gmra.mxu0 %v775
      %v1950 = vpop.f32.mrf.mxu0
      %v1951 = vadd.f32 0.0, %v1950
      %v1952 = vpop.f32.mrf.mxu0
      %v1953 = vadd.f32 0.0, %v1952
      %1954 = vmatmul.bf16.gmra.mxu0 %v776
      %v1955 = vpop.f32.mrf.mxu0
      %v1956 = vadd.f32 0.0, %v1955
      %v1957 = vpop.f32.mrf.mxu0
      %v1958 = vadd.f32 0.0, %v1957
      %1959 = vmatmul.bf16.gmra.mxu0 %v1435
      %v1960 = vpop.f32.mrf.mxu0
      %v1961 = vadd.f32 0.0, %v1960
      %v1962 = vpop.f32.mrf.mxu0
      %v1963 = vadd.f32 0.0, %v1962
      %1964 = vmatmul.bf16.gmra.mxu0 %v1871
      %v1965 = vpop.f32.mrf.mxu0
      %v1966 = vadd.f32 0.0, %v1965
      %v1967 = vpop.f32.mrf.mxu0
      %v1968 = vadd.f32 0.0, %v1967
      %1969 = vdwg.mxu0
      %v1970 = vadd.f32 %v1812, %v1931
      %v1971 = vadd.f32 %v1813, %v1933
      %v1972 = vadd.f32 %v1814, %v1936
      %v1973 = vadd.f32 %v1815, %v1938
      %v1974 = vadd.f32 %v1816, %v1941
      %v1975 = vadd.f32 %v1817, %v1943
      %v1976 = vadd.f32 %v1818, %v1946
      %v1977 = vadd.f32 %v1819, %v1948
      %v1978 = vadd.f32 %v1820, %v1951
      %v1979 = vadd.f32 %v1821, %v1953
      %v1980 = vadd.f32 %v1822, %v1956
      %v1981 = vadd.f32 %v1823, %v1958
      %v1982 = vadd.f32 %v1824, %v1961
      %v1983 = vadd.f32 %v1825, %v1963
      %v1984 = vadd.f32 %v1826, %v1966
      %v1985 = vadd.f32 %v1827, %v1968
      %v1987 = vrot.slane %v498, 5
      %v1988 = vrot.slane %v1987, 4
      %v1989 = vrot.slane %v499, 5
      %v1990 = vsel %vm1037, %v1988, %v1989
      %v1991 = vrot.slane %v1989, 4
      %v1992 = vrot.slane %v500, 5
      %v1993 = vsel %vm1037, %v1991, %v1992
      %s1994 = scalar_lea.vmem %s459, 512
      %v1995 = vld [vmem:[%s1994] sm:$0xf]
      %v1996 = vld [vmem:[%s1994 + $0x4] sm:$0xf]
      %v1997 = vld [vmem:[%s1994 + $0x8] sm:$0xf]
      %v1998 = vld [vmem:[%s1994 + $0xc] sm:$0xf]
      %v1999 = vld [vmem:[%s1994 + $0x10] sm:$0xf]
      %v2000 = vld [vmem:[%s1994 + $0x14] sm:$0xf]
      %v2001 = vld [vmem:[%s1994 + $0x18] sm:$0xf]
      %v2002 = vld [vmem:[%s1994 + $0x1c] sm:$0xf]
      %v2003 = vld [vmem:[%s1994 + $0x20] sm:$0xf]
      %v2004 = vld [vmem:[%s1994 + $0x24] sm:$0xf]
      %v2005 = vld [vmem:[%s1994 + $0x28] sm:$0xf]
      %v2006 = vld [vmem:[%s1994 + $0x2c] sm:$0xf]
      %v2007 = vld [vmem:[%s1994 + $0x30] sm:$0xf]
      %v2008 = vld [vmem:[%s1994 + $0x34] sm:$0xf]
      %v2009 = vld [vmem:[%s1994 + $0x38] sm:$0xf]
      %v2010 = vld [vmem:[%s1994 + $0x3c] sm:$0xf]
      %v2011 = vunpack.c.l.b16 %v1990
      %v2012 = vunpack.c.l.b16 %v1993
      %v2013 = vpack.c.b16 %v2012, %v2011
      %v2031 = vunpack.c.l.b16 %v1995
      %v2032 = vunpack.c.l.b16 %v1996
      %v2033 = vunpack.c.l.b16 %v1997
      %v2034 = vunpack.c.l.b16 %v1998
      %v2035 = vunpack.c.l.b16 %v1999
      %v2036 = vunpack.c.l.b16 %v2000
      %v2037 = vunpack.c.l.b16 %v2001
      %v2038 = vunpack.c.l.b16 %v2002
      %v2039 = vunpack.c.l.b16 %v2003
      %v2040 = vunpack.c.l.b16 %v2004
      %v2041 = vunpack.c.l.b16 %v2005
      %v2042 = vunpack.c.l.b16 %v2006
      %v2043 = vunpack.c.l.b16 %v2007
      %v2044 = vunpack.c.l.b16 %v2008
      %v2045 = vunpack.c.l.b16 %v2009
      %v2046 = vunpack.c.l.b16 %v2010
      %v2047 = vpack.c.b16 %v2032, %v2031
      %v2048 = vpack.c.b16 %v2034, %v2033
      %v2049 = vpack.c.b16 %v2036, %v2035
      %v2050 = vpack.c.b16 %v2038, %v2037
      %v2051 = vpack.c.b16 %v2040, %v2039
      %v2052 = vpack.c.b16 %v2042, %v2041
      %v2053 = vpack.c.b16 %v2044, %v2043
      %v2054 = vpack.c.b16 %v2046, %v2045
      %2063 = vmatpush.bf16.msra.mxu0 %v2054
      %2064 = vmatpush.bf16.msra.mxu0 %v2053
      %2065 = vmatpush.bf16.msra.mxu0 %v2052
      %2066 = vmatpush.bf16.msra.mxu0 %v2051
      %2067 = vmatpush.bf16.msra.mxu0 %v2050
      %2068 = vmatpush.bf16.msra.mxu0 %v2049
      %2069 = vmatpush.bf16.msra.mxu0 %v2048
      %2070 = vmatpush.bf16.msra.mxu0 %v2047
      %2071 = vmatmul.bf16.gmra.mxu0 %v1129
      %v2072 = vpop.f32.mrf.mxu0
      %v2073 = vadd.f32 0.0, %v2072
      %v2074 = vpop.f32.mrf.mxu0
      %v2075 = vadd.f32 0.0, %v2074
      %2076 = vmatmul.bf16.gmra.mxu0 %v1130
      %v2077 = vpop.f32.mrf.mxu0
      %v2078 = vadd.f32 0.0, %v2077
      %v2079 = vpop.f32.mrf.mxu0
      %v2080 = vadd.f32 0.0, %v2079
      %2081 = vmatmul.bf16.gmra.mxu0 %v1131
      %v2082 = vpop.f32.mrf.mxu0
      %v2083 = vadd.f32 0.0, %v2082
      %v2084 = vpop.f32.mrf.mxu0
      %v2085 = vadd.f32 0.0, %v2084
      %2086 = vmatmul.bf16.gmra.mxu0 %v1132
      %v2087 = vpop.f32.mrf.mxu0
      %v2088 = vadd.f32 0.0, %v2087
      %v2089 = vpop.f32.mrf.mxu0
      %v2090 = vadd.f32 0.0, %v2089
      %2091 = vmatmul.bf16.gmra.mxu0 %v1133
      %v2092 = vpop.f32.mrf.mxu0
      %v2093 = vadd.f32 0.0, %v2092
      %v2094 = vpop.f32.mrf.mxu0
      %v2095 = vadd.f32 0.0, %v2094
      %2096 = vmatmul.bf16.gmra.mxu0 %v1134
      %v2097 = vpop.f32.mrf.mxu0
      %v2098 = vadd.f32 0.0, %v2097
      %v2099 = vpop.f32.mrf.mxu0
      %v2100 = vadd.f32 0.0, %v2099
      %2101 = vmatmul.bf16.gmra.mxu0 %v1577
      %v2102 = vpop.f32.mrf.mxu0
      %v2103 = vadd.f32 0.0, %v2102
      %v2104 = vpop.f32.mrf.mxu0
      %v2105 = vadd.f32 0.0, %v2104
      %2106 = vmatmul.bf16.gmra.mxu0 %v2013
      %v2107 = vpop.f32.mrf.mxu0
      %v2108 = vadd.f32 0.0, %v2107
      %v2109 = vpop.f32.mrf.mxu0
      %v2110 = vadd.f32 0.0, %v2109
      %2111 = vdwg.mxu0
      %v2112 = vadd.f32 %v1970, %v2073
      %v2113 = vadd.f32 %v1971, %v2075
      %v2114 = vadd.f32 %v1972, %v2078
      %v2115 = vadd.f32 %v1973, %v2080
      %v2116 = vadd.f32 %v1974, %v2083
      %v2117 = vadd.f32 %v1975, %v2085
      %v2118 = vadd.f32 %v1976, %v2088
      %v2119 = vadd.f32 %v1977, %v2090
      %v2120 = vadd.f32 %v1978, %v2093
      %v2121 = vadd.f32 %v1979, %v2095
      %v2122 = vadd.f32 %v1980, %v2098
      %v2123 = vadd.f32 %v1981, %v2100
      %v2124 = vadd.f32 %v1982, %v2103
      %v2125 = vadd.f32 %v1983, %v2105
      %v2126 = vadd.f32 %v1984, %v2108
      %v2127 = vadd.f32 %v1985, %v2110
      %v2128 = vld [vmem:[%s462] sm:$0x1]
      %v2130 = vperm.slane %v2128, 0
      %v2132 = vmul.f32 %v2112, %v2130
      %v2133 = vmul.f32 %v2113, %v2130
      %v2134 = vmul.f32 %v2114, %v2130
      %v2135 = vmul.f32 %v2115, %v2130
      %v2136 = vmul.f32 %v2116, %v2130
      %v2137 = vmul.f32 %v2117, %v2130
      %v2138 = vmul.f32 %v2118, %v2130
      %v2139 = vmul.f32 %v2119, %v2130
      %v2140 = vmul.f32 %v2120, %v2130
      %v2141 = vmul.f32 %v2121, %v2130
      %v2142 = vmul.f32 %v2122, %v2130
      %v2143 = vmul.f32 %v2123, %v2130
      %v2144 = vmul.f32 %v2124, %v2130
      %v2145 = vmul.f32 %v2125, %v2130
      %v2146 = vmul.f32 %v2126, %v2130
      %v2147 = vmul.f32 %v2127, %v2130
      %v2148 = vld [vmem:[%s465] sm:$0x1]
      %v2150 = vperm.slane %v2148, 0
      %v2152 = vadd.f32 %v2132, %v2150
      %v2153 = vadd.f32 %v2133, %v2150
      %v2154 = vadd.f32 %v2134, %v2150
      %v2155 = vadd.f32 %v2135, %v2150
      %v2156 = vadd.f32 %v2136, %v2150
      %v2157 = vadd.f32 %v2137, %v2150
      %v2158 = vadd.f32 %v2138, %v2150
      %v2159 = vadd.f32 %v2139, %v2150
      %v2160 = vadd.f32 %v2140, %v2150
      %v2161 = vadd.f32 %v2141, %v2150
      %v2162 = vadd.f32 %v2142, %v2150
      %v2163 = vadd.f32 %v2143, %v2150
      %v2164 = vadd.f32 %v2144, %v2150
      %v2165 = vadd.f32 %v2145, %v2150
      %v2166 = vadd.f32 %v2146, %v2150
      %v2167 = vadd.f32 %v2147, %v2150
      %v2168 = vmax.f32 %v2152, 0.0
      %v2169 = vmax.f32 %v2153, 0.0
      %v2170 = vmax.f32 %v2154, 0.0
      %v2171 = vmax.f32 %v2155, 0.0
      %v2172 = vmax.f32 %v2156, 0.0
      %v2173 = vmax.f32 %v2157, 0.0
      %v2174 = vmax.f32 %v2158, 0.0
      %v2175 = vmax.f32 %v2159, 0.0
      %v2176 = vmax.f32 %v2160, 0.0
      %v2177 = vmax.f32 %v2161, 0.0
      %v2178 = vmax.f32 %v2162, 0.0
      %v2179 = vmax.f32 %v2163, 0.0
      %v2180 = vmax.f32 %v2164, 0.0
      %v2181 = vmax.f32 %v2165, 0.0
      %v2182 = vmax.f32 %v2166, 0.0
      %v2183 = vmax.f32 %v2167, 0.0
      %vm2200 = vcmask 1040384
      %v2201 = vrot.slane %v2168, 7
      %v2202 = vrot.slane %v2169, 7
      %v2203 = vsel %vm2200, %v2201, %v2202
      %v2204 = vrot.slane %v2170, 7
      %v2205 = vrot.slane %v2171, 7
      %v2206 = vsel %vm2200, %v2204, %v2205
      %v2207 = vrot.slane %v2172, 7
      %v2208 = vrot.slane %v2173, 7
      %v2209 = vsel %vm2200, %v2207, %v2208
      %v2210 = vrot.slane %v2174, 7
      %v2211 = vrot.slane %v2175, 7
      %v2212 = vsel %vm2200, %v2210, %v2211
      %v2213 = vrot.slane %v2176, 7
      %v2214 = vrot.slane %v2177, 7
      %v2215 = vsel %vm2200, %v2213, %v2214
      %v2216 = vrot.slane %v2178, 7
      %v2217 = vrot.slane %v2179, 7
      %v2218 = vsel %vm2200, %v2216, %v2217
      %v2219 = vrot.slane %v2180, 7
      %v2220 = vrot.slane %v2181, 7
      %v2221 = vsel %vm2200, %v2219, %v2220
      %v2222 = vrot.slane %v2182, 7
      %v2223 = vrot.slane %v2183, 7
      %v2224 = vsel %vm2200, %v2222, %v2223
      %v2249 = vsel %vm2200, 0.0, %v2201
      %v2250 = vsel %vm2200, 0.0, %v2204
      %v2251 = vsel %vm2200, 0.0, %v2207
      %v2252 = vsel %vm2200, 0.0, %v2210
      %v2253 = vsel %vm2200, 0.0, %v2213
      %v2254 = vsel %vm2200, 0.0, %v2216
      %v2255 = vsel %vm2200, 0.0, %v2219
      %v2256 = vsel %vm2200, 0.0, %v2222
      %v2257 = vsel %vm2200, %v2202, 0.0
      %v2258 = vsel %vm2200, %v2205, 0.0
      %v2259 = vsel %vm2200, %v2208, 0.0
      %v2260 = vsel %vm2200, %v2211, 0.0
      %v2261 = vsel %vm2200, %v2214, 0.0
      %v2262 = vsel %vm2200, %v2217, 0.0
      %v2263 = vsel %vm2200, %v2220, 0.0
      %v2264 = vsel %vm2200, %v2223, 0.0
      %v2265 = vpack.c.bf16 %v2249, %v2249
      %v2266 = vpack.c.bf16 %v2203, %v2203
      %v2267 = vpack.c.bf16 %v2257, %v2257
      %v2268 = vpack.c.bf16 %v2250, %v2250
      %v2269 = vpack.c.bf16 %v2206, %v2206
      %v2270 = vpack.c.bf16 %v2258, %v2258
      %v2271 = vpack.c.bf16 %v2251, %v2251
      %v2272 = vpack.c.bf16 %v2209, %v2209
      %v2273 = vpack.c.bf16 %v2259, %v2259
      %v2274 = vpack.c.bf16 %v2252, %v2252
      %v2275 = vpack.c.bf16 %v2212, %v2212
      %v2276 = vpack.c.bf16 %v2260, %v2260
      %v2277 = vpack.c.bf16 %v2253, %v2253
      %v2278 = vpack.c.bf16 %v2215, %v2215
      %v2279 = vpack.c.bf16 %v2261, %v2261
      %v2280 = vpack.c.bf16 %v2254, %v2254
      %v2281 = vpack.c.bf16 %v2218, %v2218
      %v2282 = vpack.c.bf16 %v2262, %v2262
      %v2283 = vpack.c.bf16 %v2255, %v2255
      %v2284 = vpack.c.bf16 %v2221, %v2221
      %v2285 = vpack.c.bf16 %v2263, %v2263
      %v2286 = vpack.c.bf16 %v2256, %v2256
      %v2287 = vpack.c.bf16 %v2224, %v2224
      %v2288 = vpack.c.bf16 %v2264, %v2264
      %2289 = vst [vmem:[%s478] sm:$0xf] %v2265
      %2290 = vst [vmem:[%s478 + $0x4] sm:$0xf] %v2266
      %2291 = vst [vmem:[%s478 + $0x8] sm:$0x1] %v2267
      %2292 = vst [vmem:[%s478 + $0xc] sm:$0xf] %v2268
      %2293 = vst [vmem:[%s478 + $0x10] sm:$0xf] %v2269
      %2294 = vst [vmem:[%s478 + $0x14] sm:$0x1] %v2270
      %2295 = vst [vmem:[%s478 + $0x18] sm:$0xf] %v2271
      %2296 = vst [vmem:[%s478 + $0x1c] sm:$0xf] %v2272
      %2297 = vst [vmem:[%s478 + $0x20] sm:$0x1] %v2273
      %2298 = vst [vmem:[%s478 + $0x24] sm:$0xf] %v2274
      %2299 = vst [vmem:[%s478 + $0x28] sm:$0xf] %v2275
      %2300 = vst [vmem:[%s478 + $0x2c] sm:$0x1] %v2276
      %2301 = vst [vmem:[%s478 + $0x30] sm:$0xf] %v2277
      %2302 = vst [vmem:[%s478 + $0x34] sm:$0xf] %v2278
      %2303 = vst [vmem:[%s478 + $0x38] sm:$0x1] %v2279
      %2304 = vst [vmem:[%s478 + $0x3c] sm:$0xf] %v2280
      %2305 = vst [vmem:[%s478 + $0x40] sm:$0xf] %v2281
      %2306 = vst [vmem:[%s478 + $0x44] sm:$0x1] %v2282
      %2307 = vst [vmem:[%s478 + $0x48] sm:$0xf] %v2283
      %2308 = vst [vmem:[%s478 + $0x4c] sm:$0xf] %v2284
      %2309 = vst [vmem:[%s478 + $0x50] sm:$0x1] %v2285
      %2310 = vst [vmem:[%s478 + $0x54] sm:$0xf] %v2286
      %2311 = vst [vmem:[%s478 + $0x58] sm:$0xf] %v2287
      %2312 = vst [vmem:[%s478 + $0x5c] sm:$0x1] %v2288
      %s2313 = smul.u32 8, %s24
      %p2314 = scmp.lt.s32.totalorder %s22, 1
      %s2315 = scalar_select %p2314, %s22, 1
      %p2316 = scmp.lt.s32.totalorder %s2313, 15
      %s2317 = scalar_select %p2316, %s2313, 15
      %p2318 = scmp.lt.s32.totalorder %s23, 0
      %s2319 = scalar_select %p2318, %s23, 0
      %s2320 = smul.addr %s2317, 3
      %s2321 = sadd.s32 %s2319, %s2320
      %s2322 = smul.addr %s2315, 48
      %s2323 = sadd.s32 %s2321, %s2322
      %s2324 = smul.addr %s2323, 4
      %s2325 = scalar_lea.vmem %s6, %s2324
      // Predicated region
      $region45: #{_lambda_.2} parent=43 // pred_check
        %p2326 = pneg %p236
      $region46: #{_lambda_.2} parent=43 // pred_check_branch
        %2328 = sbr.rel (%p2326) target = $region48
      $region47: #{_lambda_.2} parent=43 // pred_region
        %s2329 = smul.u32 8, %s24
      $region48: #{_lambda_.2} parent=43 // pred_fallthru
        _
    $region44: #{_lambda_.2} parent=5 // pred_fallthru
      _
    %p2330 = scmp.le.s32.totalorder 2, %s12
    // Predicated region
    $region49: #{_lambda_.2} parent=5 // pred_check
      %p2331 = pneg %p2330
    $region50: #{_lambda_.2} parent=5 // pred_check_branch
      %2333 = sbr.rel (%p2331) target = $region52
    $region51: #{_lambda_.2} parent=5 // pred_region
      %s2334 = ssub.s32 %s12, 2
      // Predicated region
      $region53: #{_lambda_.2} parent=51 // pred_check
        %p2335 = pneg %p242
      $region54: #{_lambda_.2} parent=51 // pred_check_branch
        %2337 = sbr.rel (%p2335) target = $region56
      $region55: #{_lambda_.2} parent=51 // pred_region
        %s2338 = smul.u32 8, %s27
        %p2339 = scmp.lt.s32.totalorder %s25, 1
        %s2340 = scalar_select %p2339, %s25, 1
        %p2341 = scmp.lt.s32.totalorder %s2338, 15
        %s2342 = scalar_select %p2341, %s2338, 15
        %p2343 = scmp.lt.s32.totalorder %s26, 0
        %s2344 = scalar_select %p2343, %s26, 0
        %s2345 = smul.addr %s2342, 3
        %s2346 = sadd.s32 %s2344, %s2345
        %s2347 = smul.addr %s2340, 48
        %s2348 = sadd.s32 %s2346, %s2347
        %s2349 = smul.addr %s2348, 4
        %s2350 = scalar_lea.vmem %s6, %s2349
      $region56: #{_lambda_.2} parent=51 // pred_fallthru
        _
    $region52: #{_lambda_.2} parent=5 // pred_fallthru
      _
  $region6: #{_lambda_.2} parent=0 // loop_footer
    %s16 = sadd.s32 1, %s12
  $region7: #{_lambda_.2} parent=0 // loop_footer_branch
    %11 = sbr.rel target = $region3
  $region8: #{_lambda_.2} parent=0 // loop_exit
    _

// kernel: _lambda_.3
$region0: #{_lambda_.3}
  #allocation0 [shape = 'u32[]', space=smem, size = 0x4, offset = 0x4, fixed_abs, tag = 'smem constant byte address 0x4 - core index']
  #allocation1 [shape = 'u32[72,128]{1,0:T(1,128)}', space=vmem, size = 0x9000, scoped, tag = 'internal scratch']
  %s0 = inlined_call_operand.vmem [shape: bf16[2,16,18,128], index: 0, kind: input, shape index: {}, may-alias: {0,1,2}]
  %s1 = inlined_call_operand.vmem [shape: bf16[2,16,18,128], index: 1, kind: input, shape index: {}, may-alias: {0,1,2}]
  %s2 = inlined_call_operand.vmem [shape: bf16[2,16,18,128], index: 2, kind: input, shape index: {}, may-alias: {0,1,2}]
  %s3 = inlined_call_operand.vmem [shape: bf16[9,128,128], index: 3, kind: input, shape index: {}]
  %s4 = inlined_call_operand.vmem [shape: f32[1,128], index: 4, kind: input, shape index: {}]
  %s5 = inlined_call_operand.vmem [shape: f32[1,128], index: 5, kind: input, shape index: {}]
  %s6 = inlined_call_operand.vmem [shape: bf16[2,16,18,128], index: 6, kind: input, shape index: {}]
  %s7 = inlined_call_operand.vmem [shape: bf16[2,16,18,128], index: 7, kind: output, shape index: {}]
  %s8 = sld [smem:[#allocation0]]
  $region61: #{_lambda_.3} parent=0
    _
  %s10 = ssub.s32 1, %s8
  %s11 = scalar_select 0, %s10, %s8
  loop: start=0, step=1, limit=6
  $region2: #{_lambda_.3} parent=0 // loop_pre_header
    _
  $region3: #{_lambda_.3} parent=0 // loop_header
    %s13 = sphi 0, %s17
    %p14 = scmp.ge.s32.totalorder %s13, 6
    %s20 = sphi 0, %s39
    %s21 = sphi 0, %s35
    %s22 = sphi 0, %s31
    %s23 = sphi 0, %s20
    %s24 = sphi 0, %s21
    %s25 = sphi 0, %s22
    %s26 = sphi 0, %s23
    %s27 = sphi 0, %s24
    %s28 = sphi 0, %s25
    %s52 = sphi 0, %s54
    %s55 = sphi 0, %s52
    %s56 = sphi 0, %s55
    %s72 = sphi 0, %s56
    %s80 = sphi 0, %s82
    %s83 = sphi 0, %s80
    %s84 = sphi 0, %s83
    %s100 = sphi 0, %s84
    %s116 = sphi 0, %s118
    %s119 = sphi 0, %s116
    %s120 = sphi 0, %s119
    %s136 = sphi 0, %s120
    %s142 = sphi 0, %s144
    %s145 = sphi 0, %s142
    %s146 = sphi 0, %s145
    %s162 = sphi 0, %s146
    %s168 = sphi 0, %s170
    %s171 = sphi 0, %s168
    %s172 = sphi 0, %s171
    %s188 = sphi 0, %s172
    %s194 = sphi 0, %s196
    %s197 = sphi 0, %s194
    %s198 = sphi 0, %s197
    %s214 = sphi 0, %s198
    %s224 = sphi 0, %s226
    %s227 = sphi 0, %s224
    %s228 = sphi 0, %s227
    %s244 = sphi 0, %s228
    %s254 = sphi 0, %s256
    %s257 = sphi 0, %s254
    %s258 = sphi 0, %s257
    %s274 = sphi 0, %s258
  $region4: #{_lambda_.3} parent=0 // loop_header_branch
    %16 = sbr.rel (%p14) target = $region8
  $region5: #{_lambda_.3} parent=0 // loop_body
    %s18 = ssub.s32 %s13, 1
    %s19 = ssub.s32 %s13, 2
    %s29 = sadd.s32 1, %s22
    %p30 = scmp.ge.s32.totalorder %s29, 2
    %s31 = scalar_select %p30, 0, %s29
    %s32 = sadd.s32 1, %s21
    %s33 = scalar_select %p30, %s32, %s21
    %p34 = scmp.ge.s32.totalorder %s33, 1
    %s35 = scalar_select %p34, 0, %s33
    %s36 = sadd.s32 1, %s20
    %s37 = scalar_select %p34, %s36, %s20
    %p38 = scmp.ge.s32.totalorder %s37, 2
    %s39 = scalar_select %p38, 0, %s37
    %s40 = smul.u32 %s22, 8
    %s41 = ssub.s32 %s40, 1
    %p42 = scmp.gt.s32.totalorder %s41, 0
    %s43 = scalar_select %p42, %s41, 0
    %s44 = smul.u32 %s31, 8
    %s45 = ssub.s32 %s44, 1
    %p46 = scmp.gt.s32.totalorder %s45, 0
    %s47 = scalar_select %p46, %s45, 0
    %s48 = ssub.s32 %s20, %s39
    %s49 = ssub.s32 %s43, %s47
    %s50 = sor.u32 %s48, %s49
    %p51 = scmp.eq.s32.totalorder %s50, 0
    %s53 = sadd.s32 %s52, 1
    %s54 = scalar_select %p51, %s52, %s53
    %p57 = pneg %p51
    %p58 = scmp.eq.s32.totalorder %s13, 3
    %p59 = por %p57, %p58
    %p60 = scmp.ne.s32.totalorder %s52, %s55
    %p61 = scmp.eq.s32.totalorder %s13, 0
    %p62 = por %p60, %p61
    %p63 = scmp.ne.s32.totalorder %s52, %s55
    %p64 = scmp.eq.s32.totalorder %s18, 3
    %p65 = por %p63, %p64
    %p66 = scmp.ne.s32.totalorder %s55, %s56
    %p67 = scmp.eq.s32.totalorder %s18, 0
    %p68 = por %p66, %p67
    %p69 = scmp.ne.s32.totalorder %s55, %s56
    %p70 = scmp.eq.s32.totalorder %s19, 3
    %p71 = por %p69, %p70
    %p73 = scmp.ne.s32.totalorder %s56, %s72
    %p74 = scmp.eq.s32.totalorder %s19, 0
    %p75 = por %p73, %p74
    %s76 = ssub.s32 %s20, %s39
    %s77 = ssub.s32 %s22, %s31
    %s78 = sor.u32 %s76, %s77
    %p79 = scmp.eq.s32.totalorder %s78, 0
    %s81 = sadd.s32 %s80, 1
    %s82 = scalar_select %p79, %s80, %s81
    %p85 = pneg %p79
    %p86 = scmp.eq.s32.totalorder %s13, 3
    %p87 = por %p85, %p86
    %p88 = scmp.ne.s32.totalorder %s80, %s83
    %p89 = scmp.eq.s32.totalorder %s13, 0
    %p90 = por %p88, %p89
    %p91 = scmp.ne.s32.totalorder %s80, %s83
    %p92 = scmp.eq.s32.totalorder %s18, 3
    %p93 = por %p91, %p92
    %p94 = scmp.ne.s32.totalorder %s83, %s84
    %p95 = scmp.eq.s32.totalorder %s18, 0
    %p96 = por %p94, %p95
    %p97 = scmp.ne.s32.totalorder %s83, %s84
    %p98 = scmp.eq.s32.totalorder %s19, 3
    %p99 = por %p97, %p98
    %p101 = scmp.ne.s32.totalorder %s84, %s100
    %p102 = scmp.eq.s32.totalorder %s19, 0
    %p103 = por %p101, %p102
    %s104 = smul.u32 %s22, 8
    %s105 = sadd.s32 %s104, 8
    %p106 = scmp.lt.s32.totalorder %s105, 15
    %s107 = scalar_select %p106, %s105, 15
    %s108 = smul.u32 %s31, 8
    %s109 = sadd.s32 %s108, 8
    %p110 = scmp.lt.s32.totalorder %s109, 15
    %s111 = scalar_select %p110, %s109, 15
    %s112 = ssub.s32 %s20, %s39
    %s113 = ssub.s32 %s107, %s111
    %s114 = sor.u32 %s112, %s113
    %p115 = scmp.eq.s32.totalorder %s114, 0
    %s117 = sadd.s32 %s116, 1
    %s118 = scalar_select %p115, %s116, %s117
    %p121 = pneg %p115
    %p122 = scmp.eq.s32.totalorder %s13, 3
    %p123 = por %p121, %p122
    %p124 = scmp.ne.s32.totalorder %s116, %s119
    %p125 = scmp.eq.s32.totalorder %s13, 0
    %p126 = por %p124, %p125
    %p127 = scmp.ne.s32.totalorder %s116, %s119
    %p128 = scmp.eq.s32.totalorder %s18, 3
    %p129 = por %p127, %p128
    %p130 = scmp.ne.s32.totalorder %s119, %s120
    %p131 = scmp.eq.s32.totalorder %s18, 0
    %p132 = por %p130, %p131
    %p133 = scmp.ne.s32.totalorder %s119, %s120
    %p134 = scmp.eq.s32.totalorder %s19, 3
    %p135 = por %p133, %p134
    %p137 = scmp.ne.s32.totalorder %s120, %s136
    %p138 = scmp.eq.s32.totalorder %s19, 0
    %p139 = por %p137, %p138
    %s140 = ssub.s32 %s21, %s35
    %p141 = scmp.eq.s32.totalorder %s140, 0
    %s143 = sadd.s32 %s142, 1
    %s144 = scalar_select %p141, %s142, %s143
    %p147 = pneg %p141
    %p148 = scmp.eq.s32.totalorder %s13, 3
    %p149 = por %p147, %p148
    %p150 = scmp.ne.s32.totalorder %s142, %s145
    %p151 = scmp.eq.s32.totalorder %s13, 0
    %p152 = por %p150, %p151
    %p153 = scmp.ne.s32.totalorder %s142, %s145
    %p154 = scmp.eq.s32.totalorder %s18, 3
    %p155 = por %p153, %p154
    %p156 = scmp.ne.s32.totalorder %s145, %s146
    %p157 = scmp.eq.s32.totalorder %s18, 0
    %p158 = por %p156, %p157
    %p159 = scmp.ne.s32.totalorder %s145, %s146
    %p160 = scmp.eq.s32.totalorder %s19, 3
    %p161 = por %p159, %p160
    %p163 = scmp.ne.s32.totalorder %s146, %s162
    %p164 = scmp.eq.s32.totalorder %s19, 0
    %p165 = por %p163, %p164
    %s166 = ssub.s32 %s21, %s35
    %p167 = scmp.eq.s32.totalorder %s166, 0
    %s169 = sadd.s32 %s168, 1
    %s170 = scalar_select %p167, %s168, %s169
    %p173 = pneg %p167
    %p174 = scmp.eq.s32.totalorder %s13, 3
    %p175 = por %p173, %p174
    %p176 = scmp.ne.s32.totalorder %s168, %s171
    %p177 = scmp.eq.s32.totalorder %s13, 0
    %p178 = por %p176, %p177
    %p179 = scmp.ne.s32.totalorder %s168, %s171
    %p180 = scmp.eq.s32.totalorder %s18, 3
    %p181 = por %p179, %p180
    %p182 = scmp.ne.s32.totalorder %s171, %s172
    %p183 = scmp.eq.s32.totalorder %s18, 0
    %p184 = por %p182, %p183
    %p185 = scmp.ne.s32.totalorder %s171, %s172
    %p186 = scmp.eq.s32.totalorder %s19, 3
    %p187 = por %p185, %p186
    %p189 = scmp.ne.s32.totalorder %s172, %s188
    %p190 = scmp.eq.s32.totalorder %s19, 0
    %p191 = por %p189, %p190
    %s192 = ssub.s32 %s21, %s35
    %p193 = scmp.eq.s32.totalorder %s192, 0
    %s195 = sadd.s32 %s194, 1
    %s196 = scalar_select %p193, %s194, %s195
    %p199 = pneg %p193
    %p200 = scmp.eq.s32.totalorder %s13, 3
    %p201 = por %p199, %p200
    %p202 = scmp.ne.s32.totalorder %s194, %s197
    %p203 = scmp.eq.s32.totalorder %s13, 0
    %p204 = por %p202, %p203
    %p205 = scmp.ne.s32.totalorder %s194, %s197
    %p206 = scmp.eq.s32.totalorder %s18, 3
    %p207 = por %p205, %p206
    %p208 = scmp.ne.s32.totalorder %s197, %s198
    %p209 = scmp.eq.s32.totalorder %s18, 0
    %p210 = por %p208, %p209
    %p211 = scmp.ne.s32.totalorder %s197, %s198
    %p212 = scmp.eq.s32.totalorder %s19, 3
    %p213 = por %p211, %p212
    %p215 = scmp.ne.s32.totalorder %s198, %s214
    %p216 = scmp.eq.s32.totalorder %s19, 0
    %p217 = por %p215, %p216
    %s218 = ssub.s32 %s20, %s39
    %s219 = ssub.s32 %s22, %s31
    %s220 = sor.u32 %s218, %s219
    %s221 = ssub.s32 %s21, %s35
    %s222 = sor.u32 %s220, %s221
    %p223 = scmp.eq.s32.totalorder %s222, 0
    %s225 = sadd.s32 %s224, 1
    %s226 = scalar_select %p223, %s224, %s225
    %p229 = pneg %p223
    %p230 = scmp.eq.s32.totalorder %s13, 3
    %p231 = por %p229, %p230
    %p232 = scmp.ne.s32.totalorder %s224, %s227
    %p233 = scmp.eq.s32.totalorder %s13, 0
    %p234 = por %p232, %p233
    %p235 = scmp.ne.s32.totalorder %s224, %s227
    %p236 = scmp.eq.s32.totalorder %s18, 3
    %p237 = por %p235, %p236
    %p238 = scmp.ne.s32.totalorder %s227, %s228
    %p239 = scmp.eq.s32.totalorder %s18, 0
    %p240 = por %p238, %p239
    %p241 = scmp.ne.s32.totalorder %s227, %s228
    %p242 = scmp.eq.s32.totalorder %s19, 3
    %p243 = por %p241, %p242
    %p245 = scmp.ne.s32.totalorder %s228, %s244
    %p246 = scmp.eq.s32.totalorder %s19, 0
    %p247 = por %p245, %p246
    %s248 = ssub.s32 %s20, %s39
    %s249 = ssub.s32 %s22, %s31
    %s250 = sor.u32 %s248, %s249
    %s251 = ssub.s32 %s21, %s35
    %s252 = sor.u32 %s250, %s251
    %p253 = scmp.eq.s32.totalorder %s252, 0
    %s255 = sadd.s32 %s254, 1
    %s256 = scalar_select %p253, %s254, %s255
    %p259 = pneg %p253
    %p260 = scmp.eq.s32.totalorder %s13, 3
    %p261 = por %p259, %p260
    %p262 = scmp.ne.s32.totalorder %s254, %s257
    %p263 = scmp.eq.s32.totalorder %s13, 0
    %p264 = por %p262, %p263
    %p265 = scmp.ne.s32.totalorder %s254, %s257
    %p266 = scmp.eq.s32.totalorder %s18, 3
    %p267 = por %p265, %p266
    %p268 = scmp.ne.s32.totalorder %s257, %s258
    %p269 = scmp.eq.s32.totalorder %s18, 0
    %p270 = por %p268, %p269
    %p271 = scmp.ne.s32.totalorder %s257, %s258
    %p272 = scmp.eq.s32.totalorder %s19, 3
    %p273 = por %p271, %p272
    %p275 = scmp.ne.s32.totalorder %s258, %s274
    %p276 = scmp.eq.s32.totalorder %s19, 0
    %p277 = por %p275, %p276
    %p278 = scmp.le.s32.totalorder 1, %s13
    %p279 = scmp.lt.s32.totalorder %s13, 5
    %p280 = pnand %p278, %p279
    %p281 = pneg %p280
    // Predicated region
    $region9: #{_lambda_.3} parent=5 // pred_check
      _
    $region10: #{_lambda_.3} parent=5 // pred_check_branch
      %283 = sbr.rel (%p280) target = $region12
    $region11: #{_lambda_.3} parent=5 // pred_region
      %s284 = ssub.s32 %s13, 1
      // Predicated region
      $region13: #{_lambda_.3} parent=11 // pred_check
        %p285 = pneg %p158
      $region14: #{_lambda_.3} parent=11 // pred_check_branch
        %287 = sbr.rel (%p285) target = $region16
      $region15: #{_lambda_.3} parent=11 // pred_region
        %p288 = scmp.lt.s32.totalorder %s24, 0
        %s289 = scalar_select %p288, %s24, 0
        %s290 = smul.addr %s289, 4
        %s291 = scalar_lea.vmem %s3, %s290
      $region16: #{_lambda_.3} parent=11 // pred_fallthru
        _
      // Predicated region
      $region17: #{_lambda_.3} parent=11 // pred_check
        %p292 = pneg %p184
      $region18: #{_lambda_.3} parent=11 // pred_check_branch
        %294 = sbr.rel (%p292) target = $region20
      $region19: #{_lambda_.3} parent=11 // pred_region
        %p295 = scmp.lt.s32.totalorder %s24, 0
        %s296 = scalar_select %p295, %s24, 0
        %s297 = scalar_lea.vmem %s4, %s296
      $region20: #{_lambda_.3} parent=11 // pred_fallthru
        _
      // Predicated region
      $region21: #{_lambda_.3} parent=11 // pred_check
        %p298 = pneg %p210
      $region22: #{_lambda_.3} parent=11 // pred_check_branch
        %300 = sbr.rel (%p298) target = $region24
      $region23: #{_lambda_.3} parent=11 // pred_region
        %p301 = scmp.lt.s32.totalorder %s24, 0
        %s302 = scalar_select %p301, %s24, 0
        %s303 = scalar_lea.vmem %s5, %s302
      $region24: #{_lambda_.3} parent=11 // pred_fallthru
        _
    $region12: #{_lambda_.3} parent=5 // pred_fallthru
      _
    %p304 = scmp.lt.s32.totalorder %s13, 4
    // Predicated region
    $region25: #{_lambda_.3} parent=5 // pred_check
      %p305 = pneg %p304
    $region26: #{_lambda_.3} parent=5 // pred_check_branch
      %307 = sbr.rel (%p305) target = $region28
    $region27: #{_lambda_.3} parent=5 // pred_region
      // Predicated region
      $region29: #{_lambda_.3} parent=27 // pred_check
        %p308 = pneg %p62
      $region30: #{_lambda_.3} parent=27 // pred_check_branch
        %310 = sbr.rel (%p308) target = $region32
      $region31: #{_lambda_.3} parent=27 // pred_region
        %s311 = smul.u32 %s22, 8
        %s312 = ssub.s32 %s311, 1
        %p313 = scmp.gt.s32.totalorder %s312, 0
        %s314 = scalar_select %p313, %s312, 0
        %p315 = scmp.lt.s32.totalorder %s20, 1
        %s316 = scalar_select %p315, %s20, 1
        %p317 = scmp.lt.s32.totalorder %s314, 15
        %s318 = scalar_select %p317, %s314, 15
        %s319 = smul.addr %s318, 3
        %s320 = smul.addr %s316, 48
        %s321 = sadd.s32 %s319, %s320
        %s322 = smul.addr %s321, 4
        %s323 = scalar_lea.vmem %s0, %s322
        %s324 = smul.u32 %s22, 8
        %s325 = ssub.s32 %s324, 1
        %p326 = scmp.gt.s32.totalorder %s325, 0
        %s327 = scalar_select %p326, %s325, 0
      $region32: #{_lambda_.3} parent=27 // pred_fallthru
        _
      // Predicated region
      $region33: #{_lambda_.3} parent=27 // pred_check
        %p328 = pneg %p90
      $region34: #{_lambda_.3} parent=27 // pred_check_branch
        %330 = sbr.rel (%p328) target = $region36
      $region35: #{_lambda_.3} parent=27 // pred_region
        %s331 = smul.u32 8, %s22
        %p332 = scmp.lt.s32.totalorder %s20, 1
        %s333 = scalar_select %p332, %s20, 1
        %p334 = scmp.lt.s32.totalorder %s331, 15
        %s335 = scalar_select %p334, %s331, 15
        %s336 = smul.addr %s335, 3
        %s337 = smul.addr %s333, 48
        %s338 = sadd.s32 %s336, %s337
        %s339 = smul.addr %s338, 4
        %s340 = scalar_lea.vmem %s1, %s339
        %s341 = smul.u32 8, %s22
      $region36: #{_lambda_.3} parent=27 // pred_fallthru
        _
      // Predicated region
      $region37: #{_lambda_.3} parent=27 // pred_check
        %p342 = pneg %p126
      $region38: #{_lambda_.3} parent=27 // pred_check_branch
        %344 = sbr.rel (%p342) target = $region40
      $region39: #{_lambda_.3} parent=27 // pred_region
        %s345 = smul.u32 %s22, 8
        %s346 = sadd.s32 %s345, 8
        %p347 = scmp.lt.s32.totalorder %s346, 15
        %s348 = scalar_select %p347, %s346, 15
        %p349 = scmp.lt.s32.totalorder %s20, 1
        %s350 = scalar_select %p349, %s20, 1
        %p351 = scmp.lt.s32.totalorder %s348, 15
        %s352 = scalar_select %p351, %s348, 15
        %s353 = smul.addr %s352, 3
        %s354 = smul.addr %s350, 48
        %s355 = sadd.s32 %s353, %s354
        %s356 = smul.addr %s355, 4
        %s357 = scalar_lea.vmem %s2, %s356
        %s358 = smul.u32 %s22, 8
        %s359 = sadd.s32 %s358, 8
        %p360 = scmp.lt.s32.totalorder %s359, 15
        %s361 = scalar_select %p360, %s359, 15
      $region40: #{_lambda_.3} parent=27 // pred_fallthru
        _
      // Predicated region
      $region41: #{_lambda_.3} parent=27 // pred_check
        %p362 = pneg %p234
      $region42: #{_lambda_.3} parent=27 // pred_check_branch
        %364 = sbr.rel (%p362) target = $region44
      $region43: #{_lambda_.3} parent=27 // pred_region
        %s365 = smul.u32 8, %s22
        %p366 = scmp.lt.s32.totalorder %s20, 1
        %s367 = scalar_select %p366, %s20, 1
        %p368 = scmp.lt.s32.totalorder %s365, 15
        %s369 = scalar_select %p368, %s365, 15
        %p370 = scmp.lt.s32.totalorder %s21, 0
        %s371 = scalar_select %p370, %s21, 0
        %s372 = smul.addr %s369, 3
        %s373 = sadd.s32 %s371, %s372
        %s374 = smul.addr %s367, 48
        %s375 = sadd.s32 %s373, %s374
        %s376 = smul.addr %s375, 4
        %s377 = scalar_lea.vmem %s6, %s376
        %s378 = smul.u32 8, %s22
      $region44: #{_lambda_.3} parent=27 // pred_fallthru
        _
    $region28: #{_lambda_.3} parent=5 // pred_fallthru
      _
    %p379 = scmp.le.s32.totalorder 1, %s13
    %p380 = scmp.lt.s32.totalorder %s13, 5
    %p381 = pnand %p379, %p380
    %p382 = pneg %p381
    // Predicated region
    $region45: #{_lambda_.3} parent=5 // pred_check
      _
    $region46: #{_lambda_.3} parent=5 // pred_check_branch
      %384 = sbr.rel (%p381) target = $region48
    $region47: #{_lambda_.3} parent=5 // pred_region
      %s385 = ssub.s32 %s13, 1
      %s386 = smul.u32 %s25, 8
      %s387 = ssub.s32 %s386, 1
      %p388 = scmp.gt.s32.totalorder %s387, 0
      %s389 = scalar_select %p388, %s387, 0
      %p390 = scmp.lt.s32.totalorder %s23, 1
      %s391 = scalar_select %p390, %s23, 1
      %p392 = scmp.lt.s32.totalorder %s389, 15
      %s393 = scalar_select %p392, %s389, 15
      %s394 = smul.addr %s393, 3
      %s395 = smul.addr %s391, 48
      %s396 = sadd.s32 %s394, %s395
      %s397 = smul.addr %s396, 4
      %s398 = scalar_lea.vmem %s0, %s397
      %p399 = pneg %p68
      %p400 = pneg %p65
      %s401 = smul.u32 8, %s25
      %p402 = scmp.lt.s32.totalorder %s23, 1
      %s403 = scalar_select %p402, %s23, 1
      %p404 = scmp.lt.s32.totalorder %s401, 15
      %s405 = scalar_select %p404, %s401, 15
      %s406 = smul.addr %s405, 3
      %s407 = smul.addr %s403, 48
      %s408 = sadd.s32 %s406, %s407
      %s409 = smul.addr %s408, 4
      %s410 = scalar_lea.vmem %s1, %s409
      %p411 = pneg %p96
      %p412 = pneg %p93
      %s413 = smul.u32 %s25, 8
      %s414 = sadd.s32 %s413, 8
      %p415 = scmp.lt.s32.totalorder %s414, 15
      %s416 = scalar_select %p415, %s414, 15
      %p417 = scmp.lt.s32.totalorder %s23, 1
      %s418 = scalar_select %p417, %s23, 1
      %p419 = scmp.lt.s32.totalorder %s416, 15
      %s420 = scalar_select %p419, %s416, 15
      %s421 = smul.addr %s420, 3
      %s422 = smul.addr %s418, 48
      %s423 = sadd.s32 %s421, %s422
      %s424 = smul.addr %s423, 4
      %s425 = scalar_lea.vmem %s2, %s424
      %p426 = pneg %p132
      %p427 = pneg %p129
      %p428 = scmp.lt.s32.totalorder %s24, 0
      %s429 = scalar_select %p428, %s24, 0
      %s430 = smul.addr %s429, 4
      %s431 = scalar_lea.vmem %s3, %s430
      %p432 = pneg %p158
      %p433 = pneg %p155
      %p434 = scmp.lt.s32.totalorder %s24, 0
      %s435 = scalar_select %p434, %s24, 0
      %s436 = scalar_lea.vmem %s4, %s435
      %p437 = pneg %p184
      %p438 = pneg %p181
      %p439 = scmp.lt.s32.totalorder %s24, 0
      %s440 = scalar_select %p439, %s24, 0
      %s441 = scalar_lea.vmem %s5, %s440
      %p442 = pneg %p210
      %p443 = pneg %p207
      %s444 = smul.u32 8, %s25
      %p445 = scmp.lt.s32.totalorder %s23, 1
      %s446 = scalar_select %p445, %s23, 1
      %p447 = scmp.lt.s32.totalorder %s444, 15
      %s448 = scalar_select %p447, %s444, 15
      %p449 = scmp.lt.s32.totalorder %s24, 0
      %s450 = scalar_select %p449, %s24, 0
      %s451 = smul.addr %s448, 3
      %s452 = sadd.s32 %s450, %s451
      %s453 = smul.addr %s446, 48
      %s454 = sadd.s32 %s452, %s453
      %s455 = smul.addr %s454, 4
      %s456 = scalar_lea.vmem %s6, %s455
      %p457 = pneg %p240
      %p458 = pneg %p237
      %p459 = pneg %p270
      %p460 = pneg %p267
      %s461 = smul.u32 8, %s25
      %p462 = scmp.lt.s32.totalorder %s23, 1
      %s463 = scalar_select %p462, %s23, 1
      %p464 = scmp.lt.s32.totalorder %s461, 15
      %s465 = scalar_select %p464, %s461, 15
      %p466 = scmp.lt.s32.totalorder %s24, 0
      %s467 = scalar_select %p466, %s24, 0
      %s468 = smul.addr %s465, 3
      %s469 = sadd.s32 %s467, %s468
      %s470 = smul.addr %s463, 48
      %s471 = sadd.s32 %s469, %s470
      %s472 = smul.addr %s471, 4
      %s473 = scalar_lea.vmem %s7, %s472
      %s474 = smul.u32 %s25, 8
      %s475 = ssub.s32 %s474, 1
      %p476 = scmp.gt.s32.totalorder %s475, 0
      %s477 = scalar_select %p476, %s475, 0
      %p478 = scmp.lt.s32.totalorder %s23, 1
      %s479 = scalar_select %p478, %s23, 1
      %p480 = scmp.lt.s32.totalorder %s477, 15
      %s481 = scalar_select %p480, %s477, 15
      %s482 = smul.addr %s481, 3
      %s483 = smul.addr %s479, 48
      %s484 = sadd.s32 %s482, %s483
      %s485 = smul.addr %s484, 4
      %s486 = scalar_lea.vmem %s0, %s485
      %s487 = smul.u32 %s25, 8
      %s488 = ssub.s32 %s487, 1
      %p489 = scmp.gt.s32.totalorder %s488, 0
      %s490 = scalar_select %p489, %s488, 0
      %s491 = smul.u32 8, %s25
      %p492 = scmp.lt.s32.totalorder %s23, 1
      %s493 = scalar_select %p492, %s23, 1
      %p494 = scmp.lt.s32.totalorder %s491, 15
      %s495 = scalar_select %p494, %s491, 15
      %s496 = smul.addr %s495, 3
      %s497 = smul.addr %s493, 48
      %s498 = sadd.s32 %s496, %s497
      %s499 = smul.addr %s498, 4
      %s500 = scalar_lea.vmem %s1, %s499
      %s501 = smul.u32 8, %s25
      %s502 = smul.u32 %s25, 8
      %s503 = sadd.s32 %s502, 8
      %p504 = scmp.lt.s32.totalorder %s503, 15
      %s505 = scalar_select %p504, %s503, 15
      %p506 = scmp.lt.s32.totalorder %s23, 1
      %s507 = scalar_select %p506, %s23, 1
      %p508 = scmp.lt.s32.totalorder %s505, 15
      %s509 = scalar_select %p508, %s505, 15
      %s510 = smul.addr %s509, 3
      %s511 = smul.addr %s507, 48
      %s512 = sadd.s32 %s510, %s511
      %s513 = smul.addr %s512, 4
      %s514 = scalar_lea.vmem %s2, %s513
      %s515 = smul.u32 %s25, 8
      %s516 = sadd.s32 %s515, 8
      %p517 = scmp.lt.s32.totalorder %s516, 15
      %s518 = scalar_select %p517, %s516, 15
      %p519 = scmp.lt.s32.totalorder %s24, 0
      %s520 = scalar_select %p519, %s24, 0
      %s521 = smul.addr %s520, 4
      %s522 = scalar_lea.vmem %s3, %s521
      %p523 = scmp.lt.s32.totalorder %s24, 0
      %s524 = scalar_select %p523, %s24, 0
      %s525 = scalar_lea.vmem %s4, %s524
      %p526 = scmp.lt.s32.totalorder %s24, 0
      %s527 = scalar_select %p526, %s24, 0
      %s528 = scalar_lea.vmem %s5, %s527
      %s529 = smul.u32 8, %s25
      %p530 = scmp.lt.s32.totalorder %s23, 1
      %s531 = scalar_select %p530, %s23, 1
      %p532 = scmp.lt.s32.totalorder %s529, 15
      %s533 = scalar_select %p532, %s529, 15
      %p534 = scmp.lt.s32.totalorder %s24, 0
      %s535 = scalar_select %p534, %s24, 0
      %s536 = smul.addr %s533, 3
      %s537 = sadd.s32 %s535, %s536
      %s538 = smul.addr %s531, 48
      %s539 = sadd.s32 %s537, %s538
      %s540 = smul.addr %s539, 4
      %s541 = scalar_lea.vmem %s6, %s540
      %s542 = smul.u32 8, %s25
      %s543 = smul.u32 8, %s25
      %p544 = scmp.lt.s32.totalorder %s23, 1
      %s545 = scalar_select %p544, %s23, 1
      %p546 = scmp.lt.s32.totalorder %s543, 15
      %s547 = scalar_select %p546, %s543, 15
      %p548 = scmp.lt.s32.totalorder %s24, 0
      %s549 = scalar_select %p548, %s24, 0
      %s550 = smul.addr %s547, 3
      %s551 = sadd.s32 %s549, %s550
      %s552 = smul.addr %s545, 48
      %s553 = sadd.s32 %s551, %s552
      %s554 = smul.addr %s553, 4
      %s555 = scalar_lea.vmem %s7, %s554
      %s556 = smul.u32 8, %s25
      %v558 = vld [vmem:[%s486] sm:$0xf]
      %v559 = vld [vmem:[%s486 + $0x4] sm:$0xf]
      %v560 = vld [vmem:[%s486 + $0x8] sm:$0x1]
      %v561 = vld [vmem:[%s514] sm:$0xf]
      %v562 = vld [vmem:[%s514 + $0x4] sm:$0xf]
      %v563 = vld [vmem:[%s514 + $0x8] sm:$0x1]
      %p564 = scmp.gt.s32.totalorder %s25, 0
      %s565 = scalar_select %p564, 1, 0
      %v566 = vstv %s565
      %vm567 = vcmp.eq.s32.totalorder %v566, 1
      %v568 = vsel %vm567, %v558, 0
      %v569 = vsel %vm567, %v559, 0
      %v570 = vsel %vm567, %v560, 0
      %p571 = scmp.lt.s32.totalorder %s25, 1
      %s572 = scalar_select %p571, 1, 0
      %v573 = vstv %s572
      %vm574 = vcmp.eq.s32.totalorder %v573, 1
      %v575 = vsel %vm574, %v561, 0
      %v576 = vsel %vm574, %v562, 0
      %v577 = vsel %vm574, %v563, 0
      %v578 = vld [vmem:[%s500] sm:$0xf]
      %v579 = vld [vmem:[%s500 + $0x4] sm:$0xf]
      %v580 = vld [vmem:[%s500 + $0x8] sm:$0x1]
      %v581 = vld [vmem:[%s500 + $0xc] sm:$0xf]
      %v582 = vld [vmem:[%s500 + $0x10] sm:$0xf]
      %v583 = vld [vmem:[%s500 + $0x14] sm:$0x1]
      %v584 = vld [vmem:[%s500 + $0x18] sm:$0xf]
      %v585 = vld [vmem:[%s500 + $0x1c] sm:$0xf]
      %v586 = vld [vmem:[%s500 + $0x20] sm:$0x1]
      %v587 = vld [vmem:[%s500 + $0x24] sm:$0xf]
      %v588 = vld [vmem:[%s500 + $0x28] sm:$0xf]
      %v589 = vld [vmem:[%s500 + $0x2c] sm:$0x1]
      %v590 = vld [vmem:[%s500 + $0x30] sm:$0xf]
      %v591 = vld [vmem:[%s500 + $0x34] sm:$0xf]
      %v592 = vld [vmem:[%s500 + $0x38] sm:$0x1]
      %v593 = vld [vmem:[%s500 + $0x3c] sm:$0xf]
      %v594 = vld [vmem:[%s500 + $0x40] sm:$0xf]
      %v595 = vld [vmem:[%s500 + $0x44] sm:$0x1]
      %v596 = vld [vmem:[%s500 + $0x48] sm:$0xf]
      %v597 = vld [vmem:[%s500 + $0x4c] sm:$0xf]
      %v598 = vld [vmem:[%s500 + $0x50] sm:$0x1]
      %v599 = vld [vmem:[%s500 + $0x54] sm:$0xf]
      %v600 = vld [vmem:[%s500 + $0x58] sm:$0xf]
      %v601 = vld [vmem:[%s500 + $0x5c] sm:$0x1]
      %v602 = vld [vmem:[%s522] sm:$0xf]
      %v603 = vld [vmem:[%s522 + $0x4] sm:$0xf]
      %v604 = vld [vmem:[%s522 + $0x8] sm:$0xf]
      %v605 = vld [vmem:[%s522 + $0xc] sm:$0xf]
      %v606 = vld [vmem:[%s522 + $0x10] sm:$0xf]
      %v607 = vld [vmem:[%s522 + $0x14] sm:$0xf]
      %v608 = vld [vmem:[%s522 + $0x18] sm:$0xf]
      %v609 = vld [vmem:[%s522 + $0x1c] sm:$0xf]
      %v610 = vld [vmem:[%s522 + $0x20] sm:$0xf]
      %v611 = vld [vmem:[%s522 + $0x24] sm:$0xf]
      %v612 = vld [vmem:[%s522 + $0x28] sm:$0xf]
      %v613 = vld [vmem:[%s522 + $0x2c] sm:$0xf]
      %v614 = vld [vmem:[%s522 + $0x30] sm:$0xf]
      %v615 = vld [vmem:[%s522 + $0x34] sm:$0xf]
      %v616 = vld [vmem:[%s522 + $0x38] sm:$0xf]
      %v617 = vld [vmem:[%s522 + $0x3c] sm:$0xf]
      %vm618 = vsmask.f32 3328
      %vm619 = vsmask.f32 7440
      %vm620 = vmor %vm618, %vm619
      %v622 = vshrl.u32 %v568, 16
      %v624 = vrot.slane %v622, 4
      %v625 = vshll.u32 %v568, 16
      %v627 = vrot.slane %v625, 5
      %v628 = vor.u32 %v624, %v627
      %v629 = vrot.slane %v628, 4
      %v631 = vshll.u32 %v569, 16
      %v633 = vrot.slane %v631, 5
      %v634 = vsel %vm620, %v629, %v633
      %v635 = vshrl.u32 %v569, 16
      %v637 = vrot.slane %v635, 4
      %v638 = vor.u32 %v637, %v633
      %v639 = vrot.slane %v638, 4
      %v641 = vshll.u32 %v570, 16
      %v643 = vrot.slane %v641, 5
      %v644 = vsel %vm620, %v639, %v643
      %v646 = vshrl.u32 %v578, 16
      %v648 = vrot.slane %v646, 4
      %v649 = vshll.u32 %v578, 16
      %v651 = vrot.slane %v649, 5
      %v652 = vor.u32 %v648, %v651
      %v653 = vrot.slane %v652, 4
      %v655 = vshll.u32 %v579, 16
      %v657 = vrot.slane %v655, 5
      %v658 = vsel %vm620, %v653, %v657
      %v659 = vshrl.u32 %v579, 16
      %v661 = vrot.slane %v659, 4
      %v662 = vor.u32 %v661, %v657
      %v663 = vrot.slane %v662, 4
      %v665 = vshll.u32 %v580, 16
      %v667 = vrot.slane %v665, 5
      %v668 = vsel %vm620, %v663, %v667
      %v670 = vshrl.u32 %v581, 16
      %v672 = vrot.slane %v670, 4
      %v673 = vshll.u32 %v581, 16
      %v675 = vrot.slane %v673, 5
      %v676 = vor.u32 %v672, %v675
      %v677 = vrot.slane %v676, 4
      %v679 = vshll.u32 %v582, 16
      %v681 = vrot.slane %v679, 5
      %v682 = vsel %vm620, %v677, %v681
      %v683 = vshrl.u32 %v582, 16
      %v685 = vrot.slane %v683, 4
      %v686 = vor.u32 %v685, %v681
      %v687 = vrot.slane %v686, 4
      %v689 = vshll.u32 %v583, 16
      %v691 = vrot.slane %v689, 5
      %v692 = vsel %vm620, %v687, %v691
      %v694 = vshrl.u32 %v584, 16
      %v696 = vrot.slane %v694, 4
      %v697 = vshll.u32 %v584, 16
      %v699 = vrot.slane %v697, 5
      %v700 = vor.u32 %v696, %v699
      %v701 = vrot.slane %v700, 4
      %v703 = vshll.u32 %v585, 16
      %v705 = vrot.slane %v703, 5
      %v706 = vsel %vm620, %v701, %v705
      %v707 = vshrl.u32 %v585, 16
      %v709 = vrot.slane %v707, 4
      %v710 = vor.u32 %v709, %v705
      %v711 = vrot.slane %v710, 4
      %v713 = vshll.u32 %v586, 16
      %v715 = vrot.slane %v713, 5
      %v716 = vsel %vm620, %v711, %v715
      %v718 = vshrl.u32 %v587, 16
      %v720 = vrot.slane %v718, 4
      %v721 = vshll.u32 %v587, 16
      %v723 = vrot.slane %v721, 5
      %v724 = vor.u32 %v720, %v723
      %v725 = vrot.slane %v724, 4
      %v727 = vshll.u32 %v588, 16
      %v729 = vrot.slane %v727, 5
      %v730 = vsel %vm620, %v725, %v729
      %v731 = vshrl.u32 %v588, 16
      %v733 = vrot.slane %v731, 4
      %v734 = vor.u32 %v733, %v729
      %v735 = vrot.slane %v734, 4
      %v737 = vshll.u32 %v589, 16
      %v739 = vrot.slane %v737, 5
      %v740 = vsel %vm620, %v735, %v739
      %v742 = vshrl.u32 %v590, 16
      %v744 = vrot.slane %v742, 4
      %v745 = vshll.u32 %v590, 16
      %v747 = vrot.slane %v745, 5
      %v748 = vor.u32 %v744, %v747
      %v749 = vrot.slane %v748, 4
      %v751 = vshll.u32 %v591, 16
      %v753 = vrot.slane %v751, 5
      %v754 = vsel %vm620, %v749, %v753
      %v755 = vshrl.u32 %v591, 16
      %v757 = vrot.slane %v755, 4
      %v758 = vor.u32 %v757, %v753
      %v759 = vrot.slane %v758, 4
      %v761 = vshll.u32 %v592, 16
      %v763 = vrot.slane %v761, 5
      %v764 = vsel %vm620, %v759, %v763
      %v766 = vshrl.u32 %v593, 16
      %v768 = vrot.slane %v766, 4
      %v769 = vshll.u32 %v593, 16
      %v771 = vrot.slane %v769, 5
      %v772 = vor.u32 %v768, %v771
      %v773 = vrot.slane %v772, 4
      %v775 = vshll.u32 %v594, 16
      %v777 = vrot.slane %v775, 5
      %v778 = vsel %vm620, %v773, %v777
      %v779 = vshrl.u32 %v594, 16
      %v781 = vrot.slane %v779, 4
      %v782 = vor.u32 %v781, %v777
      %v783 = vrot.slane %v782, 4
      %v785 = vshll.u32 %v595, 16
      %v787 = vrot.slane %v785, 5
      %v788 = vsel %vm620, %v783, %v787
      %v790 = vshrl.u32 %v596, 16
      %v792 = vrot.slane %v790, 4
      %v793 = vshll.u32 %v596, 16
      %v795 = vrot.slane %v793, 5
      %v796 = vor.u32 %v792, %v795
      %v797 = vrot.slane %v796, 4
      %v799 = vshll.u32 %v597, 16
      %v801 = vrot.slane %v799, 5
      %v802 = vsel %vm620, %v797, %v801
      %v803 = vshrl.u32 %v597, 16
      %v805 = vrot.slane %v803, 4
      %v806 = vor.u32 %v805, %v801
      %v807 = vrot.slane %v806, 4
      %v809 = vshll.u32 %v598, 16
      %v811 = vrot.slane %v809, 5
      %v812 = vsel %vm620, %v807, %v811
      %s813 = scalar_lea.vmem %s522, 64
      %v814 = vld [vmem:[%s813] sm:$0xf]
      %v815 = vld [vmem:[%s813 + $0x4] sm:$0xf]
      %v816 = vld [vmem:[%s813 + $0x8] sm:$0xf]
      %v817 = vld [vmem:[%s813 + $0xc] sm:$0xf]
      %v818 = vld [vmem:[%s813 + $0x10] sm:$0xf]
      %v819 = vld [vmem:[%s813 + $0x14] sm:$0xf]
      %v820 = vld [vmem:[%s813 + $0x18] sm:$0xf]
      %v821 = vld [vmem:[%s813 + $0x1c] sm:$0xf]
      %v822 = vld [vmem:[%s813 + $0x20] sm:$0xf]
      %v823 = vld [vmem:[%s813 + $0x24] sm:$0xf]
      %v824 = vld [vmem:[%s813 + $0x28] sm:$0xf]
      %v825 = vld [vmem:[%s813 + $0x2c] sm:$0xf]
      %v826 = vld [vmem:[%s813 + $0x30] sm:$0xf]
      %v827 = vld [vmem:[%s813 + $0x34] sm:$0xf]
      %v828 = vld [vmem:[%s813 + $0x38] sm:$0xf]
      %v829 = vld [vmem:[%s813 + $0x3c] sm:$0xf]
      %v830 = vunpack.c.l.b16 %v634
      %v831 = vunpack.c.l.b16 %v644
      %v832 = vunpack.c.l.b16 %v658
      %v833 = vunpack.c.l.b16 %v668
      %v834 = vunpack.c.l.b16 %v682
      %v835 = vunpack.c.l.b16 %v692
      %v836 = vunpack.c.l.b16 %v706
      %v837 = vunpack.c.l.b16 %v716
      %v838 = vunpack.c.l.b16 %v730
      %v839 = vunpack.c.l.b16 %v740
      %v840 = vunpack.c.l.b16 %v754
      %v841 = vunpack.c.l.b16 %v764
      %v842 = vunpack.c.l.b16 %v778
      %v843 = vunpack.c.l.b16 %v788
      %v844 = vunpack.c.l.b16 %v802
      %v845 = vunpack.c.l.b16 %v812
      %v846 = vpack.c.b16 %v831, %v830
      %v847 = vpack.c.b16 %v833, %v832
      %v848 = vpack.c.b16 %v835, %v834
      %v849 = vpack.c.b16 %v837, %v836
      %v850 = vpack.c.b16 %v839, %v838
      %v851 = vpack.c.b16 %v841, %v840
      %v852 = vpack.c.b16 %v843, %v842
      %v853 = vpack.c.b16 %v845, %v844
      %v878 = vunpack.c.l.b16 %v814
      %v879 = vunpack.c.l.b16 %v815
      %v880 = vunpack.c.l.b16 %v816
      %v881 = vunpack.c.l.b16 %v817
      %v882 = vunpack.c.l.b16 %v818
      %v883 = vunpack.c.l.b16 %v819
      %v884 = vunpack.c.l.b16 %v820
      %v885 = vunpack.c.l.b16 %v821
      %v886 = vunpack.c.l.b16 %v822
      %v887 = vunpack.c.l.b16 %v823
      %v888 = vunpack.c.l.b16 %v824
      %v889 = vunpack.c.l.b16 %v825
      %v890 = vunpack.c.l.b16 %v826
      %v891 = vunpack.c.l.b16 %v827
      %v892 = vunpack.c.l.b16 %v828
      %v893 = vunpack.c.l.b16 %v829
      %v894 = vpack.c.b16 %v879, %v878
      %v895 = vpack.c.b16 %v881, %v880
      %v896 = vpack.c.b16 %v883, %v882
      %v897 = vpack.c.b16 %v885, %v884
      %v898 = vpack.c.b16 %v887, %v886
      %v899 = vpack.c.b16 %v889, %v888
      %v900 = vpack.c.b16 %v891, %v890
      %v901 = vpack.c.b16 %v893, %v892
      %910 = vmatpush.bf16.msra.mxu0 %v901
      %911 = vmatpush.bf16.msra.mxu0 %v900
      %912 = vmatpush.bf16.msra.mxu0 %v899
      %913 = vmatpush.bf16.msra.mxu0 %v898
      %914 = vmatpush.bf16.msra.mxu0 %v897
      %915 = vmatpush.bf16.msra.mxu0 %v896
      %916 = vmatpush.bf16.msra.mxu0 %v895
      %917 = vmatpush.bf16.msra.mxu0 %v894
      %918 = vmatmul.bf16.gmra.mxu0 %v846
      %v919 = vpop.f32.mrf.mxu0
      %v920 = vadd.f32 0.0, %v919
      %v921 = vpop.f32.mrf.mxu0
      %v922 = vadd.f32 0.0, %v921
      %923 = vmatmul.bf16.gmra.mxu0 %v847
      %v924 = vpop.f32.mrf.mxu0
      %v925 = vadd.f32 0.0, %v924
      %v926 = vpop.f32.mrf.mxu0
      %v927 = vadd.f32 0.0, %v926
      %928 = vmatmul.bf16.gmra.mxu0 %v848
      %v929 = vpop.f32.mrf.mxu0
      %v930 = vadd.f32 0.0, %v929
      %v931 = vpop.f32.mrf.mxu0
      %v932 = vadd.f32 0.0, %v931
      %933 = vmatmul.bf16.gmra.mxu0 %v849
      %v934 = vpop.f32.mrf.mxu0
      %v935 = vadd.f32 0.0, %v934
      %v936 = vpop.f32.mrf.mxu0
      %v937 = vadd.f32 0.0, %v936
      %938 = vmatmul.bf16.gmra.mxu0 %v850
      %v939 = vpop.f32.mrf.mxu0
      %v940 = vadd.f32 0.0, %v939
      %v941 = vpop.f32.mrf.mxu0
      %v942 = vadd.f32 0.0, %v941
      %943 = vmatmul.bf16.gmra.mxu0 %v851
      %v944 = vpop.f32.mrf.mxu0
      %v945 = vadd.f32 0.0, %v944
      %v946 = vpop.f32.mrf.mxu0
      %v947 = vadd.f32 0.0, %v946
      %948 = vmatmul.bf16.gmra.mxu0 %v852
      %v949 = vpop.f32.mrf.mxu0
      %v950 = vadd.f32 0.0, %v949
      %v951 = vpop.f32.mrf.mxu0
      %v952 = vadd.f32 0.0, %v951
      %953 = vmatmul.bf16.gmra.mxu0 %v853
      %v954 = vpop.f32.mrf.mxu0
      %v955 = vadd.f32 0.0, %v954
      %v956 = vpop.f32.mrf.mxu0
      %v957 = vadd.f32 0.0, %v956
      %958 = vdwg.mxu0
      %v975 = vunpack.c.l.b16 %v568
      %v976 = vunpack.c.l.b16 %v569
      %v977 = vunpack.c.l.b16 %v578
      %v978 = vunpack.c.l.b16 %v579
      %v979 = vunpack.c.l.b16 %v581
      %v980 = vunpack.c.l.b16 %v582
      %v981 = vunpack.c.l.b16 %v584
      %v982 = vunpack.c.l.b16 %v585
      %v983 = vunpack.c.l.b16 %v587
      %v984 = vunpack.c.l.b16 %v588
      %v985 = vunpack.c.l.b16 %v590
      %v986 = vunpack.c.l.b16 %v591
      %v987 = vunpack.c.l.b16 %v593
      %v988 = vunpack.c.l.b16 %v594
      %v989 = vunpack.c.l.b16 %v596
      %v990 = vunpack.c.l.b16 %v597
      %v991 = vpack.c.b16 %v976, %v975
      %v992 = vpack.c.b16 %v978, %v977
      %v993 = vpack.c.b16 %v980, %v979
      %v994 = vpack.c.b16 %v982, %v981
      %v995 = vpack.c.b16 %v984, %v983
      %v996 = vpack.c.b16 %v986, %v985
      %v997 = vpack.c.b16 %v988, %v987
      %v998 = vpack.c.b16 %v990, %v989
      %v1023 = vunpack.c.l.b16 %v602
      %v1024 = vunpack.c.l.b16 %v603
      %v1025 = vunpack.c.l.b16 %v604
      %v1026 = vunpack.c.l.b16 %v605
      %v1027 = vunpack.c.l.b16 %v606
      %v1028 = vunpack.c.l.b16 %v607
      %v1029 = vunpack.c.l.b16 %v608
      %v1030 = vunpack.c.l.b16 %v609
      %v1031 = vunpack.c.l.b16 %v610
      %v1032 = vunpack.c.l.b16 %v611
      %v1033 = vunpack.c.l.b16 %v612
      %v1034 = vunpack.c.l.b16 %v613
      %v1035 = vunpack.c.l.b16 %v614
      %v1036 = vunpack.c.l.b16 %v615
      %v1037 = vunpack.c.l.b16 %v616
      %v1038 = vunpack.c.l.b16 %v617
      %v1039 = vpack.c.b16 %v1024, %v1023
      %v1040 = vpack.c.b16 %v1026, %v1025
      %v1041 = vpack.c.b16 %v1028, %v1027
      %v1042 = vpack.c.b16 %v1030, %v1029
      %v1043 = vpack.c.b16 %v1032, %v1031
      %v1044 = vpack.c.b16 %v1034, %v1033
      %v1045 = vpack.c.b16 %v1036, %v1035
      %v1046 = vpack.c.b16 %v1038, %v1037
      %1055 = vmatpush.bf16.msra.mxu0 %v1046
      %1056 = vmatpush.bf16.msra.mxu0 %v1045
      %1057 = vmatpush.bf16.msra.mxu0 %v1044
      %1058 = vmatpush.bf16.msra.mxu0 %v1043
      %1059 = vmatpush.bf16.msra.mxu0 %v1042
      %1060 = vmatpush.bf16.msra.mxu0 %v1041
      %1061 = vmatpush.bf16.msra.mxu0 %v1040
      %1062 = vmatpush.bf16.msra.mxu0 %v1039
      %1063 = vmatmul.bf16.gmra.mxu0 %v991
      %v1064 = vpop.f32.mrf.mxu0
      %v1065 = vadd.f32 %v920, %v1064
      %v1066 = vpop.f32.mrf.mxu0
      %v1067 = vadd.f32 %v922, %v1066
      %1068 = vmatmul.bf16.gmra.mxu0 %v992
      %v1069 = vpop.f32.mrf.mxu0
      %v1070 = vadd.f32 %v925, %v1069
      %v1071 = vpop.f32.mrf.mxu0
      %v1072 = vadd.f32 %v927, %v1071
      %1073 = vmatmul.bf16.gmra.mxu0 %v993
      %v1074 = vpop.f32.mrf.mxu0
      %v1075 = vadd.f32 %v930, %v1074
      %v1076 = vpop.f32.mrf.mxu0
      %v1077 = vadd.f32 %v932, %v1076
      %1078 = vmatmul.bf16.gmra.mxu0 %v994
      %v1079 = vpop.f32.mrf.mxu0
      %v1080 = vadd.f32 %v935, %v1079
      %v1081 = vpop.f32.mrf.mxu0
      %v1082 = vadd.f32 %v937, %v1081
      %1083 = vmatmul.bf16.gmra.mxu0 %v995
      %v1084 = vpop.f32.mrf.mxu0
      %v1085 = vadd.f32 %v940, %v1084
      %v1086 = vpop.f32.mrf.mxu0
      %v1087 = vadd.f32 %v942, %v1086
      %1088 = vmatmul.bf16.gmra.mxu0 %v996
      %v1089 = vpop.f32.mrf.mxu0
      %v1090 = vadd.f32 %v945, %v1089
      %v1091 = vpop.f32.mrf.mxu0
      %v1092 = vadd.f32 %v947, %v1091
      %1093 = vmatmul.bf16.gmra.mxu0 %v997
      %v1094 = vpop.f32.mrf.mxu0
      %v1095 = vadd.f32 %v950, %v1094
      %v1096 = vpop.f32.mrf.mxu0
      %v1097 = vadd.f32 %v952, %v1096
      %1098 = vmatmul.bf16.gmra.mxu0 %v998
      %v1099 = vpop.f32.mrf.mxu0
      %v1100 = vadd.f32 %v955, %v1099
      %v1101 = vpop.f32.mrf.mxu0
      %v1102 = vadd.f32 %v957, %v1101
      %1103 = vdwg.mxu0
      %vm1112 = vcmask 1042432
      %vm1113 = vcmask 1046532
      %vm1114 = vmor %vm1112, %vm1113
      %v1115 = vrot.slane %v568, 5
      %v1116 = vrot.slane %v1115, 4
      %v1117 = vrot.slane %v569, 5
      %v1118 = vsel %vm1114, %v1116, %v1117
      %v1119 = vrot.slane %v1117, 4
      %v1120 = vrot.slane %v570, 5
      %v1121 = vsel %vm1114, %v1119, %v1120
      %v1122 = vrot.slane %v578, 5
      %v1123 = vrot.slane %v1122, 4
      %v1124 = vrot.slane %v579, 5
      %v1125 = vsel %vm1114, %v1123, %v1124
      %v1126 = vrot.slane %v1124, 4
      %v1127 = vrot.slane %v580, 5
      %v1128 = vsel %vm1114, %v1126, %v1127
      %v1129 = vrot.slane %v581, 5
      %v1130 = vrot.slane %v1129, 4
      %v1131 = vrot.slane %v582, 5
      %v1132 = vsel %vm1114, %v1130, %v1131
      %v1133 = vrot.slane %v1131, 4
      %v1134 = vrot.slane %v583, 5
      %v1135 = vsel %vm1114, %v1133, %v1134
      %v1136 = vrot.slane %v584, 5
      %v1137 = vrot.slane %v1136, 4
      %v1138 = vrot.slane %v585, 5
      %v1139 = vsel %vm1114, %v1137, %v1138
      %v1140 = vrot.slane %v1138, 4
      %v1141 = vrot.slane %v586, 5
      %v1142 = vsel %vm1114, %v1140, %v1141
      %v1143 = vrot.slane %v587, 5
      %v1144 = vrot.slane %v1143, 4
      %v1145 = vrot.slane %v588, 5
      %v1146 = vsel %vm1114, %v1144, %v1145
      %v1147 = vrot.slane %v1145, 4
      %v1148 = vrot.slane %v589, 5
      %v1149 = vsel %vm1114, %v1147, %v1148
      %v1150 = vrot.slane %v590, 5
      %v1151 = vrot.slane %v1150, 4
      %v1152 = vrot.slane %v591, 5
      %v1153 = vsel %vm1114, %v1151, %v1152
      %v1154 = vrot.slane %v1152, 4
      %v1155 = vrot.slane %v592, 5
      %v1156 = vsel %vm1114, %v1154, %v1155
      %v1157 = vrot.slane %v593, 5
      %v1158 = vrot.slane %v1157, 4
      %v1159 = vrot.slane %v594, 5
      %v1160 = vsel %vm1114, %v1158, %v1159
      %v1161 = vrot.slane %v1159, 4
      %v1162 = vrot.slane %v595, 5
      %v1163 = vsel %vm1114, %v1161, %v1162
      %v1164 = vrot.slane %v596, 5
      %v1165 = vrot.slane %v1164, 4
      %v1166 = vrot.slane %v597, 5
      %v1167 = vsel %vm1114, %v1165, %v1166
      %v1168 = vrot.slane %v1166, 4
      %v1169 = vrot.slane %v598, 5
      %v1170 = vsel %vm1114, %v1168, %v1169
      %s1171 = scalar_lea.vmem %s522, 128
      %v1172 = vld [vmem:[%s1171] sm:$0xf]
      %v1173 = vld [vmem:[%s1171 + $0x4] sm:$0xf]
      %v1174 = vld [vmem:[%s1171 + $0x8] sm:$0xf]
      %v1175 = vld [vmem:[%s1171 + $0xc] sm:$0xf]
      %v1176 = vld [vmem:[%s1171 + $0x10] sm:$0xf]
      %v1177 = vld [vmem:[%s1171 + $0x14] sm:$0xf]
      %v1178 = vld [vmem:[%s1171 + $0x18] sm:$0xf]
      %v1179 = vld [vmem:[%s1171 + $0x1c] sm:$0xf]
      %v1180 = vld [vmem:[%s1171 + $0x20] sm:$0xf]
      %v1181 = vld [vmem:[%s1171 + $0x24] sm:$0xf]
      %v1182 = vld [vmem:[%s1171 + $0x28] sm:$0xf]
      %v1183 = vld [vmem:[%s1171 + $0x2c] sm:$0xf]
      %v1184 = vld [vmem:[%s1171 + $0x30] sm:$0xf]
      %v1185 = vld [vmem:[%s1171 + $0x34] sm:$0xf]
      %v1186 = vld [vmem:[%s1171 + $0x38] sm:$0xf]
      %v1187 = vld [vmem:[%s1171 + $0x3c] sm:$0xf]
      %v1188 = vunpack.c.l.b16 %v1118
      %v1189 = vunpack.c.l.b16 %v1121
      %v1190 = vunpack.c.l.b16 %v1125
      %v1191 = vunpack.c.l.b16 %v1128
      %v1192 = vunpack.c.l.b16 %v1132
      %v1193 = vunpack.c.l.b16 %v1135
      %v1194 = vunpack.c.l.b16 %v1139
      %v1195 = vunpack.c.l.b16 %v1142
      %v1196 = vunpack.c.l.b16 %v1146
      %v1197 = vunpack.c.l.b16 %v1149
      %v1198 = vunpack.c.l.b16 %v1153
      %v1199 = vunpack.c.l.b16 %v1156
      %v1200 = vunpack.c.l.b16 %v1160
      %v1201 = vunpack.c.l.b16 %v1163
      %v1202 = vunpack.c.l.b16 %v1167
      %v1203 = vunpack.c.l.b16 %v1170
      %v1204 = vpack.c.b16 %v1189, %v1188
      %v1205 = vpack.c.b16 %v1191, %v1190
      %v1206 = vpack.c.b16 %v1193, %v1192
      %v1207 = vpack.c.b16 %v1195, %v1194
      %v1208 = vpack.c.b16 %v1197, %v1196
      %v1209 = vpack.c.b16 %v1199, %v1198
      %v1210 = vpack.c.b16 %v1201, %v1200
      %v1211 = vpack.c.b16 %v1203, %v1202
      %v1236 = vunpack.c.l.b16 %v1172
      %v1237 = vunpack.c.l.b16 %v1173
      %v1238 = vunpack.c.l.b16 %v1174
      %v1239 = vunpack.c.l.b16 %v1175
      %v1240 = vunpack.c.l.b16 %v1176
      %v1241 = vunpack.c.l.b16 %v1177
      %v1242 = vunpack.c.l.b16 %v1178
      %v1243 = vunpack.c.l.b16 %v1179
      %v1244 = vunpack.c.l.b16 %v1180
      %v1245 = vunpack.c.l.b16 %v1181
      %v1246 = vunpack.c.l.b16 %v1182
      %v1247 = vunpack.c.l.b16 %v1183
      %v1248 = vunpack.c.l.b16 %v1184
      %v1249 = vunpack.c.l.b16 %v1185
      %v1250 = vunpack.c.l.b16 %v1186
      %v1251 = vunpack.c.l.b16 %v1187
      %v1252 = vpack.c.b16 %v1237, %v1236
      %v1253 = vpack.c.b16 %v1239, %v1238
      %v1254 = vpack.c.b16 %v1241, %v1240
      %v1255 = vpack.c.b16 %v1243, %v1242
      %v1256 = vpack.c.b16 %v1245, %v1244
      %v1257 = vpack.c.b16 %v1247, %v1246
      %v1258 = vpack.c.b16 %v1249, %v1248
      %v1259 = vpack.c.b16 %v1251, %v1250
      %1268 = vmatpush.bf16.msra.mxu0 %v1259
      %1269 = vmatpush.bf16.msra.mxu0 %v1258
      %1270 = vmatpush.bf16.msra.mxu0 %v1257
      %1271 = vmatpush.bf16.msra.mxu0 %v1256
      %1272 = vmatpush.bf16.msra.mxu0 %v1255
      %1273 = vmatpush.bf16.msra.mxu0 %v1254
      %1274 = vmatpush.bf16.msra.mxu0 %v1253
      %1275 = vmatpush.bf16.msra.mxu0 %v1252
      %1276 = vmatmul.bf16.gmra.mxu0 %v1204
      %v1277 = vpop.f32.mrf.mxu0
      %v1278 = vadd.f32 0.0, %v1277
      %v1279 = vpop.f32.mrf.mxu0
      %v1280 = vadd.f32 0.0, %v1279
      %1281 = vmatmul.bf16.gmra.mxu0 %v1205
      %v1282 = vpop.f32.mrf.mxu0
      %v1283 = vadd.f32 0.0, %v1282
      %v1284 = vpop.f32.mrf.mxu0
      %v1285 = vadd.f32 0.0, %v1284
      %1286 = vmatmul.bf16.gmra.mxu0 %v1206
      %v1287 = vpop.f32.mrf.mxu0
      %v1288 = vadd.f32 0.0, %v1287
      %v1289 = vpop.f32.mrf.mxu0
      %v1290 = vadd.f32 0.0, %v1289
      %1291 = vmatmul.bf16.gmra.mxu0 %v1207
      %v1292 = vpop.f32.mrf.mxu0
      %v1293 = vadd.f32 0.0, %v1292
      %v1294 = vpop.f32.mrf.mxu0
      %v1295 = vadd.f32 0.0, %v1294
      %1296 = vmatmul.bf16.gmra.mxu0 %v1208
      %v1297 = vpop.f32.mrf.mxu0
      %v1298 = vadd.f32 0.0, %v1297
      %v1299 = vpop.f32.mrf.mxu0
      %v1300 = vadd.f32 0.0, %v1299
      %1301 = vmatmul.bf16.gmra.mxu0 %v1209
      %v1302 = vpop.f32.mrf.mxu0
      %v1303 = vadd.f32 0.0, %v1302
      %v1304 = vpop.f32.mrf.mxu0
      %v1305 = vadd.f32 0.0, %v1304
      %1306 = vmatmul.bf16.gmra.mxu0 %v1210
      %v1307 = vpop.f32.mrf.mxu0
      %v1308 = vadd.f32 0.0, %v1307
      %v1309 = vpop.f32.mrf.mxu0
      %v1310 = vadd.f32 0.0, %v1309
      %1311 = vmatmul.bf16.gmra.mxu0 %v1211
      %v1312 = vpop.f32.mrf.mxu0
      %v1313 = vadd.f32 0.0, %v1312
      %v1314 = vpop.f32.mrf.mxu0
      %v1315 = vadd.f32 0.0, %v1314
      %1316 = vdwg.mxu0
      %v1317 = vadd.f32 %v1065, %v1278
      %v1318 = vadd.f32 %v1067, %v1280
      %v1319 = vadd.f32 %v1070, %v1283
      %v1320 = vadd.f32 %v1072, %v1285
      %v1321 = vadd.f32 %v1075, %v1288
      %v1322 = vadd.f32 %v1077, %v1290
      %v1323 = vadd.f32 %v1080, %v1293
      %v1324 = vadd.f32 %v1082, %v1295
      %v1325 = vadd.f32 %v1085, %v1298
      %v1326 = vadd.f32 %v1087, %v1300
      %v1327 = vadd.f32 %v1090, %v1303
      %v1328 = vadd.f32 %v1092, %v1305
      %v1329 = vadd.f32 %v1095, %v1308
      %v1330 = vadd.f32 %v1097, %v1310
      %v1331 = vadd.f32 %v1100, %v1313
      %v1332 = vadd.f32 %v1102, %v1315
      %s1333 = scalar_lea.vmem %s522, 192
      %v1334 = vld [vmem:[%s1333] sm:$0xf]
      %v1335 = vld [vmem:[%s1333 + $0x4] sm:$0xf]
      %v1336 = vld [vmem:[%s1333 + $0x8] sm:$0xf]
      %v1337 = vld [vmem:[%s1333 + $0xc] sm:$0xf]
      %v1338 = vld [vmem:[%s1333 + $0x10] sm:$0xf]
      %v1339 = vld [vmem:[%s1333 + $0x14] sm:$0xf]
      %v1340 = vld [vmem:[%s1333 + $0x18] sm:$0xf]
      %v1341 = vld [vmem:[%s1333 + $0x1c] sm:$0xf]
      %v1342 = vld [vmem:[%s1333 + $0x20] sm:$0xf]
      %v1343 = vld [vmem:[%s1333 + $0x24] sm:$0xf]
      %v1344 = vld [vmem:[%s1333 + $0x28] sm:$0xf]
      %v1345 = vld [vmem:[%s1333 + $0x2c] sm:$0xf]
      %v1346 = vld [vmem:[%s1333 + $0x30] sm:$0xf]
      %v1347 = vld [vmem:[%s1333 + $0x34] sm:$0xf]
      %v1348 = vld [vmem:[%s1333 + $0x38] sm:$0xf]
      %v1349 = vld [vmem:[%s1333 + $0x3c] sm:$0xf]
      %v1352 = vunpack.c.l.b16 %v599
      %v1353 = vunpack.c.l.b16 %v600
      %v1354 = vpack.c.b16 %v1353, %v1352
      %v1372 = vunpack.c.l.b16 %v1334
      %v1373 = vunpack.c.l.b16 %v1335
      %v1374 = vunpack.c.l.b16 %v1336
      %v1375 = vunpack.c.l.b16 %v1337
      %v1376 = vunpack.c.l.b16 %v1338
      %v1377 = vunpack.c.l.b16 %v1339
      %v1378 = vunpack.c.l.b16 %v1340
      %v1379 = vunpack.c.l.b16 %v1341
      %v1380 = vunpack.c.l.b16 %v1342
      %v1381 = vunpack.c.l.b16 %v1343
      %v1382 = vunpack.c.l.b16 %v1344
      %v1383 = vunpack.c.l.b16 %v1345
      %v1384 = vunpack.c.l.b16 %v1346
      %v1385 = vunpack.c.l.b16 %v1347
      %v1386 = vunpack.c.l.b16 %v1348
      %v1387 = vunpack.c.l.b16 %v1349
      %v1388 = vpack.c.b16 %v1373, %v1372
      %v1389 = vpack.c.b16 %v1375, %v1374
      %v1390 = vpack.c.b16 %v1377, %v1376
      %v1391 = vpack.c.b16 %v1379, %v1378
      %v1392 = vpack.c.b16 %v1381, %v1380
      %v1393 = vpack.c.b16 %v1383, %v1382
      %v1394 = vpack.c.b16 %v1385, %v1384
      %v1395 = vpack.c.b16 %v1387, %v1386
      %1404 = vmatpush.bf16.msra.mxu0 %v1395
      %1405 = vmatpush.bf16.msra.mxu0 %v1394
      %1406 = vmatpush.bf16.msra.mxu0 %v1393
      %1407 = vmatpush.bf16.msra.mxu0 %v1392
      %1408 = vmatpush.bf16.msra.mxu0 %v1391
      %1409 = vmatpush.bf16.msra.mxu0 %v1390
      %1410 = vmatpush.bf16.msra.mxu0 %v1389
      %1411 = vmatpush.bf16.msra.mxu0 %v1388
      %1412 = vmatmul.bf16.gmra.mxu0 %v992
      %v1413 = vpop.f32.mrf.mxu0
      %v1414 = vadd.f32 0.0, %v1413
      %v1415 = vpop.f32.mrf.mxu0
      %v1416 = vadd.f32 0.0, %v1415
      %1417 = vmatmul.bf16.gmra.mxu0 %v993
      %v1418 = vpop.f32.mrf.mxu0
      %v1419 = vadd.f32 0.0, %v1418
      %v1420 = vpop.f32.mrf.mxu0
      %v1421 = vadd.f32 0.0, %v1420
      %1422 = vmatmul.bf16.gmra.mxu0 %v994
      %v1423 = vpop.f32.mrf.mxu0
      %v1424 = vadd.f32 0.0, %v1423
      %v1425 = vpop.f32.mrf.mxu0
      %v1426 = vadd.f32 0.0, %v1425
      %1427 = vmatmul.bf16.gmra.mxu0 %v995
      %v1428 = vpop.f32.mrf.mxu0
      %v1429 = vadd.f32 0.0, %v1428
      %v1430 = vpop.f32.mrf.mxu0
      %v1431 = vadd.f32 0.0, %v1430
      %1432 = vmatmul.bf16.gmra.mxu0 %v996
      %v1433 = vpop.f32.mrf.mxu0
      %v1434 = vadd.f32 0.0, %v1433
      %v1435 = vpop.f32.mrf.mxu0
      %v1436 = vadd.f32 0.0, %v1435
      %1437 = vmatmul.bf16.gmra.mxu0 %v997
      %v1438 = vpop.f32.mrf.mxu0
      %v1439 = vadd.f32 0.0, %v1438
      %v1440 = vpop.f32.mrf.mxu0
      %v1441 = vadd.f32 0.0, %v1440
      %1442 = vmatmul.bf16.gmra.mxu0 %v998
      %v1443 = vpop.f32.mrf.mxu0
      %v1444 = vadd.f32 0.0, %v1443
      %v1445 = vpop.f32.mrf.mxu0
      %v1446 = vadd.f32 0.0, %v1445
      %1447 = vmatmul.bf16.gmra.mxu0 %v1354
      %v1448 = vpop.f32.mrf.mxu0
      %v1449 = vadd.f32 0.0, %v1448
      %v1450 = vpop.f32.mrf.mxu0
      %v1451 = vadd.f32 0.0, %v1450
      %1452 = vdwg.mxu0
      %v1453 = vadd.f32 %v1317, %v1414
      %v1454 = vadd.f32 %v1318, %v1416
      %v1455 = vadd.f32 %v1319, %v1419
      %v1456 = vadd.f32 %v1320, %v1421
      %v1457 = vadd.f32 %v1321, %v1424
      %v1458 = vadd.f32 %v1322, %v1426
      %v1459 = vadd.f32 %v1323, %v1429
      %v1460 = vadd.f32 %v1324, %v1431
      %v1461 = vadd.f32 %v1325, %v1434
      %v1462 = vadd.f32 %v1326, %v1436
      %v1463 = vadd.f32 %v1327, %v1439
      %v1464 = vadd.f32 %v1328, %v1441
      %v1465 = vadd.f32 %v1329, %v1444
      %v1466 = vadd.f32 %v1330, %v1446
      %v1467 = vadd.f32 %v1331, %v1449
      %v1468 = vadd.f32 %v1332, %v1451
      %v1470 = vshrl.u32 %v599, 16
      %v1472 = vrot.slane %v1470, 4
      %v1473 = vshll.u32 %v599, 16
      %v1475 = vrot.slane %v1473, 5
      %v1476 = vor.u32 %v1472, %v1475
      %v1477 = vrot.slane %v1476, 4
      %v1479 = vshll.u32 %v600, 16
      %v1481 = vrot.slane %v1479, 5
      %v1482 = vsel %vm620, %v1477, %v1481
      %v1483 = vshrl.u32 %v600, 16
      %v1485 = vrot.slane %v1483, 4
      %v1486 = vor.u32 %v1485, %v1481
      %v1487 = vrot.slane %v1486, 4
      %v1489 = vshll.u32 %v601, 16
      %v1491 = vrot.slane %v1489, 5
      %v1492 = vsel %vm620, %v1487, %v1491
      %s1493 = scalar_lea.vmem %s522, 256
      %v1494 = vld [vmem:[%s1493] sm:$0xf]
      %v1495 = vld [vmem:[%s1493 + $0x4] sm:$0xf]
      %v1496 = vld [vmem:[%s1493 + $0x8] sm:$0xf]
      %v1497 = vld [vmem:[%s1493 + $0xc] sm:$0xf]
      %v1498 = vld [vmem:[%s1493 + $0x10] sm:$0xf]
      %v1499 = vld [vmem:[%s1493 + $0x14] sm:$0xf]
      %v1500 = vld [vmem:[%s1493 + $0x18] sm:$0xf]
      %v1501 = vld [vmem:[%s1493 + $0x1c] sm:$0xf]
      %v1502 = vld [vmem:[%s1493 + $0x20] sm:$0xf]
      %v1503 = vld [vmem:[%s1493 + $0x24] sm:$0xf]
      %v1504 = vld [vmem:[%s1493 + $0x28] sm:$0xf]
      %v1505 = vld [vmem:[%s1493 + $0x2c] sm:$0xf]
      %v1506 = vld [vmem:[%s1493 + $0x30] sm:$0xf]
      %v1507 = vld [vmem:[%s1493 + $0x34] sm:$0xf]
      %v1508 = vld [vmem:[%s1493 + $0x38] sm:$0xf]
      %v1509 = vld [vmem:[%s1493 + $0x3c] sm:$0xf]
      %v1510 = vunpack.c.l.b16 %v1482
      %v1511 = vunpack.c.l.b16 %v1492
      %v1512 = vpack.c.b16 %v1511, %v1510
      %v1530 = vunpack.c.l.b16 %v1494
      %v1531 = vunpack.c.l.b16 %v1495
      %v1532 = vunpack.c.l.b16 %v1496
      %v1533 = vunpack.c.l.b16 %v1497
      %v1534 = vunpack.c.l.b16 %v1498
      %v1535 = vunpack.c.l.b16 %v1499
      %v1536 = vunpack.c.l.b16 %v1500
      %v1537 = vunpack.c.l.b16 %v1501
      %v1538 = vunpack.c.l.b16 %v1502
      %v1539 = vunpack.c.l.b16 %v1503
      %v1540 = vunpack.c.l.b16 %v1504
      %v1541 = vunpack.c.l.b16 %v1505
      %v1542 = vunpack.c.l.b16 %v1506
      %v1543 = vunpack.c.l.b16 %v1507
      %v1544 = vunpack.c.l.b16 %v1508
      %v1545 = vunpack.c.l.b16 %v1509
      %v1546 = vpack.c.b16 %v1531, %v1530
      %v1547 = vpack.c.b16 %v1533, %v1532
      %v1548 = vpack.c.b16 %v1535, %v1534
      %v1549 = vpack.c.b16 %v1537, %v1536
      %v1550 = vpack.c.b16 %v1539, %v1538
      %v1551 = vpack.c.b16 %v1541, %v1540
      %v1552 = vpack.c.b16 %v1543, %v1542
      %v1553 = vpack.c.b16 %v1545, %v1544
      %1562 = vmatpush.bf16.msra.mxu0 %v1553
      %1563 = vmatpush.bf16.msra.mxu0 %v1552
      %1564 = vmatpush.bf16.msra.mxu0 %v1551
      %1565 = vmatpush.bf16.msra.mxu0 %v1550
      %1566 = vmatpush.bf16.msra.mxu0 %v1549
      %1567 = vmatpush.bf16.msra.mxu0 %v1548
      %1568 = vmatpush.bf16.msra.mxu0 %v1547
      %1569 = vmatpush.bf16.msra.mxu0 %v1546
      %1570 = vmatmul.bf16.gmra.mxu0 %v847
      %v1571 = vpop.f32.mrf.mxu0
      %v1572 = vadd.f32 0.0, %v1571
      %v1573 = vpop.f32.mrf.mxu0
      %v1574 = vadd.f32 0.0, %v1573
      %1575 = vmatmul.bf16.gmra.mxu0 %v848
      %v1576 = vpop.f32.mrf.mxu0
      %v1577 = vadd.f32 0.0, %v1576
      %v1578 = vpop.f32.mrf.mxu0
      %v1579 = vadd.f32 0.0, %v1578
      %1580 = vmatmul.bf16.gmra.mxu0 %v849
      %v1581 = vpop.f32.mrf.mxu0
      %v1582 = vadd.f32 0.0, %v1581
      %v1583 = vpop.f32.mrf.mxu0
      %v1584 = vadd.f32 0.0, %v1583
      %1585 = vmatmul.bf16.gmra.mxu0 %v850
      %v1586 = vpop.f32.mrf.mxu0
      %v1587 = vadd.f32 0.0, %v1586
      %v1588 = vpop.f32.mrf.mxu0
      %v1589 = vadd.f32 0.0, %v1588
      %1590 = vmatmul.bf16.gmra.mxu0 %v851
      %v1591 = vpop.f32.mrf.mxu0
      %v1592 = vadd.f32 0.0, %v1591
      %v1593 = vpop.f32.mrf.mxu0
      %v1594 = vadd.f32 0.0, %v1593
      %1595 = vmatmul.bf16.gmra.mxu0 %v852
      %v1596 = vpop.f32.mrf.mxu0
      %v1597 = vadd.f32 0.0, %v1596
      %v1598 = vpop.f32.mrf.mxu0
      %v1599 = vadd.f32 0.0, %v1598
      %1600 = vmatmul.bf16.gmra.mxu0 %v853
      %v1601 = vpop.f32.mrf.mxu0
      %v1602 = vadd.f32 0.0, %v1601
      %v1603 = vpop.f32.mrf.mxu0
      %v1604 = vadd.f32 0.0, %v1603
      %1605 = vmatmul.bf16.gmra.mxu0 %v1512
      %v1606 = vpop.f32.mrf.mxu0
      %v1607 = vadd.f32 0.0, %v1606
      %v1608 = vpop.f32.mrf.mxu0
      %v1609 = vadd.f32 0.0, %v1608
      %1610 = vdwg.mxu0
      %v1611 = vadd.f32 %v1453, %v1572
      %v1612 = vadd.f32 %v1454, %v1574
      %v1613 = vadd.f32 %v1455, %v1577
      %v1614 = vadd.f32 %v1456, %v1579
      %v1615 = vadd.f32 %v1457, %v1582
      %v1616 = vadd.f32 %v1458, %v1584
      %v1617 = vadd.f32 %v1459, %v1587
      %v1618 = vadd.f32 %v1460, %v1589
      %v1619 = vadd.f32 %v1461, %v1592
      %v1620 = vadd.f32 %v1462, %v1594
      %v1621 = vadd.f32 %v1463, %v1597
      %v1622 = vadd.f32 %v1464, %v1599
      %v1623 = vadd.f32 %v1465, %v1602
      %v1624 = vadd.f32 %v1466, %v1604
      %v1625 = vadd.f32 %v1467, %v1607
      %v1626 = vadd.f32 %v1468, %v1609
      %v1628 = vrot.slane %v599, 5
      %v1629 = vrot.slane %v1628, 4
      %v1630 = vrot.slane %v600, 5
      %v1631 = vsel %vm1114, %v1629, %v1630
      %v1632 = vrot.slane %v1630, 4
      %v1633 = vrot.slane %v601, 5
      %v1634 = vsel %vm1114, %v1632, %v1633
      %s1635 = scalar_lea.vmem %s522, 320
      %v1636 = vld [vmem:[%s1635] sm:$0xf]
      %v1637 = vld [vmem:[%s1635 + $0x4] sm:$0xf]
      %v1638 = vld [vmem:[%s1635 + $0x8] sm:$0xf]
      %v1639 = vld [vmem:[%s1635 + $0xc] sm:$0xf]
      %v1640 = vld [vmem:[%s1635 + $0x10] sm:$0xf]
      %v1641 = vld [vmem:[%s1635 + $0x14] sm:$0xf]
      %v1642 = vld [vmem:[%s1635 + $0x18] sm:$0xf]
      %v1643 = vld [vmem:[%s1635 + $0x1c] sm:$0xf]
      %v1644 = vld [vmem:[%s1635 + $0x20] sm:$0xf]
      %v1645 = vld [vmem:[%s1635 + $0x24] sm:$0xf]
      %v1646 = vld [vmem:[%s1635 + $0x28] sm:$0xf]
      %v1647 = vld [vmem:[%s1635 + $0x2c] sm:$0xf]
      %v1648 = vld [vmem:[%s1635 + $0x30] sm:$0xf]
      %v1649 = vld [vmem:[%s1635 + $0x34] sm:$0xf]
      %v1650 = vld [vmem:[%s1635 + $0x38] sm:$0xf]
      %v1651 = vld [vmem:[%s1635 + $0x3c] sm:$0xf]
      %v1652 = vunpack.c.l.b16 %v1631
      %v1653 = vunpack.c.l.b16 %v1634
      %v1654 = vpack.c.b16 %v1653, %v1652
      %v1672 = vunpack.c.l.b16 %v1636
      %v1673 = vunpack.c.l.b16 %v1637
      %v1674 = vunpack.c.l.b16 %v1638
      %v1675 = vunpack.c.l.b16 %v1639
      %v1676 = vunpack.c.l.b16 %v1640
      %v1677 = vunpack.c.l.b16 %v1641
      %v1678 = vunpack.c.l.b16 %v1642
      %v1679 = vunpack.c.l.b16 %v1643
      %v1680 = vunpack.c.l.b16 %v1644
      %v1681 = vunpack.c.l.b16 %v1645
      %v1682 = vunpack.c.l.b16 %v1646
      %v1683 = vunpack.c.l.b16 %v1647
      %v1684 = vunpack.c.l.b16 %v1648
      %v1685 = vunpack.c.l.b16 %v1649
      %v1686 = vunpack.c.l.b16 %v1650
      %v1687 = vunpack.c.l.b16 %v1651
      %v1688 = vpack.c.b16 %v1673, %v1672
      %v1689 = vpack.c.b16 %v1675, %v1674
      %v1690 = vpack.c.b16 %v1677, %v1676
      %v1691 = vpack.c.b16 %v1679, %v1678
      %v1692 = vpack.c.b16 %v1681, %v1680
      %v1693 = vpack.c.b16 %v1683, %v1682
      %v1694 = vpack.c.b16 %v1685, %v1684
      %v1695 = vpack.c.b16 %v1687, %v1686
      %1704 = vmatpush.bf16.msra.mxu0 %v1695
      %1705 = vmatpush.bf16.msra.mxu0 %v1694
      %1706 = vmatpush.bf16.msra.mxu0 %v1693
      %1707 = vmatpush.bf16.msra.mxu0 %v1692
      %1708 = vmatpush.bf16.msra.mxu0 %v1691
      %1709 = vmatpush.bf16.msra.mxu0 %v1690
      %1710 = vmatpush.bf16.msra.mxu0 %v1689
      %1711 = vmatpush.bf16.msra.mxu0 %v1688
      %1712 = vmatmul.bf16.gmra.mxu0 %v1205
      %v1713 = vpop.f32.mrf.mxu0
      %v1714 = vadd.f32 0.0, %v1713
      %v1715 = vpop.f32.mrf.mxu0
      %v1716 = vadd.f32 0.0, %v1715
      %1717 = vmatmul.bf16.gmra.mxu0 %v1206
      %v1718 = vpop.f32.mrf.mxu0
      %v1719 = vadd.f32 0.0, %v1718
      %v1720 = vpop.f32.mrf.mxu0
      %v1721 = vadd.f32 0.0, %v1720
      %1722 = vmatmul.bf16.gmra.mxu0 %v1207
      %v1723 = vpop.f32.mrf.mxu0
      %v1724 = vadd.f32 0.0, %v1723
      %v1725 = vpop.f32.mrf.mxu0
      %v1726 = vadd.f32 0.0, %v1725
      %1727 = vmatmul.bf16.gmra.mxu0 %v1208
      %v1728 = vpop.f32.mrf.mxu0
      %v1729 = vadd.f32 0.0, %v1728
      %v1730 = vpop.f32.mrf.mxu0
      %v1731 = vadd.f32 0.0, %v1730
      %1732 = vmatmul.bf16.gmra.mxu0 %v1209
      %v1733 = vpop.f32.mrf.mxu0
      %v1734 = vadd.f32 0.0, %v1733
      %v1735 = vpop.f32.mrf.mxu0
      %v1736 = vadd.f32 0.0, %v1735
      %1737 = vmatmul.bf16.gmra.mxu0 %v1210
      %v1738 = vpop.f32.mrf.mxu0
      %v1739 = vadd.f32 0.0, %v1738
      %v1740 = vpop.f32.mrf.mxu0
      %v1741 = vadd.f32 0.0, %v1740
      %1742 = vmatmul.bf16.gmra.mxu0 %v1211
      %v1743 = vpop.f32.mrf.mxu0
      %v1744 = vadd.f32 0.0, %v1743
      %v1745 = vpop.f32.mrf.mxu0
      %v1746 = vadd.f32 0.0, %v1745
      %1747 = vmatmul.bf16.gmra.mxu0 %v1654
      %v1748 = vpop.f32.mrf.mxu0
      %v1749 = vadd.f32 0.0, %v1748
      %v1750 = vpop.f32.mrf.mxu0
      %v1751 = vadd.f32 0.0, %v1750
      %1752 = vdwg.mxu0
      %v1753 = vadd.f32 %v1611, %v1714
      %v1754 = vadd.f32 %v1612, %v1716
      %v1755 = vadd.f32 %v1613, %v1719
      %v1756 = vadd.f32 %v1614, %v1721
      %v1757 = vadd.f32 %v1615, %v1724
      %v1758 = vadd.f32 %v1616, %v1726
      %v1759 = vadd.f32 %v1617, %v1729
      %v1760 = vadd.f32 %v1618, %v1731
      %v1761 = vadd.f32 %v1619, %v1734
      %v1762 = vadd.f32 %v1620, %v1736
      %v1763 = vadd.f32 %v1621, %v1739
      %v1764 = vadd.f32 %v1622, %v1741
      %v1765 = vadd.f32 %v1623, %v1744
      %v1766 = vadd.f32 %v1624, %v1746
      %v1767 = vadd.f32 %v1625, %v1749
      %v1768 = vadd.f32 %v1626, %v1751
      %s1769 = scalar_lea.vmem %s522, 384
      %v1770 = vld [vmem:[%s1769] sm:$0xf]
      %v1771 = vld [vmem:[%s1769 + $0x4] sm:$0xf]
      %v1772 = vld [vmem:[%s1769 + $0x8] sm:$0xf]
      %v1773 = vld [vmem:[%s1769 + $0xc] sm:$0xf]
      %v1774 = vld [vmem:[%s1769 + $0x10] sm:$0xf]
      %v1775 = vld [vmem:[%s1769 + $0x14] sm:$0xf]
      %v1776 = vld [vmem:[%s1769 + $0x18] sm:$0xf]
      %v1777 = vld [vmem:[%s1769 + $0x1c] sm:$0xf]
      %v1778 = vld [vmem:[%s1769 + $0x20] sm:$0xf]
      %v1779 = vld [vmem:[%s1769 + $0x24] sm:$0xf]
      %v1780 = vld [vmem:[%s1769 + $0x28] sm:$0xf]
      %v1781 = vld [vmem:[%s1769 + $0x2c] sm:$0xf]
      %v1782 = vld [vmem:[%s1769 + $0x30] sm:$0xf]
      %v1783 = vld [vmem:[%s1769 + $0x34] sm:$0xf]
      %v1784 = vld [vmem:[%s1769 + $0x38] sm:$0xf]
      %v1785 = vld [vmem:[%s1769 + $0x3c] sm:$0xf]
      %v1788 = vunpack.c.l.b16 %v575
      %v1789 = vunpack.c.l.b16 %v576
      %v1790 = vpack.c.b16 %v1789, %v1788
      %v1808 = vunpack.c.l.b16 %v1770
      %v1809 = vunpack.c.l.b16 %v1771
      %v1810 = vunpack.c.l.b16 %v1772
      %v1811 = vunpack.c.l.b16 %v1773
      %v1812 = vunpack.c.l.b16 %v1774
      %v1813 = vunpack.c.l.b16 %v1775
      %v1814 = vunpack.c.l.b16 %v1776
      %v1815 = vunpack.c.l.b16 %v1777
      %v1816 = vunpack.c.l.b16 %v1778
      %v1817 = vunpack.c.l.b16 %v1779
      %v1818 = vunpack.c.l.b16 %v1780
      %v1819 = vunpack.c.l.b16 %v1781
      %v1820 = vunpack.c.l.b16 %v1782
      %v1821 = vunpack.c.l.b16 %v1783
      %v1822 = vunpack.c.l.b16 %v1784
      %v1823 = vunpack.c.l.b16 %v1785
      %v1824 = vpack.c.b16 %v1809, %v1808
      %v1825 = vpack.c.b16 %v1811, %v1810
      %v1826 = vpack.c.b16 %v1813, %v1812
      %v1827 = vpack.c.b16 %v1815, %v1814
      %v1828 = vpack.c.b16 %v1817, %v1816
      %v1829 = vpack.c.b16 %v1819, %v1818
      %v1830 = vpack.c.b16 %v1821, %v1820
      %v1831 = vpack.c.b16 %v1823, %v1822
      %1840 = vmatpush.bf16.msra.mxu0 %v1831
      %1841 = vmatpush.bf16.msra.mxu0 %v1830
      %1842 = vmatpush.bf16.msra.mxu0 %v1829
      %1843 = vmatpush.bf16.msra.mxu0 %v1828
      %1844 = vmatpush.bf16.msra.mxu0 %v1827
      %1845 = vmatpush.bf16.msra.mxu0 %v1826
      %1846 = vmatpush.bf16.msra.mxu0 %v1825
      %1847 = vmatpush.bf16.msra.mxu0 %v1824
      %1848 = vmatmul.bf16.gmra.mxu0 %v993
      %v1849 = vpop.f32.mrf.mxu0
      %v1850 = vadd.f32 0.0, %v1849
      %v1851 = vpop.f32.mrf.mxu0
      %v1852 = vadd.f32 0.0, %v1851
      %1853 = vmatmul.bf16.gmra.mxu0 %v994
      %v1854 = vpop.f32.mrf.mxu0
      %v1855 = vadd.f32 0.0, %v1854
      %v1856 = vpop.f32.mrf.mxu0
      %v1857 = vadd.f32 0.0, %v1856
      %1858 = vmatmul.bf16.gmra.mxu0 %v995
      %v1859 = vpop.f32.mrf.mxu0
      %v1860 = vadd.f32 0.0, %v1859
      %v1861 = vpop.f32.mrf.mxu0
      %v1862 = vadd.f32 0.0, %v1861
      %1863 = vmatmul.bf16.gmra.mxu0 %v996
      %v1864 = vpop.f32.mrf.mxu0
      %v1865 = vadd.f32 0.0, %v1864
      %v1866 = vpop.f32.mrf.mxu0
      %v1867 = vadd.f32 0.0, %v1866
      %1868 = vmatmul.bf16.gmra.mxu0 %v997
      %v1869 = vpop.f32.mrf.mxu0
      %v1870 = vadd.f32 0.0, %v1869
      %v1871 = vpop.f32.mrf.mxu0
      %v1872 = vadd.f32 0.0, %v1871
      %1873 = vmatmul.bf16.gmra.mxu0 %v998
      %v1874 = vpop.f32.mrf.mxu0
      %v1875 = vadd.f32 0.0, %v1874
      %v1876 = vpop.f32.mrf.mxu0
      %v1877 = vadd.f32 0.0, %v1876
      %1878 = vmatmul.bf16.gmra.mxu0 %v1354
      %v1879 = vpop.f32.mrf.mxu0
      %v1880 = vadd.f32 0.0, %v1879
      %v1881 = vpop.f32.mrf.mxu0
      %v1882 = vadd.f32 0.0, %v1881
      %1883 = vmatmul.bf16.gmra.mxu0 %v1790
      %v1884 = vpop.f32.mrf.mxu0
      %v1885 = vadd.f32 0.0, %v1884
      %v1886 = vpop.f32.mrf.mxu0
      %v1887 = vadd.f32 0.0, %v1886
      %1888 = vdwg.mxu0
      %v1889 = vadd.f32 %v1753, %v1850
      %v1890 = vadd.f32 %v1754, %v1852
      %v1891 = vadd.f32 %v1755, %v1855
      %v1892 = vadd.f32 %v1756, %v1857
      %v1893 = vadd.f32 %v1757, %v1860
      %v1894 = vadd.f32 %v1758, %v1862
      %v1895 = vadd.f32 %v1759, %v1865
      %v1896 = vadd.f32 %v1760, %v1867
      %v1897 = vadd.f32 %v1761, %v1870
      %v1898 = vadd.f32 %v1762, %v1872
      %v1899 = vadd.f32 %v1763, %v1875
      %v1900 = vadd.f32 %v1764, %v1877
      %v1901 = vadd.f32 %v1765, %v1880
      %v1902 = vadd.f32 %v1766, %v1882
      %v1903 = vadd.f32 %v1767, %v1885
      %v1904 = vadd.f32 %v1768, %v1887
      %v1906 = vshrl.u32 %v575, 16
      %v1908 = vrot.slane %v1906, 4
      %v1909 = vshll.u32 %v575, 16
      %v1911 = vrot.slane %v1909, 5
      %v1912 = vor.u32 %v1908, %v1911
      %v1913 = vrot.slane %v1912, 4
      %v1915 = vshll.u32 %v576, 16
      %v1917 = vrot.slane %v1915, 5
      %v1918 = vsel %vm620, %v1913, %v1917
      %v1919 = vshrl.u32 %v576, 16
      %v1921 = vrot.slane %v1919, 4
      %v1922 = vor.u32 %v1921, %v1917
      %v1923 = vrot.slane %v1922, 4
      %v1925 = vshll.u32 %v577, 16
      %v1927 = vrot.slane %v1925, 5
      %v1928 = vsel %vm620, %v1923, %v1927
      %s1929 = scalar_lea.vmem %s522, 448
      %v1930 = vld [vmem:[%s1929] sm:$0xf]
      %v1931 = vld [vmem:[%s1929 + $0x4] sm:$0xf]
      %v1932 = vld [vmem:[%s1929 + $0x8] sm:$0xf]
      %v1933 = vld [vmem:[%s1929 + $0xc] sm:$0xf]
      %v1934 = vld [vmem:[%s1929 + $0x10] sm:$0xf]
      %v1935 = vld [vmem:[%s1929 + $0x14] sm:$0xf]
      %v1936 = vld [vmem:[%s1929 + $0x18] sm:$0xf]
      %v1937 = vld [vmem:[%s1929 + $0x1c] sm:$0xf]
      %v1938 = vld [vmem:[%s1929 + $0x20] sm:$0xf]
      %v1939 = vld [vmem:[%s1929 + $0x24] sm:$0xf]
      %v1940 = vld [vmem:[%s1929 + $0x28] sm:$0xf]
      %v1941 = vld [vmem:[%s1929 + $0x2c] sm:$0xf]
      %v1942 = vld [vmem:[%s1929 + $0x30] sm:$0xf]
      %v1943 = vld [vmem:[%s1929 + $0x34] sm:$0xf]
      %v1944 = vld [vmem:[%s1929 + $0x38] sm:$0xf]
      %v1945 = vld [vmem:[%s1929 + $0x3c] sm:$0xf]
      %v1946 = vunpack.c.l.b16 %v1918
      %v1947 = vunpack.c.l.b16 %v1928
      %v1948 = vpack.c.b16 %v1947, %v1946
      %v1966 = vunpack.c.l.b16 %v1930
      %v1967 = vunpack.c.l.b16 %v1931
      %v1968 = vunpack.c.l.b16 %v1932
      %v1969 = vunpack.c.l.b16 %v1933
      %v1970 = vunpack.c.l.b16 %v1934
      %v1971 = vunpack.c.l.b16 %v1935
      %v1972 = vunpack.c.l.b16 %v1936
      %v1973 = vunpack.c.l.b16 %v1937
      %v1974 = vunpack.c.l.b16 %v1938
      %v1975 = vunpack.c.l.b16 %v1939
      %v1976 = vunpack.c.l.b16 %v1940
      %v1977 = vunpack.c.l.b16 %v1941
      %v1978 = vunpack.c.l.b16 %v1942
      %v1979 = vunpack.c.l.b16 %v1943
      %v1980 = vunpack.c.l.b16 %v1944
      %v1981 = vunpack.c.l.b16 %v1945
      %v1982 = vpack.c.b16 %v1967, %v1966
      %v1983 = vpack.c.b16 %v1969, %v1968
      %v1984 = vpack.c.b16 %v1971, %v1970
      %v1985 = vpack.c.b16 %v1973, %v1972
      %v1986 = vpack.c.b16 %v1975, %v1974
      %v1987 = vpack.c.b16 %v1977, %v1976
      %v1988 = vpack.c.b16 %v1979, %v1978
      %v1989 = vpack.c.b16 %v1981, %v1980
      %1998 = vmatpush.bf16.msra.mxu0 %v1989
      %1999 = vmatpush.bf16.msra.mxu0 %v1988
      %2000 = vmatpush.bf16.msra.mxu0 %v1987
      %2001 = vmatpush.bf16.msra.mxu0 %v1986
      %2002 = vmatpush.bf16.msra.mxu0 %v1985
      %2003 = vmatpush.bf16.msra.mxu0 %v1984
      %2004 = vmatpush.bf16.msra.mxu0 %v1983
      %2005 = vmatpush.bf16.msra.mxu0 %v1982
      %2006 = vmatmul.bf16.gmra.mxu0 %v848
      %v2007 = vpop.f32.mrf.mxu0
      %v2008 = vadd.f32 0.0, %v2007
      %v2009 = vpop.f32.mrf.mxu0
      %v2010 = vadd.f32 0.0, %v2009
      %2011 = vmatmul.bf16.gmra.mxu0 %v849
      %v2012 = vpop.f32.mrf.mxu0
      %v2013 = vadd.f32 0.0, %v2012
      %v2014 = vpop.f32.mrf.mxu0
      %v2015 = vadd.f32 0.0, %v2014
      %2016 = vmatmul.bf16.gmra.mxu0 %v850
      %v2017 = vpop.f32.mrf.mxu0
      %v2018 = vadd.f32 0.0, %v2017
      %v2019 = vpop.f32.mrf.mxu0
      %v2020 = vadd.f32 0.0, %v2019
      %2021 = vmatmul.bf16.gmra.mxu0 %v851
      %v2022 = vpop.f32.mrf.mxu0
      %v2023 = vadd.f32 0.0, %v2022
      %v2024 = vpop.f32.mrf.mxu0
      %v2025 = vadd.f32 0.0, %v2024
      %2026 = vmatmul.bf16.gmra.mxu0 %v852
      %v2027 = vpop.f32.mrf.mxu0
      %v2028 = vadd.f32 0.0, %v2027
      %v2029 = vpop.f32.mrf.mxu0
      %v2030 = vadd.f32 0.0, %v2029
      %2031 = vmatmul.bf16.gmra.mxu0 %v853
      %v2032 = vpop.f32.mrf.mxu0
      %v2033 = vadd.f32 0.0, %v2032
      %v2034 = vpop.f32.mrf.mxu0
      %v2035 = vadd.f32 0.0, %v2034
      %2036 = vmatmul.bf16.gmra.mxu0 %v1512
      %v2037 = vpop.f32.mrf.mxu0
      %v2038 = vadd.f32 0.0, %v2037
      %v2039 = vpop.f32.mrf.mxu0
      %v2040 = vadd.f32 0.0, %v2039
      %2041 = vmatmul.bf16.gmra.mxu0 %v1948
      %v2042 = vpop.f32.mrf.mxu0
      %v2043 = vadd.f32 0.0, %v2042
      %v2044 = vpop.f32.mrf.mxu0
      %v2045 = vadd.f32 0.0, %v2044
      %2046 = vdwg.mxu0
      %v2047 = vadd.f32 %v1889, %v2008
      %v2048 = vadd.f32 %v1890, %v2010
      %v2049 = vadd.f32 %v1891, %v2013
      %v2050 = vadd.f32 %v1892, %v2015
      %v2051 = vadd.f32 %v1893, %v2018
      %v2052 = vadd.f32 %v1894, %v2020
      %v2053 = vadd.f32 %v1895, %v2023
      %v2054 = vadd.f32 %v1896, %v2025
      %v2055 = vadd.f32 %v1897, %v2028
      %v2056 = vadd.f32 %v1898, %v2030
      %v2057 = vadd.f32 %v1899, %v2033
      %v2058 = vadd.f32 %v1900, %v2035
      %v2059 = vadd.f32 %v1901, %v2038
      %v2060 = vadd.f32 %v1902, %v2040
      %v2061 = vadd.f32 %v1903, %v2043
      %v2062 = vadd.f32 %v1904, %v2045
      %v2064 = vrot.slane %v575, 5
      %v2065 = vrot.slane %v2064, 4
      %v2066 = vrot.slane %v576, 5
      %v2067 = vsel %vm1114, %v2065, %v2066
      %v2068 = vrot.slane %v2066, 4
      %v2069 = vrot.slane %v577, 5
      %v2070 = vsel %vm1114, %v2068, %v2069
      %s2071 = scalar_lea.vmem %s522, 512
      %v2072 = vld [vmem:[%s2071] sm:$0xf]
      %v2073 = vld [vmem:[%s2071 + $0x4] sm:$0xf]
      %v2074 = vld [vmem:[%s2071 + $0x8] sm:$0xf]
      %v2075 = vld [vmem:[%s2071 + $0xc] sm:$0xf]
      %v2076 = vld [vmem:[%s2071 + $0x10] sm:$0xf]
      %v2077 = vld [vmem:[%s2071 + $0x14] sm:$0xf]
      %v2078 = vld [vmem:[%s2071 + $0x18] sm:$0xf]
      %v2079 = vld [vmem:[%s2071 + $0x1c] sm:$0xf]
      %v2080 = vld [vmem:[%s2071 + $0x20] sm:$0xf]
      %v2081 = vld [vmem:[%s2071 + $0x24] sm:$0xf]
      %v2082 = vld [vmem:[%s2071 + $0x28] sm:$0xf]
      %v2083 = vld [vmem:[%s2071 + $0x2c] sm:$0xf]
      %v2084 = vld [vmem:[%s2071 + $0x30] sm:$0xf]
      %v2085 = vld [vmem:[%s2071 + $0x34] sm:$0xf]
      %v2086 = vld [vmem:[%s2071 + $0x38] sm:$0xf]
      %v2087 = vld [vmem:[%s2071 + $0x3c] sm:$0xf]
      %v2088 = vunpack.c.l.b16 %v2067
      %v2089 = vunpack.c.l.b16 %v2070
      %v2090 = vpack.c.b16 %v2089, %v2088
      %v2108 = vunpack.c.l.b16 %v2072
      %v2109 = vunpack.c.l.b16 %v2073
      %v2110 = vunpack.c.l.b16 %v2074
      %v2111 = vunpack.c.l.b16 %v2075
      %v2112 = vunpack.c.l.b16 %v2076
      %v2113 = vunpack.c.l.b16 %v2077
      %v2114 = vunpack.c.l.b16 %v2078
      %v2115 = vunpack.c.l.b16 %v2079
      %v2116 = vunpack.c.l.b16 %v2080
      %v2117 = vunpack.c.l.b16 %v2081
      %v2118 = vunpack.c.l.b16 %v2082
      %v2119 = vunpack.c.l.b16 %v2083
      %v2120 = vunpack.c.l.b16 %v2084
      %v2121 = vunpack.c.l.b16 %v2085
      %v2122 = vunpack.c.l.b16 %v2086
      %v2123 = vunpack.c.l.b16 %v2087
      %v2124 = vpack.c.b16 %v2109, %v2108
      %v2125 = vpack.c.b16 %v2111, %v2110
      %v2126 = vpack.c.b16 %v2113, %v2112
      %v2127 = vpack.c.b16 %v2115, %v2114
      %v2128 = vpack.c.b16 %v2117, %v2116
      %v2129 = vpack.c.b16 %v2119, %v2118
      %v2130 = vpack.c.b16 %v2121, %v2120
      %v2131 = vpack.c.b16 %v2123, %v2122
      %2140 = vmatpush.bf16.msra.mxu0 %v2131
      %2141 = vmatpush.bf16.msra.mxu0 %v2130
      %2142 = vmatpush.bf16.msra.mxu0 %v2129
      %2143 = vmatpush.bf16.msra.mxu0 %v2128
      %2144 = vmatpush.bf16.msra.mxu0 %v2127
      %2145 = vmatpush.bf16.msra.mxu0 %v2126
      %2146 = vmatpush.bf16.msra.mxu0 %v2125
      %2147 = vmatpush.bf16.msra.mxu0 %v2124
      %2148 = vmatmul.bf16.gmra.mxu0 %v1206
      %v2149 = vpop.f32.mrf.mxu0
      %v2150 = vadd.f32 0.0, %v2149
      %v2151 = vpop.f32.mrf.mxu0
      %v2152 = vadd.f32 0.0, %v2151
      %2153 = vmatmul.bf16.gmra.mxu0 %v1207
      %v2154 = vpop.f32.mrf.mxu0
      %v2155 = vadd.f32 0.0, %v2154
      %v2156 = vpop.f32.mrf.mxu0
      %v2157 = vadd.f32 0.0, %v2156
      %2158 = vmatmul.bf16.gmra.mxu0 %v1208
      %v2159 = vpop.f32.mrf.mxu0
      %v2160 = vadd.f32 0.0, %v2159
      %v2161 = vpop.f32.mrf.mxu0
      %v2162 = vadd.f32 0.0, %v2161
      %2163 = vmatmul.bf16.gmra.mxu0 %v1209
      %v2164 = vpop.f32.mrf.mxu0
      %v2165 = vadd.f32 0.0, %v2164
      %v2166 = vpop.f32.mrf.mxu0
      %v2167 = vadd.f32 0.0, %v2166
      %2168 = vmatmul.bf16.gmra.mxu0 %v1210
      %v2169 = vpop.f32.mrf.mxu0
      %v2170 = vadd.f32 0.0, %v2169
      %v2171 = vpop.f32.mrf.mxu0
      %v2172 = vadd.f32 0.0, %v2171
      %2173 = vmatmul.bf16.gmra.mxu0 %v1211
      %v2174 = vpop.f32.mrf.mxu0
      %v2175 = vadd.f32 0.0, %v2174
      %v2176 = vpop.f32.mrf.mxu0
      %v2177 = vadd.f32 0.0, %v2176
      %2178 = vmatmul.bf16.gmra.mxu0 %v1654
      %v2179 = vpop.f32.mrf.mxu0
      %v2180 = vadd.f32 0.0, %v2179
      %v2181 = vpop.f32.mrf.mxu0
      %v2182 = vadd.f32 0.0, %v2181
      %2183 = vmatmul.bf16.gmra.mxu0 %v2090
      %v2184 = vpop.f32.mrf.mxu0
      %v2185 = vadd.f32 0.0, %v2184
      %v2186 = vpop.f32.mrf.mxu0
      %v2187 = vadd.f32 0.0, %v2186
      %2188 = vdwg.mxu0
      %v2189 = vadd.f32 %v2047, %v2150
      %v2190 = vadd.f32 %v2048, %v2152
      %v2191 = vadd.f32 %v2049, %v2155
      %v2192 = vadd.f32 %v2050, %v2157
      %v2193 = vadd.f32 %v2051, %v2160
      %v2194 = vadd.f32 %v2052, %v2162
      %v2195 = vadd.f32 %v2053, %v2165
      %v2196 = vadd.f32 %v2054, %v2167
      %v2197 = vadd.f32 %v2055, %v2170
      %v2198 = vadd.f32 %v2056, %v2172
      %v2199 = vadd.f32 %v2057, %v2175
      %v2200 = vadd.f32 %v2058, %v2177
      %v2201 = vadd.f32 %v2059, %v2180
      %v2202 = vadd.f32 %v2060, %v2182
      %v2203 = vadd.f32 %v2061, %v2185
      %v2204 = vadd.f32 %v2062, %v2187
      %v2205 = vld [vmem:[%s525] sm:$0x1]
      %v2207 = vperm.slane %v2205, 0
      %v2209 = vmul.f32 %v2189, %v2207
      %v2210 = vmul.f32 %v2190, %v2207
      %v2211 = vmul.f32 %v2191, %v2207
      %v2212 = vmul.f32 %v2192, %v2207
      %v2213 = vmul.f32 %v2193, %v2207
      %v2214 = vmul.f32 %v2194, %v2207
      %v2215 = vmul.f32 %v2195, %v2207
      %v2216 = vmul.f32 %v2196, %v2207
      %v2217 = vmul.f32 %v2197, %v2207
      %v2218 = vmul.f32 %v2198, %v2207
      %v2219 = vmul.f32 %v2199, %v2207
      %v2220 = vmul.f32 %v2200, %v2207
      %v2221 = vmul.f32 %v2201, %v2207
      %v2222 = vmul.f32 %v2202, %v2207
      %v2223 = vmul.f32 %v2203, %v2207
      %v2224 = vmul.f32 %v2204, %v2207
      %v2225 = vld [vmem:[%s528] sm:$0x1]
      %v2227 = vperm.slane %v2225, 0
      %v2229 = vadd.f32 %v2209, %v2227
      %v2230 = vadd.f32 %v2210, %v2227
      %v2231 = vadd.f32 %v2211, %v2227
      %v2232 = vadd.f32 %v2212, %v2227
      %v2233 = vadd.f32 %v2213, %v2227
      %v2234 = vadd.f32 %v2214, %v2227
      %v2235 = vadd.f32 %v2215, %v2227
      %v2236 = vadd.f32 %v2216, %v2227
      %v2237 = vadd.f32 %v2217, %v2227
      %v2238 = vadd.f32 %v2218, %v2227
      %v2239 = vadd.f32 %v2219, %v2227
      %v2240 = vadd.f32 %v2220, %v2227
      %v2241 = vadd.f32 %v2221, %v2227
      %v2242 = vadd.f32 %v2222, %v2227
      %v2243 = vadd.f32 %v2223, %v2227
      %v2244 = vadd.f32 %v2224, %v2227
      %v2245 = vld [vmem:[%s541] sm:$0xf]
      %v2246 = vld [vmem:[%s541 + $0x4] sm:$0xf]
      %v2247 = vld [vmem:[%s541 + $0x8] sm:$0x1]
      %v2248 = vld [vmem:[%s541 + $0xc] sm:$0xf]
      %v2249 = vld [vmem:[%s541 + $0x10] sm:$0xf]
      %v2250 = vld [vmem:[%s541 + $0x14] sm:$0x1]
      %v2251 = vld [vmem:[%s541 + $0x18] sm:$0xf]
      %v2252 = vld [vmem:[%s541 + $0x1c] sm:$0xf]
      %v2253 = vld [vmem:[%s541 + $0x20] sm:$0x1]
      %v2254 = vld [vmem:[%s541 + $0x24] sm:$0xf]
      %v2255 = vld [vmem:[%s541 + $0x28] sm:$0xf]
      %v2256 = vld [vmem:[%s541 + $0x2c] sm:$0x1]
      %v2257 = vld [vmem:[%s541 + $0x30] sm:$0xf]
      %v2258 = vld [vmem:[%s541 + $0x34] sm:$0xf]
      %v2259 = vld [vmem:[%s541 + $0x38] sm:$0x1]
      %v2260 = vld [vmem:[%s541 + $0x3c] sm:$0xf]
      %v2261 = vld [vmem:[%s541 + $0x40] sm:$0xf]
      %v2262 = vld [vmem:[%s541 + $0x44] sm:$0x1]
      %v2263 = vld [vmem:[%s541 + $0x48] sm:$0xf]
      %v2264 = vld [vmem:[%s541 + $0x4c] sm:$0xf]
      %v2265 = vld [vmem:[%s541 + $0x50] sm:$0x1]
      %v2266 = vld [vmem:[%s541 + $0x54] sm:$0xf]
      %v2267 = vld [vmem:[%s541 + $0x58] sm:$0xf]
      %v2268 = vld [vmem:[%s541 + $0x5c] sm:$0x1]
      %v2269 = vunpack.c.l.bf16 %v2245
      %v2270 = vunpack.c.l.bf16 %v2246
      %v2271 = vunpack.c.l.bf16 %v2247
      %v2272 = vunpack.c.l.bf16 %v2248
      %v2273 = vunpack.c.l.bf16 %v2249
      %v2274 = vunpack.c.l.bf16 %v2250
      %v2275 = vunpack.c.l.bf16 %v2251
      %v2276 = vunpack.c.l.bf16 %v2252
      %v2277 = vunpack.c.l.bf16 %v2253
      %v2278 = vunpack.c.l.bf16 %v2254
      %v2279 = vunpack.c.l.bf16 %v2255
      %v2280 = vunpack.c.l.bf16 %v2256
      %v2281 = vunpack.c.l.bf16 %v2257
      %v2282 = vunpack.c.l.bf16 %v2258
      %v2283 = vunpack.c.l.bf16 %v2259
      %v2284 = vunpack.c.l.bf16 %v2260
      %v2285 = vunpack.c.l.bf16 %v2261
      %v2286 = vunpack.c.l.bf16 %v2262
      %v2287 = vunpack.c.l.bf16 %v2263
      %v2288 = vunpack.c.l.bf16 %v2264
      %v2289 = vunpack.c.l.bf16 %v2265
      %v2290 = vunpack.c.l.bf16 %v2266
      %v2291 = vunpack.c.l.bf16 %v2267
      %v2292 = vunpack.c.l.bf16 %v2268
      %vm2317 = vcmask 1046528
      %v2318 = vrot.slane %v2269, 1
      %v2319 = vrot.slane %v2270, 1
      %v2320 = vsel %vm2317, %v2318, %v2319
      %v2321 = vrot.slane %v2271, 1
      %v2322 = vsel %vm2317, %v2319, %v2321
      %v2323 = vrot.slane %v2272, 1
      %v2324 = vrot.slane %v2273, 1
      %v2325 = vsel %vm2317, %v2323, %v2324
      %v2326 = vrot.slane %v2274, 1
      %v2327 = vsel %vm2317, %v2324, %v2326
      %v2328 = vrot.slane %v2275, 1
      %v2329 = vrot.slane %v2276, 1
      %v2330 = vsel %vm2317, %v2328, %v2329
      %v2331 = vrot.slane %v2277, 1
      %v2332 = vsel %vm2317, %v2329, %v2331
      %v2333 = vrot.slane %v2278, 1
      %v2334 = vrot.slane %v2279, 1
      %v2335 = vsel %vm2317, %v2333, %v2334
      %v2336 = vrot.slane %v2280, 1
      %v2337 = vsel %vm2317, %v2334, %v2336
      %v2338 = vrot.slane %v2281, 1
      %v2339 = vrot.slane %v2282, 1
      %v2340 = vsel %vm2317, %v2338, %v2339
      %v2341 = vrot.slane %v2283, 1
      %v2342 = vsel %vm2317, %v2339, %v2341
      %v2343 = vrot.slane %v2284, 1
      %v2344 = vrot.slane %v2285, 1
      %v2345 = vsel %vm2317, %v2343, %v2344
      %v2346 = vrot.slane %v2286, 1
      %v2347 = vsel %vm2317, %v2344, %v2346
      %v2348 = vrot.slane %v2287, 1
      %v2349 = vrot.slane %v2288, 1
      %v2350 = vsel %vm2317, %v2348, %v2349
      %v2351 = vrot.slane %v2289, 1
      %v2352 = vsel %vm2317, %v2349, %v2351
      %v2353 = vrot.slane %v2290, 1
      %v2354 = vrot.slane %v2291, 1
      %v2355 = vsel %vm2317, %v2353, %v2354
      %v2356 = vrot.slane %v2292, 1
      %v2357 = vsel %vm2317, %v2354, %v2356
      %v2374 = vadd.f32 %v2229, %v2320
      %v2375 = vadd.f32 %v2230, %v2322
      %v2376 = vadd.f32 %v2231, %v2325
      %v2377 = vadd.f32 %v2232, %v2327
      %v2378 = vadd.f32 %v2233, %v2330
      %v2379 = vadd.f32 %v2234, %v2332
      %v2380 = vadd.f32 %v2235, %v2335
      %v2381 = vadd.f32 %v2236, %v2337
      %v2382 = vadd.f32 %v2237, %v2340
      %v2383 = vadd.f32 %v2238, %v2342
      %v2384 = vadd.f32 %v2239, %v2345
      %v2385 = vadd.f32 %v2240, %v2347
      %v2386 = vadd.f32 %v2241, %v2350
      %v2387 = vadd.f32 %v2242, %v2352
      %v2388 = vadd.f32 %v2243, %v2355
      %v2389 = vadd.f32 %v2244, %v2357
      %v2390 = vmax.f32 %v2374, 0.0
      %v2391 = vmax.f32 %v2375, 0.0
      %v2392 = vmax.f32 %v2376, 0.0
      %v2393 = vmax.f32 %v2377, 0.0
      %v2394 = vmax.f32 %v2378, 0.0
      %v2395 = vmax.f32 %v2379, 0.0
      %v2396 = vmax.f32 %v2380, 0.0
      %v2397 = vmax.f32 %v2381, 0.0
      %v2398 = vmax.f32 %v2382, 0.0
      %v2399 = vmax.f32 %v2383, 0.0
      %v2400 = vmax.f32 %v2384, 0.0
      %v2401 = vmax.f32 %v2385, 0.0
      %v2402 = vmax.f32 %v2386, 0.0
      %v2403 = vmax.f32 %v2387, 0.0
      %v2404 = vmax.f32 %v2388, 0.0
      %v2405 = vmax.f32 %v2389, 0.0
      %vm2422 = vcmask 1040384
      %v2423 = vrot.slane %v2390, 7
      %v2424 = vrot.slane %v2391, 7
      %v2425 = vsel %vm2422, %v2423, %v2424
      %v2426 = vrot.slane %v2392, 7
      %v2427 = vrot.slane %v2393, 7
      %v2428 = vsel %vm2422, %v2426, %v2427
      %v2429 = vrot.slane %v2394, 7
      %v2430 = vrot.slane %v2395, 7
      %v2431 = vsel %vm2422, %v2429, %v2430
      %v2432 = vrot.slane %v2396, 7
      %v2433 = vrot.slane %v2397, 7
      %v2434 = vsel %vm2422, %v2432, %v2433
      %v2435 = vrot.slane %v2398, 7
      %v2436 = vrot.slane %v2399, 7
      %v2437 = vsel %vm2422, %v2435, %v2436
      %v2438 = vrot.slane %v2400, 7
      %v2439 = vrot.slane %v2401, 7
      %v2440 = vsel %vm2422, %v2438, %v2439
      %v2441 = vrot.slane %v2402, 7
      %v2442 = vrot.slane %v2403, 7
      %v2443 = vsel %vm2422, %v2441, %v2442
      %v2444 = vrot.slane %v2404, 7
      %v2445 = vrot.slane %v2405, 7
      %v2446 = vsel %vm2422, %v2444, %v2445
      %v2471 = vsel %vm2422, 0.0, %v2423
      %v2472 = vsel %vm2422, 0.0, %v2426
      %v2473 = vsel %vm2422, 0.0, %v2429
      %v2474 = vsel %vm2422, 0.0, %v2432
      %v2475 = vsel %vm2422, 0.0, %v2435
      %v2476 = vsel %vm2422, 0.0, %v2438
      %v2477 = vsel %vm2422, 0.0, %v2441
      %v2478 = vsel %vm2422, 0.0, %v2444
      %v2479 = vsel %vm2422, %v2424, 0.0
      %v2480 = vsel %vm2422, %v2427, 0.0
      %v2481 = vsel %vm2422, %v2430, 0.0
      %v2482 = vsel %vm2422, %v2433, 0.0
      %v2483 = vsel %vm2422, %v2436, 0.0
      %v2484 = vsel %vm2422, %v2439, 0.0
      %v2485 = vsel %vm2422, %v2442, 0.0
      %v2486 = vsel %vm2422, %v2445, 0.0
      %v2487 = vpack.c.bf16 %v2471, %v2471
      %v2488 = vpack.c.bf16 %v2425, %v2425
      %v2489 = vpack.c.bf16 %v2479, %v2479
      %v2490 = vpack.c.bf16 %v2472, %v2472
      %v2491 = vpack.c.bf16 %v2428, %v2428
      %v2492 = vpack.c.bf16 %v2480, %v2480
      %v2493 = vpack.c.bf16 %v2473, %v2473
      %v2494 = vpack.c.bf16 %v2431, %v2431
      %v2495 = vpack.c.bf16 %v2481, %v2481
      %v2496 = vpack.c.bf16 %v2474, %v2474
      %v2497 = vpack.c.bf16 %v2434, %v2434
      %v2498 = vpack.c.bf16 %v2482, %v2482
      %v2499 = vpack.c.bf16 %v2475, %v2475
      %v2500 = vpack.c.bf16 %v2437, %v2437
      %v2501 = vpack.c.bf16 %v2483, %v2483
      %v2502 = vpack.c.bf16 %v2476, %v2476
      %v2503 = vpack.c.bf16 %v2440, %v2440
      %v2504 = vpack.c.bf16 %v2484, %v2484
      %v2505 = vpack.c.bf16 %v2477, %v2477
      %v2506 = vpack.c.bf16 %v2443, %v2443
      %v2507 = vpack.c.bf16 %v2485, %v2485
      %v2508 = vpack.c.bf16 %v2478, %v2478
      %v2509 = vpack.c.bf16 %v2446, %v2446
      %v2510 = vpack.c.bf16 %v2486, %v2486
      %2511 = vst [vmem:[%s555] sm:$0xf] %v2487
      %2512 = vst [vmem:[%s555 + $0x4] sm:$0xf] %v2488
      %2513 = vst [vmem:[%s555 + $0x8] sm:$0x1] %v2489
      %2514 = vst [vmem:[%s555 + $0xc] sm:$0xf] %v2490
      %2515 = vst [vmem:[%s555 + $0x10] sm:$0xf] %v2491
      %2516 = vst [vmem:[%s555 + $0x14] sm:$0x1] %v2492
      %2517 = vst [vmem:[%s555 + $0x18] sm:$0xf] %v2493
      %2518 = vst [vmem:[%s555 + $0x1c] sm:$0xf] %v2494
      %2519 = vst [vmem:[%s555 + $0x20] sm:$0x1] %v2495
      %2520 = vst [vmem:[%s555 + $0x24] sm:$0xf] %v2496
      %2521 = vst [vmem:[%s555 + $0x28] sm:$0xf] %v2497
      %2522 = vst [vmem:[%s555 + $0x2c] sm:$0x1] %v2498
      %2523 = vst [vmem:[%s555 + $0x30] sm:$0xf] %v2499
      %2524 = vst [vmem:[%s555 + $0x34] sm:$0xf] %v2500
      %2525 = vst [vmem:[%s555 + $0x38] sm:$0x1] %v2501
      %2526 = vst [vmem:[%s555 + $0x3c] sm:$0xf] %v2502
      %2527 = vst [vmem:[%s555 + $0x40] sm:$0xf] %v2503
      %2528 = vst [vmem:[%s555 + $0x44] sm:$0x1] %v2504
      %2529 = vst [vmem:[%s555 + $0x48] sm:$0xf] %v2505
      %2530 = vst [vmem:[%s555 + $0x4c] sm:$0xf] %v2506
      %2531 = vst [vmem:[%s555 + $0x50] sm:$0x1] %v2507
      %2532 = vst [vmem:[%s555 + $0x54] sm:$0xf] %v2508
      %2533 = vst [vmem:[%s555 + $0x58] sm:$0xf] %v2509
      %2534 = vst [vmem:[%s555 + $0x5c] sm:$0x1] %v2510
      %s2535 = smul.u32 8, %s25
      %p2536 = scmp.lt.s32.totalorder %s23, 1
      %s2537 = scalar_select %p2536, %s23, 1
      %p2538 = scmp.lt.s32.totalorder %s2535, 15
      %s2539 = scalar_select %p2538, %s2535, 15
      %p2540 = scmp.lt.s32.totalorder %s24, 0
      %s2541 = scalar_select %p2540, %s24, 0
      %s2542 = smul.addr %s2539, 3
      %s2543 = sadd.s32 %s2541, %s2542
      %s2544 = smul.addr %s2537, 48
      %s2545 = sadd.s32 %s2543, %s2544
      %s2546 = smul.addr %s2545, 4
      %s2547 = scalar_lea.vmem %s7, %s2546
      // Predicated region
      $region49: #{_lambda_.3} parent=47 // pred_check
        %p2548 = pneg %p267
      $region50: #{_lambda_.3} parent=47 // pred_check_branch
        %2550 = sbr.rel (%p2548) target = $region52
      $region51: #{_lambda_.3} parent=47 // pred_region
        %s2551 = smul.u32 8, %s25
      $region52: #{_lambda_.3} parent=47 // pred_fallthru
        _
    $region48: #{_lambda_.3} parent=5 // pred_fallthru
      _
    %p2552 = scmp.le.s32.totalorder 2, %s13
    // Predicated region
    $region53: #{_lambda_.3} parent=5 // pred_check
      %p2553 = pneg %p2552
    $region54: #{_lambda_.3} parent=5 // pred_check_branch
      %2555 = sbr.rel (%p2553) target = $region56
    $region55: #{_lambda_.3} parent=5 // pred_region
      %s2556 = ssub.s32 %s13, 2
      // Predicated region
      $region57: #{_lambda_.3} parent=55 // pred_check
        %p2557 = pneg %p273
      $region58: #{_lambda_.3} parent=55 // pred_check_branch
        %2559 = sbr.rel (%p2557) target = $region60
      $region59: #{_lambda_.3} parent=55 // pred_region
        %s2560 = smul.u32 8, %s28
        %p2561 = scmp.lt.s32.totalorder %s26, 1
        %s2562 = scalar_select %p2561, %s26, 1
        %p2563 = scmp.lt.s32.totalorder %s2560, 15
        %s2564 = scalar_select %p2563, %s2560, 15
        %p2565 = scmp.lt.s32.totalorder %s27, 0
        %s2566 = scalar_select %p2565, %s27, 0
        %s2567 = smul.addr %s2564, 3
        %s2568 = sadd.s32 %s2566, %s2567
        %s2569 = smul.addr %s2562, 48
        %s2570 = sadd.s32 %s2568, %s2569
        %s2571 = smul.addr %s2570, 4
        %s2572 = scalar_lea.vmem %s7, %s2571
      $region60: #{_lambda_.3} parent=55 // pred_fallthru
        _
    $region56: #{_lambda_.3} parent=5 // pred_fallthru
      _
  $region6: #{_lambda_.3} parent=0 // loop_footer
    %s17 = sadd.s32 1, %s13
  $region7: #{_lambda_.3} parent=0 // loop_footer_branch
    %12 = sbr.rel target = $region3
  $region8: #{_lambda_.3} parent=0 // loop_exit
    _

</llo_original>
